<compile_context>
chip_gen: v5e
topology: v5e:2x2
jax: 0.10.0
libtpu: 0.0.40
codegen_flags: <defaults>
</compile_context>

<pallas_src>
import functools

import jax
import jax.numpy as jnp
from jax.experimental import pallas as pl
from jax.experimental.pallas import tpu as pltpu


def _round_up(x, m):
    return (x + m - 1) // m * m


# ----------------------------------------------------------------------------
# Fused conv (+ optional max-pool) kernel
#   grid = (B, pooled_rows); x block = one whole NHWC image (squeezed batch);
#   weights prepared as (taps, kdepth, Cout_pad) bf16; bias (1, Cout_pad) f32.
#   width_packed=True  -> taps = kh,    kdepth = kw*cin (input width-expanded)
#   width_packed=False -> taps = kh*kw, kdepth = cin
# ----------------------------------------------------------------------------
def _make_conv_pool_kernel(kh, kw, ow, cout, pool_h, pool_w, opw, ow_tile,
                           width_packed):
    def compute_row(x_ref, w_ref, b_ref, r, w0, wt):
        acc = jnp.zeros((wt, cout), jnp.float32)
        if width_packed:
            for i in range(kh):
                acc = acc + jnp.dot(x_ref[r + i, pl.ds(w0, wt), :], w_ref[i],
                                    preferred_element_type=jnp.float32)
        else:
            for i in range(kh):
                for j in range(kw):
                    acc = acc + jnp.dot(x_ref[r + i, pl.ds(w0 + j, wt), :],
                                        w_ref[i * kw + j],
                                        preferred_element_type=jnp.float32)
        return jnp.maximum(acc + b_ref[...], 0.0)          # bias + ReLU (f32)

    if pool_h == 1 and pool_w == 1:
        # conv2 path: no pooling, no scratch — store rows directly.
        def kernel(x_ref, w_ref, b_ref, o_ref):
            r = pl.program_id(1)
            for w0 in range(0, ow, ow_tile):
                wt = min(ow_tile, ow - w0)
                row = compute_row(x_ref, w_ref, b_ref, r, w0, wt)
                o_ref[pl.ds(w0, wt), :] = row.astype(o_ref.dtype)
        return kernel

    def kernel(x_ref, w_ref, b_ref, o_ref, rowmax_ref):
        row0 = pl.program_id(1) * pool_h
        for w0 in range(0, ow, ow_tile):
            wt = min(ow_tile, ow - w0)
            # post-ReLU values are >= 0, so 0 is a valid identity for the max
            rowmax = jnp.zeros((wt, cout), jnp.float32)
            for s in range(pool_h):
                rowmax = jnp.maximum(
                    rowmax, compute_row(x_ref, w_ref, b_ref, row0 + s, w0, wt))
            rowmax_ref[pl.ds(w0, wt), :] = rowmax
        if pool_w == 1:
            pooled = rowmax_ref[...]
        else:
            pooled = rowmax_ref[pl.ds(0, opw, stride=pool_w), :]
            for t in range(1, pool_w):
                pooled = jnp.maximum(
                    pooled, rowmax_ref[pl.ds(t, opw, stride=pool_w), :])
        o_ref[...] = pooled.astype(o_ref.dtype)

    return kernel


def conv_pool(x, w, b, *, kh, kw=None, width_packed=False,
              pool_h=1, pool_w=1, ow_tile=512, out_dtype=jnp.bfloat16):
    """Valid conv (stride 1) + ReLU (+ floor-mode max-pool), all in-kernel."""
    B, H, Wx, cdepth = x.shape
    taps, kdepth, cout = w.shape
    if width_packed:
        assert taps == kh and kdepth == cdepth
        ow = Wx                       # input already width-tap expanded
        kw = 1
    else:
        assert kw is not None and taps == kh * kw and kdepth == cdepth
        ow = Wx - kw + 1
    oh = H - kh + 1
    oph, opw = oh // pool_h, ow // pool_w
    pooling = not (pool_h == 1 and pool_w == 1)
    kernel = _make_conv_pool_kernel(kh, kw, ow, cout, pool_h, pool_w, opw,
                                    ow_tile, width_packed)
    scratch = [pltpu.VMEM((ow, cout), jnp.float32)] if pooling else []
    return pl.pallas_call(
        kernel,
        out_shape=jax.ShapeDtypeStruct((B, oph, opw, cout), out_dtype),
        grid=(B, oph),
        in_specs=[
            pl.BlockSpec((None, H, Wx, cdepth), lambda bb, r: (bb, 0, 0, 0)),
            pl.BlockSpec((taps, kdepth, cout), lambda bb, r: (0, 0, 0)),
            pl.BlockSpec((1, cout), lambda bb, r: (0, 0)),
        ],
        out_specs=pl.BlockSpec((None, None, opw, cout),
                               lambda bb, r: (bb, r, 0, 0)),
        scratch_shapes=scratch,
        compiler_params=pltpu.CompilerParams(
            dimension_semantics=("parallel", "parallel"),
            vmem_limit_bytes=32 * 1024 * 1024),
    )(x, w, b)


# ----------------------------------------------------------------------------
# dense (+ReLU) + output head, fused.  grid = (2 hidden-halves, K // tk):
# the hidden-half axis is "parallel" (both v7x TCs stream half of dw each),
# the contraction axis is "arbitrary" with a f32 VMEM accumulator.
# Each half emits a partial (M, NTp) head output; partials are summed (and the
# head bias added once) by a tiny XLA add in the wrapper.
# ----------------------------------------------------------------------------
def _dense_head_kernel(x_ref, w1_ref, b1_ref, w2_ref, o_ref, acc_ref):
    k = pl.program_id(1)

    @pl.when(k == 0)
    def _():
        acc_ref[...] = jnp.zeros_like(acc_ref)

    acc_ref[...] += jnp.dot(x_ref[...], w1_ref[...],
                            preferred_element_type=jnp.float32)

    @pl.when(k == pl.num_programs(1) - 1)
    def _():
        h = jnp.maximum(acc_ref[...] + b1_ref[...], 0.0)        # f32 epilogue
        o_ref[...] = jnp.dot(h.astype(jnp.bfloat16), w2_ref[...],
                             preferred_element_type=jnp.float32)


def _pick_tk(K, max_tk=16384):
    assert K % 128 == 0, f"dense contraction dim {K} must be a multiple of 128"
    best = 128
    for d in range(1, K // 128 + 1):
        tk = 128 * d
        if K % tk == 0 and tk <= max_tk:
            best = tk
    return best


def dense_head(flat, w1, b1, w2):
    M, K = flat.shape
    n_half, K2, half = w1.shape          # (2, K, 64)
    _, _, ntp = w2.shape                 # (2, 64, NTp)
    assert n_half == 2 and K2 == K
    tk = _pick_tk(K)
    nk = K // tk
    flops = 2 * M * K * (2 * half) + 2 * M * (2 * half) * ntp
    bytes_accessed = (w1.size * 2 + n_half * flat.size * 2 +
                      w2.size * 2 + n_half * M * ntp * 4)
    return pl.pallas_call(
        _dense_head_kernel,
        out_shape=jax.ShapeDtypeStruct((2, M, ntp), jnp.float32),
        grid=(2, nk),
        in_specs=[
            pl.BlockSpec((M, tk), lambda c, k: (0, k)),
            pl.BlockSpec((None, tk, half), lambda c, k: (c, k, 0)),
            pl.BlockSpec((None, 1, half), lambda c, k: (c, 0, 0)),
            pl.BlockSpec((None, half, ntp), lambda c, k: (c, 0, 0)),
        ],
        out_specs=pl.BlockSpec((None, M, ntp), lambda c, k: (c, 0, 0)),
        scratch_shapes=[pltpu.VMEM((M, half), jnp.float32)],
        compiler_params=pltpu.CompilerParams(
            dimension_semantics=("parallel", "arbitrary"),
            vmem_limit_bytes=32 * 1024 * 1024),
        cost_estimate=pl.CostEstimate(flops=flops, transcendentals=0,
                                      bytes_accessed=bytes_accessed),
    )(flat, w1, b1, w2)


# ----------------------------------------------------------------------------
# One-time parameter preparation (transpose / pad / permute; no work in forward)
# ----------------------------------------------------------------------------
def prepare_params(params, H, W, lane=128):
    kh1, kw1, kh2, kw2 = 6, 8, 3, 6
    pool_h, pool_w = 6, 3
    c1 = params["conv1_w"].shape[0]
    c2 = params["conv2_w"].shape[0]
    cin = params["conv1_w"].shape[1]
    c1p, c2p = _round_up(c1, lane), _round_up(c2, lane)

    oh1, ow1 = H - kh1 + 1, W - kw1 + 1
    ph, pw = oh1 // pool_h, ow1 // pool_w
    oh2, ow2 = ph - kh2 + 1, pw - kw2 + 1

    # conv1: (O, I, KH, KW) -> (KH, KW*I, O_pad) bf16 (width taps folded into
    # the MXU contraction, matching the (j, c) order of the width-tap-expanded
    # input); bias padded, f32.
    w1 = jnp.transpose(params["conv1_w"], (2, 3, 1, 0))       # (KH, KW, I, O)
    w1 = jnp.pad(w1, ((0, 0), (0, 0), (0, 0), (0, c1p - c1)))
    w1 = w1.reshape(kh1, kw1 * cin, c1p).astype(jnp.bfloat16)
    b1 = jnp.pad(params["conv1_b"], (0, c1p - c1)).reshape(1, c1p)
    b1 = b1.astype(jnp.float32)

    # conv2: pad Cin to conv1's padded Cout (extra channels are zero) and Cout.
    w2 = jnp.transpose(params["conv2_w"], (2, 3, 1, 0))
    w2 = jnp.pad(w2, ((0, 0), (0, 0), (0, c1p - c1), (0, c2p - c2)))
    w2 = w2.reshape(kh2 * kw2, c1p, c2p).astype(jnp.bfloat16)
    b2 = jnp.pad(params["conv2_b"], (0, c2p - c2)).reshape(1, c2p)
    b2 = b2.astype(jnp.float32)

    # dense: columns are in torch NCHW flatten order (c, h, w); permute to
    # NHWC (h, w, c) with the REAL channel count (no lane pad — the pad is
    # sliced off in the forward), and split the 128 hidden units into two
    # halves for the parallel grid axis: (2, K, 64).
    n_hidden = params["dense_w"].shape[0]
    dw = params["dense_w"].reshape(n_hidden, c2, oh2, ow2)
    dw = jnp.transpose(dw, (2, 3, 1, 0)).reshape(oh2 * ow2 * c2, n_hidden)
    dw = dw.astype(jnp.bfloat16)
    dw_split = jnp.transpose(dw.reshape(-1, 2, n_hidden // 2), (1, 0, 2))
    db_split = params["dense_b"].astype(jnp.float32).reshape(2, 1, n_hidden // 2)

    # head: (num_targets, 128) -> (2, 64, NT_pad) bf16 (lane-dense output);
    # bias (1, NT_pad) f32, added outside the kernel after the partial sum.
    nt = params["out_w"].shape[0]
    ntp = _round_up(nt, lane)
    hw = jnp.pad(jnp.transpose(params["out_w"]), ((0, 0), (0, ntp - nt)))
    hw_split = hw.reshape(2, n_hidden // 2, ntp).astype(jnp.bfloat16)
    hb = jnp.pad(params["out_b"], (0, ntp - nt)).reshape(1, ntp)
    hb = hb.astype(jnp.float32)

    return {"w1": w1, "b1": b1, "w2": w2, "b2": b2,
            "dw": dw_split, "db": db_split, "hw": hw_split, "hb": hb}


# ----------------------------------------------------------------------------
# Forward
# ----------------------------------------------------------------------------
@functools.partial(jax.jit, static_argnames=("num_targets",))
def usg_forward(x_nchw, prep, num_targets):
    B = x_nchw.shape[0]
    kh1, kw1 = 6, 8
    x = jnp.transpose(x_nchw, (0, 2, 3, 1)).astype(jnp.bfloat16)    # NHWC bf16
    ow1 = x.shape[2] - kw1 + 1
    # Width-tap expansion: fold conv1's kernel width into the channel axis so
    # each in-kernel MXU tap contracts over kw*cin = 24 instead of cin = 3.
    xw = jnp.concatenate([x[:, :, j:j + ow1, :] for j in range(kw1)], axis=-1)

    # conv1 + ReLU + MaxPool2d(6,3) fused in one kernel
    y1 = conv_pool(xw, prep["w1"], prep["b1"], kh=kh1, width_packed=True,
                   pool_h=6, pool_w=3)
    # conv2 + ReLU (no pooling, no scratch)
    y2 = conv_pool(y1, prep["w2"], prep["b2"], kh=3, kw=6)

    # Drop the conv2 lane padding before the dense contraction (halves the dw
    # HBM stream) and flatten NHWC — dense weight columns were pre-permuted to
    # match torch's NCHW x.view(B, -1), so no transpose is needed here.
    c2 = prep["dw"].shape[1] // (y2.shape[1] * y2.shape[2])
    flat = y2[..., :c2].reshape(B, -1)

    partials = dense_head(flat, prep["dw"], prep["db"], prep["hw"])  # (2,B,NTp)
    out_full = partials[0] + partials[1] + prep["hb"]
    return out_full[:, :num_targets]


# ----------------------------------------------------------------------------
# Pure-JAX reference (f32) for correctness check
# ----------------------------------------------------------------------------
def reference_forward(x_nchw, params):
    x = jnp.transpose(x_nchw, (0, 2, 3, 1)).astype(jnp.float32)
    dn = ("NHWC", "HWIO", "NHWC")
    w1 = jnp.transpose(params["conv1_w"], (2, 3, 1, 0))
    y = jax.lax.conv_general_dilated(x, w1, (1, 1), "VALID",
                                     dimension_numbers=dn) + params["conv1_b"]
    y = jax.nn.relu(y)
    y = jax.lax.reduce_window(y, -jnp.inf, jax.lax.max,
                              (1, 6, 3, 1), (1, 6, 3, 1), "VALID")
    w2 = jnp.transpose(params["conv2_w"], (2, 3, 1, 0))
    y = jax.lax.conv_general_dilated(y, w2, (1, 1), "VALID",
                                     dimension_numbers=dn) + params["conv2_b"]
    y = jax.nn.relu(y)
    y = jnp.transpose(y, (0, 3, 1, 2)).reshape(y.shape[0], -1)
    y = jax.nn.relu(y @ params["dense_w"].T + params["dense_b"])
    return y @ params["out_w"].T + params["out_b"]


# ----------------------------------------------------------------------------
# Main
# ----------------------------------------------------------------------------
if __name__ == "__main__":
    # Small shapes consistent with the module's arithmetic:
    #   H=29, W=31 -> conv1: 24x24 -> pool(6,3): 4x8 -> conv2: 2x3 -> flat 64*2*3
    # TODO(synk): the original module hard-codes Linear(64*18*504, 128), which
    # implies a ~(3, 128, 1536) input; here the dense in-dim is sized to this
    # small synthetic input (384) since the weights are generated in-script.
    B, CIN, H, W = 2, 3, 29, 31
    NUM_TARGETS = 1
    OH1, OW1 = H - 6 + 1, W - 8 + 1
    PH, PW = OH1 // 6, OW1 // 3
    OH2, OW2 = PH - 3 + 1, PW - 6 + 1
    FLAT = 64 * OH2 * OW2

    key = jax.random.PRNGKey(0)
    ks = jax.random.split(key, 10)
    scale = 0.05
    params = {
        "conv1_w": scale * jax.random.normal(ks[0], (32, 3, 6, 8), jnp.float32),
        "conv1_b": scale * jax.random.normal(ks[1], (32,), jnp.float32),
        "conv2_w": scale * jax.random.normal(ks[2], (64, 32, 3, 6), jnp.float32),
        "conv2_b": scale * jax.random.normal(ks[3], (64,), jnp.float32),
        "dense_w": scale * jax.random.normal(ks[4], (128, FLAT), jnp.float32),
        "dense_b": scale * jax.random.normal(ks[5], (128,), jnp.float32),
        "out_w": scale * jax.random.normal(ks[6], (NUM_TARGETS, 128), jnp.float32),
        "out_b": scale * jax.random.normal(ks[7], (NUM_TARGETS,), jnp.float32),
    }
    x = jax.random.normal(ks[8], (B, CIN, H, W), jnp.float32)

    prep = prepare_params(params, H, W)
    out = jax.block_until_ready(usg_forward(x, prep, num_targets=NUM_TARGETS))
    ref = jax.block_until_ready(reference_forward(x, params))

    assert out.shape == (B, NUM_TARGETS), out.shape
    assert jnp.allclose(out, ref, rtol=5e-2, atol=5e-2), (out, ref)
    print("KERNEL_OK")
</pallas_src>

<mosaic_0001>
module attributes {stable_mosaic.version = 11 : i64} {
  func.func @kernel(%arg0: i32, %arg1: i32, %arg2: memref<1x29x24x24xbf16, #tpu.memory_space<vmem>>, %arg3: memref<6x24x128xbf16, #tpu.memory_space<vmem>>, %arg4: memref<1x128xf32, #tpu.memory_space<vmem>>, %arg5: memref<1x1x8x128xbf16, #tpu.memory_space<vmem>>, %arg6: memref<24x128xf32, #tpu.memory_space<vmem>>) attributes {dimension_semantics = [#tpu.dimension_semantics<parallel>, #tpu.dimension_semantics<parallel>], iteration_bounds = array<i64: 2, 4>, scalar_prefetch = 0 : i64, scratch_operands = 1 : i64, tpu.core_type = #tpu.core_type<tc>, window_params = [{transform_indices = @transform_0, window_bounds = array<i64: 1, 29, 24, 24>}, {pipeline_mode = #tpu.pipeline_mode<synchronous>, transform_indices = @transform_1, window_bounds = array<i64: 6, 24, 128>}, {pipeline_mode = #tpu.pipeline_mode<synchronous>, transform_indices = @transform_2, window_bounds = array<i64: 1, 128>}, {transform_indices = @transform_3, window_bounds = array<i64: 1, 1, 8, 128>}]} {
    %c6_i32 = arith.constant 6 : i32
    %0 = arith.muli %arg1, %c6_i32 : i32
    %cst = arith.constant 0.000000e+00 : f32
    %1 = vector.broadcast %cst : f32 to vector<24x128xf32>
    %c0_i32 = arith.constant 0 : i32
    %2 = arith.addi %0, %c0_i32 : i32
    %cst_0 = arith.constant 0.000000e+00 : f32
    %3 = vector.broadcast %cst_0 : f32 to vector<24x128xf32>
    %c0_i32_1 = arith.constant 0 : i32
    %4 = arith.addi %2, %c0_i32_1 : i32
    %c0 = arith.constant 0 : index
    %5 = arith.index_cast %4 : i32 to index
    %c0_2 = arith.constant 0 : index
    %c0_3 = arith.constant 0 : index
    %6 = vector.load %arg2[%c0, %5, %c0_2, %c0_3] : memref<1x29x24x24xbf16, #tpu.memory_space<vmem>>, vector<1x1x24x24xbf16>
    %7 = vector.shape_cast %6 : vector<1x1x24x24xbf16> to vector<24x24xbf16>
    %c0_4 = arith.constant 0 : index
    %c0_5 = arith.constant 0 : index
    %c0_6 = arith.constant 0 : index
    %8 = vector.load %arg3[%c0_4, %c0_5, %c0_6] : memref<6x24x128xbf16, #tpu.memory_space<vmem>>, vector<1x24x128xbf16>
    %9 = vector.shape_cast %8 : vector<1x24x128xbf16> to vector<24x128xbf16>
    %cst_7 = arith.constant dense<0.000000e+00> : vector<24x128xf32>
    %10 = tpu.matmul %7, %9, %cst_7 {dimension_numbers = #tpu.dot_dimension_numbers<[1], [0], [0], [1], [0, 0, 1, 1], [], []>} : vector<24x24xbf16>, vector<24x128xbf16>, vector<24x128xf32> -> vector<24x128xf32>
    %11 = arith.addf %3, %10 : vector<24x128xf32>
    %c1_i32 = arith.constant 1 : i32
    %12 = arith.addi %2, %c1_i32 : i32
    %c0_8 = arith.constant 0 : index
    %13 = arith.index_cast %12 : i32 to index
    %c0_9 = arith.constant 0 : index
    %c0_10 = arith.constant 0 : index
    %14 = vector.load %arg2[%c0_8, %13, %c0_9, %c0_10] : memref<1x29x24x24xbf16, #tpu.memory_space<vmem>>, vector<1x1x24x24xbf16>
    %15 = vector.shape_cast %14 : vector<1x1x24x24xbf16> to vector<24x24xbf16>
    %c1 = arith.constant 1 : index
    %c0_11 = arith.constant 0 : index
    %c0_12 = arith.constant 0 : index
    %16 = vector.load %arg3[%c1, %c0_11, %c0_12] : memref<6x24x128xbf16, #tpu.memory_space<vmem>>, vector<1x24x128xbf16>
    %17 = vector.shape_cast %16 : vector<1x24x128xbf16> to vector<24x128xbf16>
    %cst_13 = arith.constant dense<0.000000e+00> : vector<24x128xf32>
    %18 = tpu.matmul %15, %17, %cst_13 {dimension_numbers = #tpu.dot_dimension_numbers<[1], [0], [0], [1], [0, 0, 1, 1], [], []>} : vector<24x24xbf16>, vector<24x128xbf16>, vector<24x128xf32> -> vector<24x128xf32>
    %19 = arith.addf %11, %18 : vector<24x128xf32>
    %c2_i32 = arith.constant 2 : i32
    %20 = arith.addi %2, %c2_i32 : i32
    %c0_14 = arith.constant 0 : index
    %21 = arith.index_cast %20 : i32 to index
    %c0_15 = arith.constant 0 : index
    %c0_16 = arith.constant 0 : index
    %22 = vector.load %arg2[%c0_14, %21, %c0_15, %c0_16] : memref<1x29x24x24xbf16, #tpu.memory_space<vmem>>, vector<1x1x24x24xbf16>
    %23 = vector.shape_cast %22 : vector<1x1x24x24xbf16> to vector<24x24xbf16>
    %c2 = arith.constant 2 : index
    %c0_17 = arith.constant 0 : index
    %c0_18 = arith.constant 0 : index
    %24 = vector.load %arg3[%c2, %c0_17, %c0_18] : memref<6x24x128xbf16, #tpu.memory_space<vmem>>, vector<1x24x128xbf16>
    %25 = vector.shape_cast %24 : vector<1x24x128xbf16> to vector<24x128xbf16>
    %cst_19 = arith.constant dense<0.000000e+00> : vector<24x128xf32>
    %26 = tpu.matmul %23, %25, %cst_19 {dimension_numbers = #tpu.dot_dimension_numbers<[1], [0], [0], [1], [0, 0, 1, 1], [], []>} : vector<24x24xbf16>, vector<24x128xbf16>, vector<24x128xf32> -> vector<24x128xf32>
    %27 = arith.addf %19, %26 : vector<24x128xf32>
    %c3_i32 = arith.constant 3 : i32
    %28 = arith.addi %2, %c3_i32 : i32
    %c0_20 = arith.constant 0 : index
    %29 = arith.index_cast %28 : i32 to index
    %c0_21 = arith.constant 0 : index
    %c0_22 = arith.constant 0 : index
    %30 = vector.load %arg2[%c0_20, %29, %c0_21, %c0_22] : memref<1x29x24x24xbf16, #tpu.memory_space<vmem>>, vector<1x1x24x24xbf16>
    %31 = vector.shape_cast %30 : vector<1x1x24x24xbf16> to vector<24x24xbf16>
    %c3 = arith.constant 3 : index
    %c0_23 = arith.constant 0 : index
    %c0_24 = arith.constant 0 : index
    %32 = vector.load %arg3[%c3, %c0_23, %c0_24] : memref<6x24x128xbf16, #tpu.memory_space<vmem>>, vector<1x24x128xbf16>
    %33 = vector.shape_cast %32 : vector<1x24x128xbf16> to vector<24x128xbf16>
    %cst_25 = arith.constant dense<0.000000e+00> : vector<24x128xf32>
    %34 = tpu.matmul %31, %33, %cst_25 {dimension_numbers = #tpu.dot_dimension_numbers<[1], [0], [0], [1], [0, 0, 1, 1], [], []>} : vector<24x24xbf16>, vector<24x128xbf16>, vector<24x128xf32> -> vector<24x128xf32>
    %35 = arith.addf %27, %34 : vector<24x128xf32>
    %c4_i32 = arith.constant 4 : i32
    %36 = arith.addi %2, %c4_i32 : i32
    %c0_26 = arith.constant 0 : index
    %37 = arith.index_cast %36 : i32 to index
    %c0_27 = arith.constant 0 : index
    %c0_28 = arith.constant 0 : index
    %38 = vector.load %arg2[%c0_26, %37, %c0_27, %c0_28] : memref<1x29x24x24xbf16, #tpu.memory_space<vmem>>, vector<1x1x24x24xbf16>
    %39 = vector.shape_cast %38 : vector<1x1x24x24xbf16> to vector<24x24xbf16>
    %c4 = arith.constant 4 : index
    %c0_29 = arith.constant 0 : index
    %c0_30 = arith.constant 0 : index
    %40 = vector.load %arg3[%c4, %c0_29, %c0_30] : memref<6x24x128xbf16, #tpu.memory_space<vmem>>, vector<1x24x128xbf16>
    %41 = vector.shape_cast %40 : vector<1x24x128xbf16> to vector<24x128xbf16>
    %cst_31 = arith.constant dense<0.000000e+00> : vector<24x128xf32>
    %42 = tpu.matmul %39, %41, %cst_31 {dimension_numbers = #tpu.dot_dimension_numbers<[1], [0], [0], [1], [0, 0, 1, 1], [], []>} : vector<24x24xbf16>, vector<24x128xbf16>, vector<24x128xf32> -> vector<24x128xf32>
    %43 = arith.addf %35, %42 : vector<24x128xf32>
    %c5_i32 = arith.constant 5 : i32
    %44 = arith.addi %2, %c5_i32 : i32
    %c0_32 = arith.constant 0 : index
    %45 = arith.index_cast %44 : i32 to index
    %c0_33 = arith.constant 0 : index
    %c0_34 = arith.constant 0 : index
    %46 = vector.load %arg2[%c0_32, %45, %c0_33, %c0_34] : memref<1x29x24x24xbf16, #tpu.memory_space<vmem>>, vector<1x1x24x24xbf16>
    %47 = vector.shape_cast %46 : vector<1x1x24x24xbf16> to vector<24x24xbf16>
    %c5 = arith.constant 5 : index
    %c0_35 = arith.constant 0 : index
    %c0_36 = arith.constant 0 : index
    %48 = vector.load %arg3[%c5, %c0_35, %c0_36] : memref<6x24x128xbf16, #tpu.memory_space<vmem>>, vector<1x24x128xbf16>
    %49 = vector.shape_cast %48 : vector<1x24x128xbf16> to vector<24x128xbf16>
    %cst_37 = arith.constant dense<0.000000e+00> : vector<24x128xf32>
    %50 = tpu.matmul %47, %49, %cst_37 {dimension_numbers = #tpu.dot_dimension_numbers<[1], [0], [0], [1], [0, 0, 1, 1], [], []>} : vector<24x24xbf16>, vector<24x128xbf16>, vector<24x128xf32> -> vector<24x128xf32>
    %51 = arith.addf %43, %50 : vector<24x128xf32>
    %c0_38 = arith.constant 0 : index
    %c0_39 = arith.constant 0 : index
    %52 = vector.load %arg4[%c0_38, %c0_39] : memref<1x128xf32, #tpu.memory_space<vmem>>, vector<1x128xf32>
    %53 = vector.broadcast %52 : vector<1x128xf32> to vector<24x128xf32>
    %54 = arith.addf %51, %53 : vector<24x128xf32>
    %cst_40 = arith.constant 0.000000e+00 : f32
    %55 = vector.broadcast %cst_40 : f32 to vector<24x128xf32>
    %56 = arith.maximumf %54, %55 : vector<24x128xf32>
    %57 = arith.maximumf %1, %56 : vector<24x128xf32>
    %c1_i32_41 = arith.constant 1 : i32
    %58 = arith.addi %0, %c1_i32_41 : i32
    %cst_42 = arith.constant 0.000000e+00 : f32
    %59 = vector.broadcast %cst_42 : f32 to vector<24x128xf32>
    %c0_i32_43 = arith.constant 0 : i32
    %60 = arith.addi %58, %c0_i32_43 : i32
    %c0_44 = arith.constant 0 : index
    %61 = arith.index_cast %60 : i32 to index
    %c0_45 = arith.constant 0 : index
    %c0_46 = arith.constant 0 : index
    %62 = vector.load %arg2[%c0_44, %61, %c0_45, %c0_46] : memref<1x29x24x24xbf16, #tpu.memory_space<vmem>>, vector<1x1x24x24xbf16>
    %63 = vector.shape_cast %62 : vector<1x1x24x24xbf16> to vector<24x24xbf16>
    %c0_47 = arith.constant 0 : index
    %c0_48 = arith.constant 0 : index
    %c0_49 = arith.constant 0 : index
    %64 = vector.load %arg3[%c0_47, %c0_48, %c0_49] : memref<6x24x128xbf16, #tpu.memory_space<vmem>>, vector<1x24x128xbf16>
    %65 = vector.shape_cast %64 : vector<1x24x128xbf16> to vector<24x128xbf16>
    %cst_50 = arith.constant dense<0.000000e+00> : vector<24x128xf32>
    %66 = tpu.matmul %63, %65, %cst_50 {dimension_numbers = #tpu.dot_dimension_numbers<[1], [0], [0], [1], [0, 0, 1, 1], [], []>} : vector<24x24xbf16>, vector<24x128xbf16>, vector<24x128xf32> -> vector<24x128xf32>
    %67 = arith.addf %59, %66 : vector<24x128xf32>
    %c1_i32_51 = arith.constant 1 : i32
    %68 = arith.addi %58, %c1_i32_51 : i32
    %c0_52 = arith.constant 0 : index
    %69 = arith.index_cast %68 : i32 to index
    %c0_53 = arith.constant 0 : index
    %c0_54 = arith.constant 0 : index
    %70 = vector.load %arg2[%c0_52, %69, %c0_53, %c0_54] : memref<1x29x24x24xbf16, #tpu.memory_space<vmem>>, vector<1x1x24x24xbf16>
    %71 = vector.shape_cast %70 : vector<1x1x24x24xbf16> to vector<24x24xbf16>
    %c1_55 = arith.constant 1 : index
    %c0_56 = arith.constant 0 : index
    %c0_57 = arith.constant 0 : index
    %72 = vector.load %arg3[%c1_55, %c0_56, %c0_57] : memref<6x24x128xbf16, #tpu.memory_space<vmem>>, vector<1x24x128xbf16>
    %73 = vector.shape_cast %72 : vector<1x24x128xbf16> to vector<24x128xbf16>
    %cst_58 = arith.constant dense<0.000000e+00> : vector<24x128xf32>
    %74 = tpu.matmul %71, %73, %cst_58 {dimension_numbers = #tpu.dot_dimension_numbers<[1], [0], [0], [1], [0, 0, 1, 1], [], []>} : vector<24x24xbf16>, vector<24x128xbf16>, vector<24x128xf32> -> vector<24x128xf32>
    %75 = arith.addf %67, %74 : vector<24x128xf32>
    %c2_i32_59 = arith.constant 2 : i32
    %76 = arith.addi %58, %c2_i32_59 : i32
    %c0_60 = arith.constant 0 : index
    %77 = arith.index_cast %76 : i32 to index
    %c0_61 = arith.constant 0 : index
    %c0_62 = arith.constant 0 : index
    %78 = vector.load %arg2[%c0_60, %77, %c0_61, %c0_62] : memref<1x29x24x24xbf16, #tpu.memory_space<vmem>>, vector<1x1x24x24xbf16>
    %79 = vector.shape_cast %78 : vector<1x1x24x24xbf16> to vector<24x24xbf16>
    %c2_63 = arith.constant 2 : index
    %c0_64 = arith.constant 0 : index
    %c0_65 = arith.constant 0 : index
    %80 = vector.load %arg3[%c2_63, %c0_64, %c0_65] : memref<6x24x128xbf16, #tpu.memory_space<vmem>>, vector<1x24x128xbf16>
    %81 = vector.shape_cast %80 : vector<1x24x128xbf16> to vector<24x128xbf16>
    %cst_66 = arith.constant dense<0.000000e+00> : vector<24x128xf32>
    %82 = tpu.matmul %79, %81, %cst_66 {dimension_numbers = #tpu.dot_dimension_numbers<[1], [0], [0], [1], [0, 0, 1, 1], [], []>} : vector<24x24xbf16>, vector<24x128xbf16>, vector<24x128xf32> -> vector<24x128xf32>
    %83 = arith.addf %75, %82 : vector<24x128xf32>
    %c3_i32_67 = arith.constant 3 : i32
    %84 = arith.addi %58, %c3_i32_67 : i32
    %c0_68 = arith.constant 0 : index
    %85 = arith.index_cast %84 : i32 to index
    %c0_69 = arith.constant 0 : index
    %c0_70 = arith.constant 0 : index
    %86 = vector.load %arg2[%c0_68, %85, %c0_69, %c0_70] : memref<1x29x24x24xbf16, #tpu.memory_space<vmem>>, vector<1x1x24x24xbf16>
    %87 = vector.shape_cast %86 : vector<1x1x24x24xbf16> to vector<24x24xbf16>
    %c3_71 = arith.constant 3 : index
    %c0_72 = arith.constant 0 : index
    %c0_73 = arith.constant 0 : index
    %88 = vector.load %arg3[%c3_71, %c0_72, %c0_73] : memref<6x24x128xbf16, #tpu.memory_space<vmem>>, vector<1x24x128xbf16>
    %89 = vector.shape_cast %88 : vector<1x24x128xbf16> to vector<24x128xbf16>
    %cst_74 = arith.constant dense<0.000000e+00> : vector<24x128xf32>
    %90 = tpu.matmul %87, %89, %cst_74 {dimension_numbers = #tpu.dot_dimension_numbers<[1], [0], [0], [1], [0, 0, 1, 1], [], []>} : vector<24x24xbf16>, vector<24x128xbf16>, vector<24x128xf32> -> vector<24x128xf32>
    %91 = arith.addf %83, %90 : vector<24x128xf32>
    %c4_i32_75 = arith.constant 4 : i32
    %92 = arith.addi %58, %c4_i32_75 : i32
    %c0_76 = arith.constant 0 : index
    %93 = arith.index_cast %92 : i32 to index
    %c0_77 = arith.constant 0 : index
    %c0_78 = arith.constant 0 : index
    %94 = vector.load %arg2[%c0_76, %93, %c0_77, %c0_78] : memref<1x29x24x24xbf16, #tpu.memory_space<vmem>>, vector<1x1x24x24xbf16>
    %95 = vector.shape_cast %94 : vector<1x1x24x24xbf16> to vector<24x24xbf16>
    %c4_79 = arith.constant 4 : index
    %c0_80 = arith.constant 0 : index
    %c0_81 = arith.constant 0 : index
    %96 = vector.load %arg3[%c4_79, %c0_80, %c0_81] : memref<6x24x128xbf16, #tpu.memory_space<vmem>>, vector<1x24x128xbf16>
    %97 = vector.shape_cast %96 : vector<1x24x128xbf16> to vector<24x128xbf16>
    %cst_82 = arith.constant dense<0.000000e+00> : vector<24x128xf32>
    %98 = tpu.matmul %95, %97, %cst_82 {dimension_numbers = #tpu.dot_dimension_numbers<[1], [0], [0], [1], [0, 0, 1, 1], [], []>} : vector<24x24xbf16>, vector<24x128xbf16>, vector<24x128xf32> -> vector<24x128xf32>
    %99 = arith.addf %91, %98 : vector<24x128xf32>
    %c5_i32_83 = arith.constant 5 : i32
    %100 = arith.addi %58, %c5_i32_83 : i32
    %c0_84 = arith.constant 0 : index
    %101 = arith.index_cast %100 : i32 to index
    %c0_85 = arith.constant 0 : index
    %c0_86 = arith.constant 0 : index
    %102 = vector.load %arg2[%c0_84, %101, %c0_85, %c0_86] : memref<1x29x24x24xbf16, #tpu.memory_space<vmem>>, vector<1x1x24x24xbf16>
    %103 = vector.shape_cast %102 : vector<1x1x24x24xbf16> to vector<24x24xbf16>
    %c5_87 = arith.constant 5 : index
    %c0_88 = arith.constant 0 : index
    %c0_89 = arith.constant 0 : index
    %104 = vector.load %arg3[%c5_87, %c0_88, %c0_89] : memref<6x24x128xbf16, #tpu.memory_space<vmem>>, vector<1x24x128xbf16>
    %105 = vector.shape_cast %104 : vector<1x24x128xbf16> to vector<24x128xbf16>
    %cst_90 = arith.constant dense<0.000000e+00> : vector<24x128xf32>
    %106 = tpu.matmul %103, %105, %cst_90 {dimension_numbers = #tpu.dot_dimension_numbers<[1], [0], [0], [1], [0, 0, 1, 1], [], []>} : vector<24x24xbf16>, vector<24x128xbf16>, vector<24x128xf32> -> vector<24x128xf32>
    %107 = arith.addf %99, %106 : vector<24x128xf32>
    %c0_91 = arith.constant 0 : index
    %c0_92 = arith.constant 0 : index
    %108 = vector.load %arg4[%c0_91, %c0_92] : memref<1x128xf32, #tpu.memory_space<vmem>>, vector<1x128xf32>
    %109 = vector.broadcast %108 : vector<1x128xf32> to vector<24x128xf32>
    %110 = arith.addf %107, %109 : vector<24x128xf32>
    %cst_93 = arith.constant 0.000000e+00 : f32
    %111 = vector.broadcast %cst_93 : f32 to vector<24x128xf32>
    %112 = arith.maximumf %110, %111 : vector<24x128xf32>
    %113 = arith.maximumf %57, %112 : vector<24x128xf32>
    %c2_i32_94 = arith.constant 2 : i32
    %114 = arith.addi %0, %c2_i32_94 : i32
    %cst_95 = arith.constant 0.000000e+00 : f32
    %115 = vector.broadcast %cst_95 : f32 to vector<24x128xf32>
    %c0_i32_96 = arith.constant 0 : i32
    %116 = arith.addi %114, %c0_i32_96 : i32
    %c0_97 = arith.constant 0 : index
    %117 = arith.index_cast %116 : i32 to index
    %c0_98 = arith.constant 0 : index
    %c0_99 = arith.constant 0 : index
    %118 = vector.load %arg2[%c0_97, %117, %c0_98, %c0_99] : memref<1x29x24x24xbf16, #tpu.memory_space<vmem>>, vector<1x1x24x24xbf16>
    %119 = vector.shape_cast %118 : vector<1x1x24x24xbf16> to vector<24x24xbf16>
    %c0_100 = arith.constant 0 : index
    %c0_101 = arith.constant 0 : index
    %c0_102 = arith.constant 0 : index
    %120 = vector.load %arg3[%c0_100, %c0_101, %c0_102] : memref<6x24x128xbf16, #tpu.memory_space<vmem>>, vector<1x24x128xbf16>
    %121 = vector.shape_cast %120 : vector<1x24x128xbf16> to vector<24x128xbf16>
    %cst_103 = arith.constant dense<0.000000e+00> : vector<24x128xf32>
    %122 = tpu.matmul %119, %121, %cst_103 {dimension_numbers = #tpu.dot_dimension_numbers<[1], [0], [0], [1], [0, 0, 1, 1], [], []>} : vector<24x24xbf16>, vector<24x128xbf16>, vector<24x128xf32> -> vector<24x128xf32>
    %123 = arith.addf %115, %122 : vector<24x128xf32>
    %c1_i32_104 = arith.constant 1 : i32
    %124 = arith.addi %114, %c1_i32_104 : i32
    %c0_105 = arith.constant 0 : index
    %125 = arith.index_cast %124 : i32 to index
    %c0_106 = arith.constant 0 : index
    %c0_107 = arith.constant 0 : index
    %126 = vector.load %arg2[%c0_105, %125, %c0_106, %c0_107] : memref<1x29x24x24xbf16, #tpu.memory_space<vmem>>, vector<1x1x24x24xbf16>
    %127 = vector.shape_cast %126 : vector<1x1x24x24xbf16> to vector<24x24xbf16>
    %c1_108 = arith.constant 1 : index
    %c0_109 = arith.constant 0 : index
    %c0_110 = arith.constant 0 : index
    %128 = vector.load %arg3[%c1_108, %c0_109, %c0_110] : memref<6x24x128xbf16, #tpu.memory_space<vmem>>, vector<1x24x128xbf16>
    %129 = vector.shape_cast %128 : vector<1x24x128xbf16> to vector<24x128xbf16>
    %cst_111 = arith.constant dense<0.000000e+00> : vector<24x128xf32>
    %130 = tpu.matmul %127, %129, %cst_111 {dimension_numbers = #tpu.dot_dimension_numbers<[1], [0], [0], [1], [0, 0, 1, 1], [], []>} : vector<24x24xbf16>, vector<24x128xbf16>, vector<24x128xf32> -> vector<24x128xf32>
    %131 = arith.addf %123, %130 : vector<24x128xf32>
    %c2_i32_112 = arith.constant 2 : i32
    %132 = arith.addi %114, %c2_i32_112 : i32
    %c0_113 = arith.constant 0 : index
    %133 = arith.index_cast %132 : i32 to index
    %c0_114 = arith.constant 0 : index
    %c0_115 = arith.constant 0 : index
    %134 = vector.load %arg2[%c0_113, %133, %c0_114, %c0_115] : memref<1x29x24x24xbf16, #tpu.memory_space<vmem>>, vector<1x1x24x24xbf16>
    %135 = vector.shape_cast %134 : vector<1x1x24x24xbf16> to vector<24x24xbf16>
    %c2_116 = arith.constant 2 : index
    %c0_117 = arith.constant 0 : index
    %c0_118 = arith.constant 0 : index
    %136 = vector.load %arg3[%c2_116, %c0_117, %c0_118] : memref<6x24x128xbf16, #tpu.memory_space<vmem>>, vector<1x24x128xbf16>
    %137 = vector.shape_cast %136 : vector<1x24x128xbf16> to vector<24x128xbf16>
    %cst_119 = arith.constant dense<0.000000e+00> : vector<24x128xf32>
    %138 = tpu.matmul %135, %137, %cst_119 {dimension_numbers = #tpu.dot_dimension_numbers<[1], [0], [0], [1], [0, 0, 1, 1], [], []>} : vector<24x24xbf16>, vector<24x128xbf16>, vector<24x128xf32> -> vector<24x128xf32>
    %139 = arith.addf %131, %138 : vector<24x128xf32>
    %c3_i32_120 = arith.constant 3 : i32
    %140 = arith.addi %114, %c3_i32_120 : i32
    %c0_121 = arith.constant 0 : index
    %141 = arith.index_cast %140 : i32 to index
    %c0_122 = arith.constant 0 : index
    %c0_123 = arith.constant 0 : index
    %142 = vector.load %arg2[%c0_121, %141, %c0_122, %c0_123] : memref<1x29x24x24xbf16, #tpu.memory_space<vmem>>, vector<1x1x24x24xbf16>
    %143 = vector.shape_cast %142 : vector<1x1x24x24xbf16> to vector<24x24xbf16>
    %c3_124 = arith.constant 3 : index
    %c0_125 = arith.constant 0 : index
    %c0_126 = arith.constant 0 : index
    %144 = vector.load %arg3[%c3_124, %c0_125, %c0_126] : memref<6x24x128xbf16, #tpu.memory_space<vmem>>, vector<1x24x128xbf16>
    %145 = vector.shape_cast %144 : vector<1x24x128xbf16> to vector<24x128xbf16>
    %cst_127 = arith.constant dense<0.000000e+00> : vector<24x128xf32>
    %146 = tpu.matmul %143, %145, %cst_127 {dimension_numbers = #tpu.dot_dimension_numbers<[1], [0], [0], [1], [0, 0, 1, 1], [], []>} : vector<24x24xbf16>, vector<24x128xbf16>, vector<24x128xf32> -> vector<24x128xf32>
    %147 = arith.addf %139, %146 : vector<24x128xf32>
    %c4_i32_128 = arith.constant 4 : i32
    %148 = arith.addi %114, %c4_i32_128 : i32
    %c0_129 = arith.constant 0 : index
    %149 = arith.index_cast %148 : i32 to index
    %c0_130 = arith.constant 0 : index
    %c0_131 = arith.constant 0 : index
    %150 = vector.load %arg2[%c0_129, %149, %c0_130, %c0_131] : memref<1x29x24x24xbf16, #tpu.memory_space<vmem>>, vector<1x1x24x24xbf16>
    %151 = vector.shape_cast %150 : vector<1x1x24x24xbf16> to vector<24x24xbf16>
    %c4_132 = arith.constant 4 : index
    %c0_133 = arith.constant 0 : index
    %c0_134 = arith.constant 0 : index
    %152 = vector.load %arg3[%c4_132, %c0_133, %c0_134] : memref<6x24x128xbf16, #tpu.memory_space<vmem>>, vector<1x24x128xbf16>
    %153 = vector.shape_cast %152 : vector<1x24x128xbf16> to vector<24x128xbf16>
    %cst_135 = arith.constant dense<0.000000e+00> : vector<24x128xf32>
    %154 = tpu.matmul %151, %153, %cst_135 {dimension_numbers = #tpu.dot_dimension_numbers<[1], [0], [0], [1], [0, 0, 1, 1], [], []>} : vector<24x24xbf16>, vector<24x128xbf16>, vector<24x128xf32> -> vector<24x128xf32>
    %155 = arith.addf %147, %154 : vector<24x128xf32>
    %c5_i32_136 = arith.constant 5 : i32
    %156 = arith.addi %114, %c5_i32_136 : i32
    %c0_137 = arith.constant 0 : index
    %157 = arith.index_cast %156 : i32 to index
    %c0_138 = arith.constant 0 : index
    %c0_139 = arith.constant 0 : index
    %158 = vector.load %arg2[%c0_137, %157, %c0_138, %c0_139] : memref<1x29x24x24xbf16, #tpu.memory_space<vmem>>, vector<1x1x24x24xbf16>
    %159 = vector.shape_cast %158 : vector<1x1x24x24xbf16> to vector<24x24xbf16>
    %c5_140 = arith.constant 5 : index
    %c0_141 = arith.constant 0 : index
    %c0_142 = arith.constant 0 : index
    %160 = vector.load %arg3[%c5_140, %c0_141, %c0_142] : memref<6x24x128xbf16, #tpu.memory_space<vmem>>, vector<1x24x128xbf16>
    %161 = vector.shape_cast %160 : vector<1x24x128xbf16> to vector<24x128xbf16>
    %cst_143 = arith.constant dense<0.000000e+00> : vector<24x128xf32>
    %162 = tpu.matmul %159, %161, %cst_143 {dimension_numbers = #tpu.dot_dimension_numbers<[1], [0], [0], [1], [0, 0, 1, 1], [], []>} : vector<24x24xbf16>, vector<24x128xbf16>, vector<24x128xf32> -> vector<24x128xf32>
    %163 = arith.addf %155, %162 : vector<24x128xf32>
    %c0_144 = arith.constant 0 : index
    %c0_145 = arith.constant 0 : index
    %164 = vector.load %arg4[%c0_144, %c0_145] : memref<1x128xf32, #tpu.memory_space<vmem>>, vector<1x128xf32>
    %165 = vector.broadcast %164 : vector<1x128xf32> to vector<24x128xf32>
    %166 = arith.addf %163, %165 : vector<24x128xf32>
    %cst_146 = arith.constant 0.000000e+00 : f32
    %167 = vector.broadcast %cst_146 : f32 to vector<24x128xf32>
    %168 = arith.maximumf %166, %167 : vector<24x128xf32>
    %169 = arith.maximumf %113, %168 : vector<24x128xf32>
    %c3_i32_147 = arith.constant 3 : i32
    %170 = arith.addi %0, %c3_i32_147 : i32
    %cst_148 = arith.constant 0.000000e+00 : f32
    %171 = vector.broadcast %cst_148 : f32 to vector<24x128xf32>
    %c0_i32_149 = arith.constant 0 : i32
    %172 = arith.addi %170, %c0_i32_149 : i32
    %c0_150 = arith.constant 0 : index
    %173 = arith.index_cast %172 : i32 to index
    %c0_151 = arith.constant 0 : index
    %c0_152 = arith.constant 0 : index
    %174 = vector.load %arg2[%c0_150, %173, %c0_151, %c0_152] : memref<1x29x24x24xbf16, #tpu.memory_space<vmem>>, vector<1x1x24x24xbf16>
    %175 = vector.shape_cast %174 : vector<1x1x24x24xbf16> to vector<24x24xbf16>
    %c0_153 = arith.constant 0 : index
    %c0_154 = arith.constant 0 : index
    %c0_155 = arith.constant 0 : index
    %176 = vector.load %arg3[%c0_153, %c0_154, %c0_155] : memref<6x24x128xbf16, #tpu.memory_space<vmem>>, vector<1x24x128xbf16>
    %177 = vector.shape_cast %176 : vector<1x24x128xbf16> to vector<24x128xbf16>
    %cst_156 = arith.constant dense<0.000000e+00> : vector<24x128xf32>
    %178 = tpu.matmul %175, %177, %cst_156 {dimension_numbers = #tpu.dot_dimension_numbers<[1], [0], [0], [1], [0, 0, 1, 1], [], []>} : vector<24x24xbf16>, vector<24x128xbf16>, vector<24x128xf32> -> vector<24x128xf32>
    %179 = arith.addf %171, %178 : vector<24x128xf32>
    %c1_i32_157 = arith.constant 1 : i32
    %180 = arith.addi %170, %c1_i32_157 : i32
    %c0_158 = arith.constant 0 : index
    %181 = arith.index_cast %180 : i32 to index
    %c0_159 = arith.constant 0 : index
    %c0_160 = arith.constant 0 : index
    %182 = vector.load %arg2[%c0_158, %181, %c0_159, %c0_160] : memref<1x29x24x24xbf16, #tpu.memory_space<vmem>>, vector<1x1x24x24xbf16>
    %183 = vector.shape_cast %182 : vector<1x1x24x24xbf16> to vector<24x24xbf16>
    %c1_161 = arith.constant 1 : index
    %c0_162 = arith.constant 0 : index
    %c0_163 = arith.constant 0 : index
    %184 = vector.load %arg3[%c1_161, %c0_162, %c0_163] : memref<6x24x128xbf16, #tpu.memory_space<vmem>>, vector<1x24x128xbf16>
    %185 = vector.shape_cast %184 : vector<1x24x128xbf16> to vector<24x128xbf16>
    %cst_164 = arith.constant dense<0.000000e+00> : vector<24x128xf32>
    %186 = tpu.matmul %183, %185, %cst_164 {dimension_numbers = #tpu.dot_dimension_numbers<[1], [0], [0], [1], [0, 0, 1, 1], [], []>} : vector<24x24xbf16>, vector<24x128xbf16>, vector<24x128xf32> -> vector<24x128xf32>
    %187 = arith.addf %179, %186 : vector<24x128xf32>
    %c2_i32_165 = arith.constant 2 : i32
    %188 = arith.addi %170, %c2_i32_165 : i32
    %c0_166 = arith.constant 0 : index
    %189 = arith.index_cast %188 : i32 to index
    %c0_167 = arith.constant 0 : index
    %c0_168 = arith.constant 0 : index
    %190 = vector.load %arg2[%c0_166, %189, %c0_167, %c0_168] : memref<1x29x24x24xbf16, #tpu.memory_space<vmem>>, vector<1x1x24x24xbf16>
    %191 = vector.shape_cast %190 : vector<1x1x24x24xbf16> to vector<24x24xbf16>
    %c2_169 = arith.constant 2 : index
    %c0_170 = arith.constant 0 : index
    %c0_171 = arith.constant 0 : index
    %192 = vector.load %arg3[%c2_169, %c0_170, %c0_171] : memref<6x24x128xbf16, #tpu.memory_space<vmem>>, vector<1x24x128xbf16>
    %193 = vector.shape_cast %192 : vector<1x24x128xbf16> to vector<24x128xbf16>
    %cst_172 = arith.constant dense<0.000000e+00> : vector<24x128xf32>
    %194 = tpu.matmul %191, %193, %cst_172 {dimension_numbers = #tpu.dot_dimension_numbers<[1], [0], [0], [1], [0, 0, 1, 1], [], []>} : vector<24x24xbf16>, vector<24x128xbf16>, vector<24x128xf32> -> vector<24x128xf32>
    %195 = arith.addf %187, %194 : vector<24x128xf32>
    %c3_i32_173 = arith.constant 3 : i32
    %196 = arith.addi %170, %c3_i32_173 : i32
    %c0_174 = arith.constant 0 : index
    %197 = arith.index_cast %196 : i32 to index
    %c0_175 = arith.constant 0 : index
    %c0_176 = arith.constant 0 : index
    %198 = vector.load %arg2[%c0_174, %197, %c0_175, %c0_176] : memref<1x29x24x24xbf16, #tpu.memory_space<vmem>>, vector<1x1x24x24xbf16>
    %199 = vector.shape_cast %198 : vector<1x1x24x24xbf16> to vector<24x24xbf16>
    %c3_177 = arith.constant 3 : index
    %c0_178 = arith.constant 0 : index
    %c0_179 = arith.constant 0 : index
    %200 = vector.load %arg3[%c3_177, %c0_178, %c0_179] : memref<6x24x128xbf16, #tpu.memory_space<vmem>>, vector<1x24x128xbf16>
    %201 = vector.shape_cast %200 : vector<1x24x128xbf16> to vector<24x128xbf16>
    %cst_180 = arith.constant dense<0.000000e+00> : vector<24x128xf32>
    %202 = tpu.matmul %199, %201, %cst_180 {dimension_numbers = #tpu.dot_dimension_numbers<[1], [0], [0], [1], [0, 0, 1, 1], [], []>} : vector<24x24xbf16>, vector<24x128xbf16>, vector<24x128xf32> -> vector<24x128xf32>
    %203 = arith.addf %195, %202 : vector<24x128xf32>
    %c4_i32_181 = arith.constant 4 : i32
    %204 = arith.addi %170, %c4_i32_181 : i32
    %c0_182 = arith.constant 0 : index
    %205 = arith.index_cast %204 : i32 to index
    %c0_183 = arith.constant 0 : index
    %c0_184 = arith.constant 0 : index
    %206 = vector.load %arg2[%c0_182, %205, %c0_183, %c0_184] : memref<1x29x24x24xbf16, #tpu.memory_space<vmem>>, vector<1x1x24x24xbf16>
    %207 = vector.shape_cast %206 : vector<1x1x24x24xbf16> to vector<24x24xbf16>
    %c4_185 = arith.constant 4 : index
    %c0_186 = arith.constant 0 : index
    %c0_187 = arith.constant 0 : index
    %208 = vector.load %arg3[%c4_185, %c0_186, %c0_187] : memref<6x24x128xbf16, #tpu.memory_space<vmem>>, vector<1x24x128xbf16>
    %209 = vector.shape_cast %208 : vector<1x24x128xbf16> to vector<24x128xbf16>
    %cst_188 = arith.constant dense<0.000000e+00> : vector<24x128xf32>
    %210 = tpu.matmul %207, %209, %cst_188 {dimension_numbers = #tpu.dot_dimension_numbers<[1], [0], [0], [1], [0, 0, 1, 1], [], []>} : vector<24x24xbf16>, vector<24x128xbf16>, vector<24x128xf32> -> vector<24x128xf32>
    %211 = arith.addf %203, %210 : vector<24x128xf32>
    %c5_i32_189 = arith.constant 5 : i32
    %212 = arith.addi %170, %c5_i32_189 : i32
    %c0_190 = arith.constant 0 : index
    %213 = arith.index_cast %212 : i32 to index
    %c0_191 = arith.constant 0 : index
    %c0_192 = arith.constant 0 : index
    %214 = vector.load %arg2[%c0_190, %213, %c0_191, %c0_192] : memref<1x29x24x24xbf16, #tpu.memory_space<vmem>>, vector<1x1x24x24xbf16>
    %215 = vector.shape_cast %214 : vector<1x1x24x24xbf16> to vector<24x24xbf16>
    %c5_193 = arith.constant 5 : index
    %c0_194 = arith.constant 0 : index
    %c0_195 = arith.constant 0 : index
    %216 = vector.load %arg3[%c5_193, %c0_194, %c0_195] : memref<6x24x128xbf16, #tpu.memory_space<vmem>>, vector<1x24x128xbf16>
    %217 = vector.shape_cast %216 : vector<1x24x128xbf16> to vector<24x128xbf16>
    %cst_196 = arith.constant dense<0.000000e+00> : vector<24x128xf32>
    %218 = tpu.matmul %215, %217, %cst_196 {dimension_numbers = #tpu.dot_dimension_numbers<[1], [0], [0], [1], [0, 0, 1, 1], [], []>} : vector<24x24xbf16>, vector<24x128xbf16>, vector<24x128xf32> -> vector<24x128xf32>
    %219 = arith.addf %211, %218 : vector<24x128xf32>
    %c0_197 = arith.constant 0 : index
    %c0_198 = arith.constant 0 : index
    %220 = vector.load %arg4[%c0_197, %c0_198] : memref<1x128xf32, #tpu.memory_space<vmem>>, vector<1x128xf32>
    %221 = vector.broadcast %220 : vector<1x128xf32> to vector<24x128xf32>
    %222 = arith.addf %219, %221 : vector<24x128xf32>
    %cst_199 = arith.constant 0.000000e+00 : f32
    %223 = vector.broadcast %cst_199 : f32 to vector<24x128xf32>
    %224 = arith.maximumf %222, %223 : vector<24x128xf32>
    %225 = arith.maximumf %169, %224 : vector<24x128xf32>
    %c4_i32_200 = arith.constant 4 : i32
    %226 = arith.addi %0, %c4_i32_200 : i32
    %cst_201 = arith.constant 0.000000e+00 : f32
    %227 = vector.broadcast %cst_201 : f32 to vector<24x128xf32>
    %c0_i32_202 = arith.constant 0 : i32
    %228 = arith.addi %226, %c0_i32_202 : i32
    %c0_203 = arith.constant 0 : index
    %229 = arith.index_cast %228 : i32 to index
    %c0_204 = arith.constant 0 : index
    %c0_205 = arith.constant 0 : index
    %230 = vector.load %arg2[%c0_203, %229, %c0_204, %c0_205] : memref<1x29x24x24xbf16, #tpu.memory_space<vmem>>, vector<1x1x24x24xbf16>
    %231 = vector.shape_cast %230 : vector<1x1x24x24xbf16> to vector<24x24xbf16>
    %c0_206 = arith.constant 0 : index
    %c0_207 = arith.constant 0 : index
    %c0_208 = arith.constant 0 : index
    %232 = vector.load %arg3[%c0_206, %c0_207, %c0_208] : memref<6x24x128xbf16, #tpu.memory_space<vmem>>, vector<1x24x128xbf16>
    %233 = vector.shape_cast %232 : vector<1x24x128xbf16> to vector<24x128xbf16>
    %cst_209 = arith.constant dense<0.000000e+00> : vector<24x128xf32>
    %234 = tpu.matmul %231, %233, %cst_209 {dimension_numbers = #tpu.dot_dimension_numbers<[1], [0], [0], [1], [0, 0, 1, 1], [], []>} : vector<24x24xbf16>, vector<24x128xbf16>, vector<24x128xf32> -> vector<24x128xf32>
    %235 = arith.addf %227, %234 : vector<24x128xf32>
    %c1_i32_210 = arith.constant 1 : i32
    %236 = arith.addi %226, %c1_i32_210 : i32
    %c0_211 = arith.constant 0 : index
    %237 = arith.index_cast %236 : i32 to index
    %c0_212 = arith.constant 0 : index
    %c0_213 = arith.constant 0 : index
    %238 = vector.load %arg2[%c0_211, %237, %c0_212, %c0_213] : memref<1x29x24x24xbf16, #tpu.memory_space<vmem>>, vector<1x1x24x24xbf16>
    %239 = vector.shape_cast %238 : vector<1x1x24x24xbf16> to vector<24x24xbf16>
    %c1_214 = arith.constant 1 : index
    %c0_215 = arith.constant 0 : index
    %c0_216 = arith.constant 0 : index
    %240 = vector.load %arg3[%c1_214, %c0_215, %c0_216] : memref<6x24x128xbf16, #tpu.memory_space<vmem>>, vector<1x24x128xbf16>
    %241 = vector.shape_cast %240 : vector<1x24x128xbf16> to vector<24x128xbf16>
    %cst_217 = arith.constant dense<0.000000e+00> : vector<24x128xf32>
    %242 = tpu.matmul %239, %241, %cst_217 {dimension_numbers = #tpu.dot_dimension_numbers<[1], [0], [0], [1], [0, 0, 1, 1], [], []>} : vector<24x24xbf16>, vector<24x128xbf16>, vector<24x128xf32> -> vector<24x128xf32>
    %243 = arith.addf %235, %242 : vector<24x128xf32>
    %c2_i32_218 = arith.constant 2 : i32
    %244 = arith.addi %226, %c2_i32_218 : i32
    %c0_219 = arith.constant 0 : index
    %245 = arith.index_cast %244 : i32 to index
    %c0_220 = arith.constant 0 : index
    %c0_221 = arith.constant 0 : index
    %246 = vector.load %arg2[%c0_219, %245, %c0_220, %c0_221] : memref<1x29x24x24xbf16, #tpu.memory_space<vmem>>, vector<1x1x24x24xbf16>
    %247 = vector.shape_cast %246 : vector<1x1x24x24xbf16> to vector<24x24xbf16>
    %c2_222 = arith.constant 2 : index
    %c0_223 = arith.constant 0 : index
    %c0_224 = arith.constant 0 : index
    %248 = vector.load %arg3[%c2_222, %c0_223, %c0_224] : memref<6x24x128xbf16, #tpu.memory_space<vmem>>, vector<1x24x128xbf16>
    %249 = vector.shape_cast %248 : vector<1x24x128xbf16> to vector<24x128xbf16>
    %cst_225 = arith.constant dense<0.000000e+00> : vector<24x128xf32>
    %250 = tpu.matmul %247, %249, %cst_225 {dimension_numbers = #tpu.dot_dimension_numbers<[1], [0], [0], [1], [0, 0, 1, 1], [], []>} : vector<24x24xbf16>, vector<24x128xbf16>, vector<24x128xf32> -> vector<24x128xf32>
    %251 = arith.addf %243, %250 : vector<24x128xf32>
    %c3_i32_226 = arith.constant 3 : i32
    %252 = arith.addi %226, %c3_i32_226 : i32
    %c0_227 = arith.constant 0 : index
    %253 = arith.index_cast %252 : i32 to index
    %c0_228 = arith.constant 0 : index
    %c0_229 = arith.constant 0 : index
    %254 = vector.load %arg2[%c0_227, %253, %c0_228, %c0_229] : memref<1x29x24x24xbf16, #tpu.memory_space<vmem>>, vector<1x1x24x24xbf16>
    %255 = vector.shape_cast %254 : vector<1x1x24x24xbf16> to vector<24x24xbf16>
    %c3_230 = arith.constant 3 : index
    %c0_231 = arith.constant 0 : index
    %c0_232 = arith.constant 0 : index
    %256 = vector.load %arg3[%c3_230, %c0_231, %c0_232] : memref<6x24x128xbf16, #tpu.memory_space<vmem>>, vector<1x24x128xbf16>
    %257 = vector.shape_cast %256 : vector<1x24x128xbf16> to vector<24x128xbf16>
    %cst_233 = arith.constant dense<0.000000e+00> : vector<24x128xf32>
    %258 = tpu.matmul %255, %257, %cst_233 {dimension_numbers = #tpu.dot_dimension_numbers<[1], [0], [0], [1], [0, 0, 1, 1], [], []>} : vector<24x24xbf16>, vector<24x128xbf16>, vector<24x128xf32> -> vector<24x128xf32>
    %259 = arith.addf %251, %258 : vector<24x128xf32>
    %c4_i32_234 = arith.constant 4 : i32
    %260 = arith.addi %226, %c4_i32_234 : i32
    %c0_235 = arith.constant 0 : index
    %261 = arith.index_cast %260 : i32 to index
    %c0_236 = arith.constant 0 : index
    %c0_237 = arith.constant 0 : index
    %262 = vector.load %arg2[%c0_235, %261, %c0_236, %c0_237] : memref<1x29x24x24xbf16, #tpu.memory_space<vmem>>, vector<1x1x24x24xbf16>
    %263 = vector.shape_cast %262 : vector<1x1x24x24xbf16> to vector<24x24xbf16>
    %c4_238 = arith.constant 4 : index
    %c0_239 = arith.constant 0 : index
    %c0_240 = arith.constant 0 : index
    %264 = vector.load %arg3[%c4_238, %c0_239, %c0_240] : memref<6x24x128xbf16, #tpu.memory_space<vmem>>, vector<1x24x128xbf16>
    %265 = vector.shape_cast %264 : vector<1x24x128xbf16> to vector<24x128xbf16>
    %cst_241 = arith.constant dense<0.000000e+00> : vector<24x128xf32>
    %266 = tpu.matmul %263, %265, %cst_241 {dimension_numbers = #tpu.dot_dimension_numbers<[1], [0], [0], [1], [0, 0, 1, 1], [], []>} : vector<24x24xbf16>, vector<24x128xbf16>, vector<24x128xf32> -> vector<24x128xf32>
    %267 = arith.addf %259, %266 : vector<24x128xf32>
    %c5_i32_242 = arith.constant 5 : i32
    %268 = arith.addi %226, %c5_i32_242 : i32
    %c0_243 = arith.constant 0 : index
    %269 = arith.index_cast %268 : i32 to index
    %c0_244 = arith.constant 0 : index
    %c0_245 = arith.constant 0 : index
    %270 = vector.load %arg2[%c0_243, %269, %c0_244, %c0_245] : memref<1x29x24x24xbf16, #tpu.memory_space<vmem>>, vector<1x1x24x24xbf16>
    %271 = vector.shape_cast %270 : vector<1x1x24x24xbf16> to vector<24x24xbf16>
    %c5_246 = arith.constant 5 : index
    %c0_247 = arith.constant 0 : index
    %c0_248 = arith.constant 0 : index
    %272 = vector.load %arg3[%c5_246, %c0_247, %c0_248] : memref<6x24x128xbf16, #tpu.memory_space<vmem>>, vector<1x24x128xbf16>
    %273 = vector.shape_cast %272 : vector<1x24x128xbf16> to vector<24x128xbf16>
    %cst_249 = arith.constant dense<0.000000e+00> : vector<24x128xf32>
    %274 = tpu.matmul %271, %273, %cst_249 {dimension_numbers = #tpu.dot_dimension_numbers<[1], [0], [0], [1], [0, 0, 1, 1], [], []>} : vector<24x24xbf16>, vector<24x128xbf16>, vector<24x128xf32> -> vector<24x128xf32>
    %275 = arith.addf %267, %274 : vector<24x128xf32>
    %c0_250 = arith.constant 0 : index
    %c0_251 = arith.constant 0 : index
    %276 = vector.load %arg4[%c0_250, %c0_251] : memref<1x128xf32, #tpu.memory_space<vmem>>, vector<1x128xf32>
    %277 = vector.broadcast %276 : vector<1x128xf32> to vector<24x128xf32>
    %278 = arith.addf %275, %277 : vector<24x128xf32>
    %cst_252 = arith.constant 0.000000e+00 : f32
    %279 = vector.broadcast %cst_252 : f32 to vector<24x128xf32>
    %280 = arith.maximumf %278, %279 : vector<24x128xf32>
    %281 = arith.maximumf %225, %280 : vector<24x128xf32>
    %c5_i32_253 = arith.constant 5 : i32
    %282 = arith.addi %0, %c5_i32_253 : i32
    %cst_254 = arith.constant 0.000000e+00 : f32
    %283 = vector.broadcast %cst_254 : f32 to vector<24x128xf32>
    %c0_i32_255 = arith.constant 0 : i32
    %284 = arith.addi %282, %c0_i32_255 : i32
    %c0_256 = arith.constant 0 : index
    %285 = arith.index_cast %284 : i32 to index
    %c0_257 = arith.constant 0 : index
    %c0_258 = arith.constant 0 : index
    %286 = vector.load %arg2[%c0_256, %285, %c0_257, %c0_258] : memref<1x29x24x24xbf16, #tpu.memory_space<vmem>>, vector<1x1x24x24xbf16>
    %287 = vector.shape_cast %286 : vector<1x1x24x24xbf16> to vector<24x24xbf16>
    %c0_259 = arith.constant 0 : index
    %c0_260 = arith.constant 0 : index
    %c0_261 = arith.constant 0 : index
    %288 = vector.load %arg3[%c0_259, %c0_260, %c0_261] : memref<6x24x128xbf16, #tpu.memory_space<vmem>>, vector<1x24x128xbf16>
    %289 = vector.shape_cast %288 : vector<1x24x128xbf16> to vector<24x128xbf16>
    %cst_262 = arith.constant dense<0.000000e+00> : vector<24x128xf32>
    %290 = tpu.matmul %287, %289, %cst_262 {dimension_numbers = #tpu.dot_dimension_numbers<[1], [0], [0], [1], [0, 0, 1, 1], [], []>} : vector<24x24xbf16>, vector<24x128xbf16>, vector<24x128xf32> -> vector<24x128xf32>
    %291 = arith.addf %283, %290 : vector<24x128xf32>
    %c1_i32_263 = arith.constant 1 : i32
    %292 = arith.addi %282, %c1_i32_263 : i32
    %c0_264 = arith.constant 0 : index
    %293 = arith.index_cast %292 : i32 to index
    %c0_265 = arith.constant 0 : index
    %c0_266 = arith.constant 0 : index
    %294 = vector.load %arg2[%c0_264, %293, %c0_265, %c0_266] : memref<1x29x24x24xbf16, #tpu.memory_space<vmem>>, vector<1x1x24x24xbf16>
    %295 = vector.shape_cast %294 : vector<1x1x24x24xbf16> to vector<24x24xbf16>
    %c1_267 = arith.constant 1 : index
    %c0_268 = arith.constant 0 : index
    %c0_269 = arith.constant 0 : index
    %296 = vector.load %arg3[%c1_267, %c0_268, %c0_269] : memref<6x24x128xbf16, #tpu.memory_space<vmem>>, vector<1x24x128xbf16>
    %297 = vector.shape_cast %296 : vector<1x24x128xbf16> to vector<24x128xbf16>
    %cst_270 = arith.constant dense<0.000000e+00> : vector<24x128xf32>
    %298 = tpu.matmul %295, %297, %cst_270 {dimension_numbers = #tpu.dot_dimension_numbers<[1], [0], [0], [1], [0, 0, 1, 1], [], []>} : vector<24x24xbf16>, vector<24x128xbf16>, vector<24x128xf32> -> vector<24x128xf32>
    %299 = arith.addf %291, %298 : vector<24x128xf32>
    %c2_i32_271 = arith.constant 2 : i32
    %300 = arith.addi %282, %c2_i32_271 : i32
    %c0_272 = arith.constant 0 : index
    %301 = arith.index_cast %300 : i32 to index
    %c0_273 = arith.constant 0 : index
    %c0_274 = arith.constant 0 : index
    %302 = vector.load %arg2[%c0_272, %301, %c0_273, %c0_274] : memref<1x29x24x24xbf16, #tpu.memory_space<vmem>>, vector<1x1x24x24xbf16>
    %303 = vector.shape_cast %302 : vector<1x1x24x24xbf16> to vector<24x24xbf16>
    %c2_275 = arith.constant 2 : index
    %c0_276 = arith.constant 0 : index
    %c0_277 = arith.constant 0 : index
    %304 = vector.load %arg3[%c2_275, %c0_276, %c0_277] : memref<6x24x128xbf16, #tpu.memory_space<vmem>>, vector<1x24x128xbf16>
    %305 = vector.shape_cast %304 : vector<1x24x128xbf16> to vector<24x128xbf16>
    %cst_278 = arith.constant dense<0.000000e+00> : vector<24x128xf32>
    %306 = tpu.matmul %303, %305, %cst_278 {dimension_numbers = #tpu.dot_dimension_numbers<[1], [0], [0], [1], [0, 0, 1, 1], [], []>} : vector<24x24xbf16>, vector<24x128xbf16>, vector<24x128xf32> -> vector<24x128xf32>
    %307 = arith.addf %299, %306 : vector<24x128xf32>
    %c3_i32_279 = arith.constant 3 : i32
    %308 = arith.addi %282, %c3_i32_279 : i32
    %c0_280 = arith.constant 0 : index
    %309 = arith.index_cast %308 : i32 to index
    %c0_281 = arith.constant 0 : index
    %c0_282 = arith.constant 0 : index
    %310 = vector.load %arg2[%c0_280, %309, %c0_281, %c0_282] : memref<1x29x24x24xbf16, #tpu.memory_space<vmem>>, vector<1x1x24x24xbf16>
    %311 = vector.shape_cast %310 : vector<1x1x24x24xbf16> to vector<24x24xbf16>
    %c3_283 = arith.constant 3 : index
    %c0_284 = arith.constant 0 : index
    %c0_285 = arith.constant 0 : index
    %312 = vector.load %arg3[%c3_283, %c0_284, %c0_285] : memref<6x24x128xbf16, #tpu.memory_space<vmem>>, vector<1x24x128xbf16>
    %313 = vector.shape_cast %312 : vector<1x24x128xbf16> to vector<24x128xbf16>
    %cst_286 = arith.constant dense<0.000000e+00> : vector<24x128xf32>
    %314 = tpu.matmul %311, %313, %cst_286 {dimension_numbers = #tpu.dot_dimension_numbers<[1], [0], [0], [1], [0, 0, 1, 1], [], []>} : vector<24x24xbf16>, vector<24x128xbf16>, vector<24x128xf32> -> vector<24x128xf32>
    %315 = arith.addf %307, %314 : vector<24x128xf32>
    %c4_i32_287 = arith.constant 4 : i32
    %316 = arith.addi %282, %c4_i32_287 : i32
    %c0_288 = arith.constant 0 : index
    %317 = arith.index_cast %316 : i32 to index
    %c0_289 = arith.constant 0 : index
    %c0_290 = arith.constant 0 : index
    %318 = vector.load %arg2[%c0_288, %317, %c0_289, %c0_290] : memref<1x29x24x24xbf16, #tpu.memory_space<vmem>>, vector<1x1x24x24xbf16>
    %319 = vector.shape_cast %318 : vector<1x1x24x24xbf16> to vector<24x24xbf16>
    %c4_291 = arith.constant 4 : index
    %c0_292 = arith.constant 0 : index
    %c0_293 = arith.constant 0 : index
    %320 = vector.load %arg3[%c4_291, %c0_292, %c0_293] : memref<6x24x128xbf16, #tpu.memory_space<vmem>>, vector<1x24x128xbf16>
    %321 = vector.shape_cast %320 : vector<1x24x128xbf16> to vector<24x128xbf16>
    %cst_294 = arith.constant dense<0.000000e+00> : vector<24x128xf32>
    %322 = tpu.matmul %319, %321, %cst_294 {dimension_numbers = #tpu.dot_dimension_numbers<[1], [0], [0], [1], [0, 0, 1, 1], [], []>} : vector<24x24xbf16>, vector<24x128xbf16>, vector<24x128xf32> -> vector<24x128xf32>
    %323 = arith.addf %315, %322 : vector<24x128xf32>
    %c5_i32_295 = arith.constant 5 : i32
    %324 = arith.addi %282, %c5_i32_295 : i32
    %c0_296 = arith.constant 0 : index
    %325 = arith.index_cast %324 : i32 to index
    %c0_297 = arith.constant 0 : index
    %c0_298 = arith.constant 0 : index
    %326 = vector.load %arg2[%c0_296, %325, %c0_297, %c0_298] : memref<1x29x24x24xbf16, #tpu.memory_space<vmem>>, vector<1x1x24x24xbf16>
    %327 = vector.shape_cast %326 : vector<1x1x24x24xbf16> to vector<24x24xbf16>
    %c5_299 = arith.constant 5 : index
    %c0_300 = arith.constant 0 : index
    %c0_301 = arith.constant 0 : index
    %328 = vector.load %arg3[%c5_299, %c0_300, %c0_301] : memref<6x24x128xbf16, #tpu.memory_space<vmem>>, vector<1x24x128xbf16>
    %329 = vector.shape_cast %328 : vector<1x24x128xbf16> to vector<24x128xbf16>
    %cst_302 = arith.constant dense<0.000000e+00> : vector<24x128xf32>
    %330 = tpu.matmul %327, %329, %cst_302 {dimension_numbers = #tpu.dot_dimension_numbers<[1], [0], [0], [1], [0, 0, 1, 1], [], []>} : vector<24x24xbf16>, vector<24x128xbf16>, vector<24x128xf32> -> vector<24x128xf32>
    %331 = arith.addf %323, %330 : vector<24x128xf32>
    %c0_303 = arith.constant 0 : index
    %c0_304 = arith.constant 0 : index
    %332 = vector.load %arg4[%c0_303, %c0_304] : memref<1x128xf32, #tpu.memory_space<vmem>>, vector<1x128xf32>
    %333 = vector.broadcast %332 : vector<1x128xf32> to vector<24x128xf32>
    %334 = arith.addf %331, %333 : vector<24x128xf32>
    %cst_305 = arith.constant 0.000000e+00 : f32
    %335 = vector.broadcast %cst_305 : f32 to vector<24x128xf32>
    %336 = arith.maximumf %334, %335 : vector<24x128xf32>
    %337 = arith.maximumf %281, %336 : vector<24x128xf32>
    %c0_306 = arith.constant 0 : index
    %c0_307 = arith.constant 0 : index
    %338 = vector.load %arg6[%c0_306, %c0_307] : memref<24x128xf32, #tpu.memory_space<vmem>>, vector<24x128xf32>
    tpu.vector_store %arg6[%c0_306, %c0_307], %337 {strides = array<i32>} : memref<24x128xf32, #tpu.memory_space<vmem>>, vector<24x128xf32>,
    %c0_308 = arith.constant 0 : index
    %c0_309 = arith.constant 0 : index
    %339 = tpu.strided_load %arg6[%c0_308, %c0_309] {strides = array<i32: 3, 1>} : memref<24x128xf32, #tpu.memory_space<vmem>>, vector<8x128xf32>
    %c1_310 = arith.constant 1 : index
    %c0_311 = arith.constant 0 : index
    %340 = tpu.strided_load %arg6[%c1_310, %c0_311] {strides = array<i32: 3, 1>} : memref<24x128xf32, #tpu.memory_space<vmem>>, vector<8x128xf32>
    %341 = arith.maximumf %339, %340 : vector<8x128xf32>
    %c2_312 = arith.constant 2 : index
    %c0_313 = arith.constant 0 : index
    %342 = tpu.strided_load %arg6[%c2_312, %c0_313] {strides = array<i32: 3, 1>} : memref<24x128xf32, #tpu.memory_space<vmem>>, vector<8x128xf32>
    %343 = arith.maximumf %341, %342 : vector<8x128xf32>
    %344 = arith.truncf %343 : vector<8x128xf32> to vector<8x128xbf16>
    %c0_314 = arith.constant 0 : index
    %c0_315 = arith.constant 0 : index
    %c0_316 = arith.constant 0 : index
    %c0_317 = arith.constant 0 : index
    %345 = vector.load %arg5[%c0_314, %c0_315, %c0_316, %c0_317] : memref<1x1x8x128xbf16, #tpu.memory_space<vmem>>, vector<1x1x8x128xbf16>
    %346 = vector.shape_cast %345 : vector<1x1x8x128xbf16> to vector<8x128xbf16>
    %347 = vector.shape_cast %344 : vector<8x128xbf16> to vector<1x1x8x128xbf16>
    tpu.vector_store %arg5[%c0_314, %c0_315, %c0_316, %c0_317], %347 {strides = array<i32>} : memref<1x1x8x128xbf16, #tpu.memory_space<vmem>>, vector<1x1x8x128xbf16>,
    return
  }
  func.func @transform_0(%arg0: i32, %arg1: i32) -> (i32, i32, i32, i32) {
    %c0_i32 = arith.constant 0 : i32
    %c0_i32_0 = arith.constant 0 : i32
    %c0_i32_1 = arith.constant 0 : i32
    %c0_i32_2 = arith.constant 0 : i32
    return %arg0, %c0_i32, %c0_i32_0, %c0_i32_1 : i32, i32, i32, i32
  }
  func.func @transform_1(%arg0: i32, %arg1: i32) -> (i32, i32, i32) {
    %c0_i32 = arith.constant 0 : i32
    %c0_i32_0 = arith.constant 0 : i32
    %c0_i32_1 = arith.constant 0 : i32
    %c0_i32_2 = arith.constant 0 : i32
    return %c0_i32, %c0_i32_0, %c0_i32_1 : i32, i32, i32
  }
  func.func @transform_2(%arg0: i32, %arg1: i32) -> (i32, i32) {
    %c0_i32 = arith.constant 0 : i32
    %c0_i32_0 = arith.constant 0 : i32
    %c0_i32_1 = arith.constant 0 : i32
    return %c0_i32, %c0_i32_0 : i32, i32
  }
  func.func @transform_3(%arg0: i32, %arg1: i32) -> (i32, i32, i32, i32) {
    %c0_i32 = arith.constant 0 : i32
    %c0_i32_0 = arith.constant 0 : i32
    %c0_i32_1 = arith.constant 0 : i32
    return %arg0, %arg1, %c0_i32, %c0_i32_0 : i32, i32, i32, i32
  }
}

module attributes {stable_mosaic.version = 11 : i64} {
  func.func @kernel(%arg0: i32, %arg1: i32, %arg2: memref<1x4x8x128xbf16, #tpu.memory_space<vmem>>, %arg3: memref<18x128x128xbf16, #tpu.memory_space<vmem>>, %arg4: memref<1x128xf32, #tpu.memory_space<vmem>>, %arg5: memref<1x1x3x128xbf16, #tpu.memory_space<vmem>>) attributes {dimension_semantics = [#tpu.dimension_semantics<parallel>, #tpu.dimension_semantics<parallel>], iteration_bounds = array<i64: 2, 2>, scalar_prefetch = 0 : i64, scratch_operands = 0 : i64, tpu.core_type = #tpu.core_type<tc>, window_params = [{transform_indices = @transform_0, window_bounds = array<i64: 1, 4, 8, 128>}, {pipeline_mode = #tpu.pipeline_mode<synchronous>, transform_indices = @transform_1, window_bounds = array<i64: 18, 128, 128>}, {pipeline_mode = #tpu.pipeline_mode<synchronous>, transform_indices = @transform_2, window_bounds = array<i64: 1, 128>}, {transform_indices = @transform_3, window_bounds = array<i64: 1, 1, 3, 128>}]} {
    %cst = arith.constant 0.000000e+00 : f32
    %0 = vector.broadcast %cst : f32 to vector<3x128xf32>
    %c0_i32 = arith.constant 0 : i32
    %1 = arith.addi %arg1, %c0_i32 : i32
    %c0 = arith.constant 0 : index
    %2 = arith.index_cast %1 : i32 to index
    %c0_0 = arith.constant 0 : index
    %c0_1 = arith.constant 0 : index
    %3 = vector.load %arg2[%c0, %2, %c0_0, %c0_1] : memref<1x4x8x128xbf16, #tpu.memory_space<vmem>>, vector<1x1x3x128xbf16>
    %4 = vector.shape_cast %3 : vector<1x1x3x128xbf16> to vector<3x128xbf16>
    %c0_2 = arith.constant 0 : index
    %c0_3 = arith.constant 0 : index
    %c0_4 = arith.constant 0 : index
    %5 = vector.load %arg3[%c0_2, %c0_3, %c0_4] : memref<18x128x128xbf16, #tpu.memory_space<vmem>>, vector<1x128x128xbf16>
    %6 = vector.shape_cast %5 : vector<1x128x128xbf16> to vector<128x128xbf16>
    %cst_5 = arith.constant dense<0.000000e+00> : vector<3x128xf32>
    %7 = tpu.matmul %4, %6, %cst_5 {dimension_numbers = #tpu.dot_dimension_numbers<[1], [0], [0], [1], [0, 0, 1, 1], [], []>} : vector<3x128xbf16>, vector<128x128xbf16>, vector<3x128xf32> -> vector<3x128xf32>
    %8 = arith.addf %0, %7 : vector<3x128xf32>
    %c0_i32_6 = arith.constant 0 : i32
    %9 = arith.addi %arg1, %c0_i32_6 : i32
    %c0_7 = arith.constant 0 : index
    %10 = arith.index_cast %9 : i32 to index
    %c1 = arith.constant 1 : index
    %c0_8 = arith.constant 0 : index
    %11 = vector.load %arg2[%c0_7, %10, %c1, %c0_8] : memref<1x4x8x128xbf16, #tpu.memory_space<vmem>>, vector<1x1x3x128xbf16>
    %12 = vector.shape_cast %11 : vector<1x1x3x128xbf16> to vector<3x128xbf16>
    %c1_9 = arith.constant 1 : index
    %c0_10 = arith.constant 0 : index
    %c0_11 = arith.constant 0 : index
    %13 = vector.load %arg3[%c1_9, %c0_10, %c0_11] : memref<18x128x128xbf16, #tpu.memory_space<vmem>>, vector<1x128x128xbf16>
    %14 = vector.shape_cast %13 : vector<1x128x128xbf16> to vector<128x128xbf16>
    %cst_12 = arith.constant dense<0.000000e+00> : vector<3x128xf32>
    %15 = tpu.matmul %12, %14, %cst_12 {dimension_numbers = #tpu.dot_dimension_numbers<[1], [0], [0], [1], [0, 0, 1, 1], [], []>} : vector<3x128xbf16>, vector<128x128xbf16>, vector<3x128xf32> -> vector<3x128xf32>
    %16 = arith.addf %8, %15 : vector<3x128xf32>
    %c0_i32_13 = arith.constant 0 : i32
    %17 = arith.addi %arg1, %c0_i32_13 : i32
    %c0_14 = arith.constant 0 : index
    %18 = arith.index_cast %17 : i32 to index
    %c2 = arith.constant 2 : index
    %c0_15 = arith.constant 0 : index
    %19 = vector.load %arg2[%c0_14, %18, %c2, %c0_15] : memref<1x4x8x128xbf16, #tpu.memory_space<vmem>>, vector<1x1x3x128xbf16>
    %20 = vector.shape_cast %19 : vector<1x1x3x128xbf16> to vector<3x128xbf16>
    %c2_16 = arith.constant 2 : index
    %c0_17 = arith.constant 0 : index
    %c0_18 = arith.constant 0 : index
    %21 = vector.load %arg3[%c2_16, %c0_17, %c0_18] : memref<18x128x128xbf16, #tpu.memory_space<vmem>>, vector<1x128x128xbf16>
    %22 = vector.shape_cast %21 : vector<1x128x128xbf16> to vector<128x128xbf16>
    %cst_19 = arith.constant dense<0.000000e+00> : vector<3x128xf32>
    %23 = tpu.matmul %20, %22, %cst_19 {dimension_numbers = #tpu.dot_dimension_numbers<[1], [0], [0], [1], [0, 0, 1, 1], [], []>} : vector<3x128xbf16>, vector<128x128xbf16>, vector<3x128xf32> -> vector<3x128xf32>
    %24 = arith.addf %16, %23 : vector<3x128xf32>
    %c0_i32_20 = arith.constant 0 : i32
    %25 = arith.addi %arg1, %c0_i32_20 : i32
    %c0_21 = arith.constant 0 : index
    %26 = arith.index_cast %25 : i32 to index
    %c3 = arith.constant 3 : index
    %c0_22 = arith.constant 0 : index
    %27 = vector.load %arg2[%c0_21, %26, %c3, %c0_22] : memref<1x4x8x128xbf16, #tpu.memory_space<vmem>>, vector<1x1x3x128xbf16>
    %28 = vector.shape_cast %27 : vector<1x1x3x128xbf16> to vector<3x128xbf16>
    %c3_23 = arith.constant 3 : index
    %c0_24 = arith.constant 0 : index
    %c0_25 = arith.constant 0 : index
    %29 = vector.load %arg3[%c3_23, %c0_24, %c0_25] : memref<18x128x128xbf16, #tpu.memory_space<vmem>>, vector<1x128x128xbf16>
    %30 = vector.shape_cast %29 : vector<1x128x128xbf16> to vector<128x128xbf16>
    %cst_26 = arith.constant dense<0.000000e+00> : vector<3x128xf32>
    %31 = tpu.matmul %28, %30, %cst_26 {dimension_numbers = #tpu.dot_dimension_numbers<[1], [0], [0], [1], [0, 0, 1, 1], [], []>} : vector<3x128xbf16>, vector<128x128xbf16>, vector<3x128xf32> -> vector<3x128xf32>
    %32 = arith.addf %24, %31 : vector<3x128xf32>
    %c0_i32_27 = arith.constant 0 : i32
    %33 = arith.addi %arg1, %c0_i32_27 : i32
    %c0_28 = arith.constant 0 : index
    %34 = arith.index_cast %33 : i32 to index
    %c4 = arith.constant 4 : index
    %c0_29 = arith.constant 0 : index
    %35 = vector.load %arg2[%c0_28, %34, %c4, %c0_29] : memref<1x4x8x128xbf16, #tpu.memory_space<vmem>>, vector<1x1x3x128xbf16>
    %36 = vector.shape_cast %35 : vector<1x1x3x128xbf16> to vector<3x128xbf16>
    %c4_30 = arith.constant 4 : index
    %c0_31 = arith.constant 0 : index
    %c0_32 = arith.constant 0 : index
    %37 = vector.load %arg3[%c4_30, %c0_31, %c0_32] : memref<18x128x128xbf16, #tpu.memory_space<vmem>>, vector<1x128x128xbf16>
    %38 = vector.shape_cast %37 : vector<1x128x128xbf16> to vector<128x128xbf16>
    %cst_33 = arith.constant dense<0.000000e+00> : vector<3x128xf32>
    %39 = tpu.matmul %36, %38, %cst_33 {dimension_numbers = #tpu.dot_dimension_numbers<[1], [0], [0], [1], [0, 0, 1, 1], [], []>} : vector<3x128xbf16>, vector<128x128xbf16>, vector<3x128xf32> -> vector<3x128xf32>
    %40 = arith.addf %32, %39 : vector<3x128xf32>
    %c0_i32_34 = arith.constant 0 : i32
    %41 = arith.addi %arg1, %c0_i32_34 : i32
    %c0_35 = arith.constant 0 : index
    %42 = arith.index_cast %41 : i32 to index
    %c5 = arith.constant 5 : index
    %c0_36 = arith.constant 0 : index
    %43 = vector.load %arg2[%c0_35, %42, %c5, %c0_36] : memref<1x4x8x128xbf16, #tpu.memory_space<vmem>>, vector<1x1x3x128xbf16>
    %44 = vector.shape_cast %43 : vector<1x1x3x128xbf16> to vector<3x128xbf16>
    %c5_37 = arith.constant 5 : index
    %c0_38 = arith.constant 0 : index
    %c0_39 = arith.constant 0 : index
    %45 = vector.load %arg3[%c5_37, %c0_38, %c0_39] : memref<18x128x128xbf16, #tpu.memory_space<vmem>>, vector<1x128x128xbf16>
    %46 = vector.shape_cast %45 : vector<1x128x128xbf16> to vector<128x128xbf16>
    %cst_40 = arith.constant dense<0.000000e+00> : vector<3x128xf32>
    %47 = tpu.matmul %44, %46, %cst_40 {dimension_numbers = #tpu.dot_dimension_numbers<[1], [0], [0], [1], [0, 0, 1, 1], [], []>} : vector<3x128xbf16>, vector<128x128xbf16>, vector<3x128xf32> -> vector<3x128xf32>
    %48 = arith.addf %40, %47 : vector<3x128xf32>
    %c1_i32 = arith.constant 1 : i32
    %49 = arith.addi %arg1, %c1_i32 : i32
    %c0_41 = arith.constant 0 : index
    %50 = arith.index_cast %49 : i32 to index
    %c0_42 = arith.constant 0 : index
    %c0_43 = arith.constant 0 : index
    %51 = vector.load %arg2[%c0_41, %50, %c0_42, %c0_43] : memref<1x4x8x128xbf16, #tpu.memory_space<vmem>>, vector<1x1x3x128xbf16>
    %52 = vector.shape_cast %51 : vector<1x1x3x128xbf16> to vector<3x128xbf16>
    %c6 = arith.constant 6 : index
    %c0_44 = arith.constant 0 : index
    %c0_45 = arith.constant 0 : index
    %53 = vector.load %arg3[%c6, %c0_44, %c0_45] : memref<18x128x128xbf16, #tpu.memory_space<vmem>>, vector<1x128x128xbf16>
    %54 = vector.shape_cast %53 : vector<1x128x128xbf16> to vector<128x128xbf16>
    %cst_46 = arith.constant dense<0.000000e+00> : vector<3x128xf32>
    %55 = tpu.matmul %52, %54, %cst_46 {dimension_numbers = #tpu.dot_dimension_numbers<[1], [0], [0], [1], [0, 0, 1, 1], [], []>} : vector<3x128xbf16>, vector<128x128xbf16>, vector<3x128xf32> -> vector<3x128xf32>
    %56 = arith.addf %48, %55 : vector<3x128xf32>
    %c1_i32_47 = arith.constant 1 : i32
    %57 = arith.addi %arg1, %c1_i32_47 : i32
    %c0_48 = arith.constant 0 : index
    %58 = arith.index_cast %57 : i32 to index
    %c1_49 = arith.constant 1 : index
    %c0_50 = arith.constant 0 : index
    %59 = vector.load %arg2[%c0_48, %58, %c1_49, %c0_50] : memref<1x4x8x128xbf16, #tpu.memory_space<vmem>>, vector<1x1x3x128xbf16>
    %60 = vector.shape_cast %59 : vector<1x1x3x128xbf16> to vector<3x128xbf16>
    %c7 = arith.constant 7 : index
    %c0_51 = arith.constant 0 : index
    %c0_52 = arith.constant 0 : index
    %61 = vector.load %arg3[%c7, %c0_51, %c0_52] : memref<18x128x128xbf16, #tpu.memory_space<vmem>>, vector<1x128x128xbf16>
    %62 = vector.shape_cast %61 : vector<1x128x128xbf16> to vector<128x128xbf16>
    %cst_53 = arith.constant dense<0.000000e+00> : vector<3x128xf32>
    %63 = tpu.matmul %60, %62, %cst_53 {dimension_numbers = #tpu.dot_dimension_numbers<[1], [0], [0], [1], [0, 0, 1, 1], [], []>} : vector<3x128xbf16>, vector<128x128xbf16>, vector<3x128xf32> -> vector<3x128xf32>
    %64 = arith.addf %56, %63 : vector<3x128xf32>
    %c1_i32_54 = arith.constant 1 : i32
    %65 = arith.addi %arg1, %c1_i32_54 : i32
    %c0_55 = arith.constant 0 : index
    %66 = arith.index_cast %65 : i32 to index
    %c2_56 = arith.constant 2 : index
    %c0_57 = arith.constant 0 : index
    %67 = vector.load %arg2[%c0_55, %66, %c2_56, %c0_57] : memref<1x4x8x128xbf16, #tpu.memory_space<vmem>>, vector<1x1x3x128xbf16>
    %68 = vector.shape_cast %67 : vector<1x1x3x128xbf16> to vector<3x128xbf16>
    %c8 = arith.constant 8 : index
    %c0_58 = arith.constant 0 : index
    %c0_59 = arith.constant 0 : index
    %69 = vector.load %arg3[%c8, %c0_58, %c0_59] : memref<18x128x128xbf16, #tpu.memory_space<vmem>>, vector<1x128x128xbf16>
    %70 = vector.shape_cast %69 : vector<1x128x128xbf16> to vector<128x128xbf16>
    %cst_60 = arith.constant dense<0.000000e+00> : vector<3x128xf32>
    %71 = tpu.matmul %68, %70, %cst_60 {dimension_numbers = #tpu.dot_dimension_numbers<[1], [0], [0], [1], [0, 0, 1, 1], [], []>} : vector<3x128xbf16>, vector<128x128xbf16>, vector<3x128xf32> -> vector<3x128xf32>
    %72 = arith.addf %64, %71 : vector<3x128xf32>
    %c1_i32_61 = arith.constant 1 : i32
    %73 = arith.addi %arg1, %c1_i32_61 : i32
    %c0_62 = arith.constant 0 : index
    %74 = arith.index_cast %73 : i32 to index
    %c3_63 = arith.constant 3 : index
    %c0_64 = arith.constant 0 : index
    %75 = vector.load %arg2[%c0_62, %74, %c3_63, %c0_64] : memref<1x4x8x128xbf16, #tpu.memory_space<vmem>>, vector<1x1x3x128xbf16>
    %76 = vector.shape_cast %75 : vector<1x1x3x128xbf16> to vector<3x128xbf16>
    %c9 = arith.constant 9 : index
    %c0_65 = arith.constant 0 : index
    %c0_66 = arith.constant 0 : index
    %77 = vector.load %arg3[%c9, %c0_65, %c0_66] : memref<18x128x128xbf16, #tpu.memory_space<vmem>>, vector<1x128x128xbf16>
    %78 = vector.shape_cast %77 : vector<1x128x128xbf16> to vector<128x128xbf16>
    %cst_67 = arith.constant dense<0.000000e+00> : vector<3x128xf32>
    %79 = tpu.matmul %76, %78, %cst_67 {dimension_numbers = #tpu.dot_dimension_numbers<[1], [0], [0], [1], [0, 0, 1, 1], [], []>} : vector<3x128xbf16>, vector<128x128xbf16>, vector<3x128xf32> -> vector<3x128xf32>
    %80 = arith.addf %72, %79 : vector<3x128xf32>
    %c1_i32_68 = arith.constant 1 : i32
    %81 = arith.addi %arg1, %c1_i32_68 : i32
    %c0_69 = arith.constant 0 : index
    %82 = arith.index_cast %81 : i32 to index
    %c4_70 = arith.constant 4 : index
    %c0_71 = arith.constant 0 : index
    %83 = vector.load %arg2[%c0_69, %82, %c4_70, %c0_71] : memref<1x4x8x128xbf16, #tpu.memory_space<vmem>>, vector<1x1x3x128xbf16>
    %84 = vector.shape_cast %83 : vector<1x1x3x128xbf16> to vector<3x128xbf16>
    %c10 = arith.constant 10 : index
    %c0_72 = arith.constant 0 : index
    %c0_73 = arith.constant 0 : index
    %85 = vector.load %arg3[%c10, %c0_72, %c0_73] : memref<18x128x128xbf16, #tpu.memory_space<vmem>>, vector<1x128x128xbf16>
    %86 = vector.shape_cast %85 : vector<1x128x128xbf16> to vector<128x128xbf16>
    %cst_74 = arith.constant dense<0.000000e+00> : vector<3x128xf32>
    %87 = tpu.matmul %84, %86, %cst_74 {dimension_numbers = #tpu.dot_dimension_numbers<[1], [0], [0], [1], [0, 0, 1, 1], [], []>} : vector<3x128xbf16>, vector<128x128xbf16>, vector<3x128xf32> -> vector<3x128xf32>
    %88 = arith.addf %80, %87 : vector<3x128xf32>
    %c1_i32_75 = arith.constant 1 : i32
    %89 = arith.addi %arg1, %c1_i32_75 : i32
    %c0_76 = arith.constant 0 : index
    %90 = arith.index_cast %89 : i32 to index
    %c5_77 = arith.constant 5 : index
    %c0_78 = arith.constant 0 : index
    %91 = vector.load %arg2[%c0_76, %90, %c5_77, %c0_78] : memref<1x4x8x128xbf16, #tpu.memory_space<vmem>>, vector<1x1x3x128xbf16>
    %92 = vector.shape_cast %91 : vector<1x1x3x128xbf16> to vector<3x128xbf16>
    %c11 = arith.constant 11 : index
    %c0_79 = arith.constant 0 : index
    %c0_80 = arith.constant 0 : index
    %93 = vector.load %arg3[%c11, %c0_79, %c0_80] : memref<18x128x128xbf16, #tpu.memory_space<vmem>>, vector<1x128x128xbf16>
    %94 = vector.shape_cast %93 : vector<1x128x128xbf16> to vector<128x128xbf16>
    %cst_81 = arith.constant dense<0.000000e+00> : vector<3x128xf32>
    %95 = tpu.matmul %92, %94, %cst_81 {dimension_numbers = #tpu.dot_dimension_numbers<[1], [0], [0], [1], [0, 0, 1, 1], [], []>} : vector<3x128xbf16>, vector<128x128xbf16>, vector<3x128xf32> -> vector<3x128xf32>
    %96 = arith.addf %88, %95 : vector<3x128xf32>
    %c2_i32 = arith.constant 2 : i32
    %97 = arith.addi %arg1, %c2_i32 : i32
    %c0_82 = arith.constant 0 : index
    %98 = arith.index_cast %97 : i32 to index
    %c0_83 = arith.constant 0 : index
    %c0_84 = arith.constant 0 : index
    %99 = vector.load %arg2[%c0_82, %98, %c0_83, %c0_84] : memref<1x4x8x128xbf16, #tpu.memory_space<vmem>>, vector<1x1x3x128xbf16>
    %100 = vector.shape_cast %99 : vector<1x1x3x128xbf16> to vector<3x128xbf16>
    %c12 = arith.constant 12 : index
    %c0_85 = arith.constant 0 : index
    %c0_86 = arith.constant 0 : index
    %101 = vector.load %arg3[%c12, %c0_85, %c0_86] : memref<18x128x128xbf16, #tpu.memory_space<vmem>>, vector<1x128x128xbf16>
    %102 = vector.shape_cast %101 : vector<1x128x128xbf16> to vector<128x128xbf16>
    %cst_87 = arith.constant dense<0.000000e+00> : vector<3x128xf32>
    %103 = tpu.matmul %100, %102, %cst_87 {dimension_numbers = #tpu.dot_dimension_numbers<[1], [0], [0], [1], [0, 0, 1, 1], [], []>} : vector<3x128xbf16>, vector<128x128xbf16>, vector<3x128xf32> -> vector<3x128xf32>
    %104 = arith.addf %96, %103 : vector<3x128xf32>
    %c2_i32_88 = arith.constant 2 : i32
    %105 = arith.addi %arg1, %c2_i32_88 : i32
    %c0_89 = arith.constant 0 : index
    %106 = arith.index_cast %105 : i32 to index
    %c1_90 = arith.constant 1 : index
    %c0_91 = arith.constant 0 : index
    %107 = vector.load %arg2[%c0_89, %106, %c1_90, %c0_91] : memref<1x4x8x128xbf16, #tpu.memory_space<vmem>>, vector<1x1x3x128xbf16>
    %108 = vector.shape_cast %107 : vector<1x1x3x128xbf16> to vector<3x128xbf16>
    %c13 = arith.constant 13 : index
    %c0_92 = arith.constant 0 : index
    %c0_93 = arith.constant 0 : index
    %109 = vector.load %arg3[%c13, %c0_92, %c0_93] : memref<18x128x128xbf16, #tpu.memory_space<vmem>>, vector<1x128x128xbf16>
    %110 = vector.shape_cast %109 : vector<1x128x128xbf16> to vector<128x128xbf16>
    %cst_94 = arith.constant dense<0.000000e+00> : vector<3x128xf32>
    %111 = tpu.matmul %108, %110, %cst_94 {dimension_numbers = #tpu.dot_dimension_numbers<[1], [0], [0], [1], [0, 0, 1, 1], [], []>} : vector<3x128xbf16>, vector<128x128xbf16>, vector<3x128xf32> -> vector<3x128xf32>
    %112 = arith.addf %104, %111 : vector<3x128xf32>
    %c2_i32_95 = arith.constant 2 : i32
    %113 = arith.addi %arg1, %c2_i32_95 : i32
    %c0_96 = arith.constant 0 : index
    %114 = arith.index_cast %113 : i32 to index
    %c2_97 = arith.constant 2 : index
    %c0_98 = arith.constant 0 : index
    %115 = vector.load %arg2[%c0_96, %114, %c2_97, %c0_98] : memref<1x4x8x128xbf16, #tpu.memory_space<vmem>>, vector<1x1x3x128xbf16>
    %116 = vector.shape_cast %115 : vector<1x1x3x128xbf16> to vector<3x128xbf16>
    %c14 = arith.constant 14 : index
    %c0_99 = arith.constant 0 : index
    %c0_100 = arith.constant 0 : index
    %117 = vector.load %arg3[%c14, %c0_99, %c0_100] : memref<18x128x128xbf16, #tpu.memory_space<vmem>>, vector<1x128x128xbf16>
    %118 = vector.shape_cast %117 : vector<1x128x128xbf16> to vector<128x128xbf16>
    %cst_101 = arith.constant dense<0.000000e+00> : vector<3x128xf32>
    %119 = tpu.matmul %116, %118, %cst_101 {dimension_numbers = #tpu.dot_dimension_numbers<[1], [0], [0], [1], [0, 0, 1, 1], [], []>} : vector<3x128xbf16>, vector<128x128xbf16>, vector<3x128xf32> -> vector<3x128xf32>
    %120 = arith.addf %112, %119 : vector<3x128xf32>
    %c2_i32_102 = arith.constant 2 : i32
    %121 = arith.addi %arg1, %c2_i32_102 : i32
    %c0_103 = arith.constant 0 : index
    %122 = arith.index_cast %121 : i32 to index
    %c3_104 = arith.constant 3 : index
    %c0_105 = arith.constant 0 : index
    %123 = vector.load %arg2[%c0_103, %122, %c3_104, %c0_105] : memref<1x4x8x128xbf16, #tpu.memory_space<vmem>>, vector<1x1x3x128xbf16>
    %124 = vector.shape_cast %123 : vector<1x1x3x128xbf16> to vector<3x128xbf16>
    %c15 = arith.constant 15 : index
    %c0_106 = arith.constant 0 : index
    %c0_107 = arith.constant 0 : index
    %125 = vector.load %arg3[%c15, %c0_106, %c0_107] : memref<18x128x128xbf16, #tpu.memory_space<vmem>>, vector<1x128x128xbf16>
    %126 = vector.shape_cast %125 : vector<1x128x128xbf16> to vector<128x128xbf16>
    %cst_108 = arith.constant dense<0.000000e+00> : vector<3x128xf32>
    %127 = tpu.matmul %124, %126, %cst_108 {dimension_numbers = #tpu.dot_dimension_numbers<[1], [0], [0], [1], [0, 0, 1, 1], [], []>} : vector<3x128xbf16>, vector<128x128xbf16>, vector<3x128xf32> -> vector<3x128xf32>
    %128 = arith.addf %120, %127 : vector<3x128xf32>
    %c2_i32_109 = arith.constant 2 : i32
    %129 = arith.addi %arg1, %c2_i32_109 : i32
    %c0_110 = arith.constant 0 : index
    %130 = arith.index_cast %129 : i32 to index
    %c4_111 = arith.constant 4 : index
    %c0_112 = arith.constant 0 : index
    %131 = vector.load %arg2[%c0_110, %130, %c4_111, %c0_112] : memref<1x4x8x128xbf16, #tpu.memory_space<vmem>>, vector<1x1x3x128xbf16>
    %132 = vector.shape_cast %131 : vector<1x1x3x128xbf16> to vector<3x128xbf16>
    %c16 = arith.constant 16 : index
    %c0_113 = arith.constant 0 : index
    %c0_114 = arith.constant 0 : index
    %133 = vector.load %arg3[%c16, %c0_113, %c0_114] : memref<18x128x128xbf16, #tpu.memory_space<vmem>>, vector<1x128x128xbf16>
    %134 = vector.shape_cast %133 : vector<1x128x128xbf16> to vector<128x128xbf16>
    %cst_115 = arith.constant dense<0.000000e+00> : vector<3x128xf32>
    %135 = tpu.matmul %132, %134, %cst_115 {dimension_numbers = #tpu.dot_dimension_numbers<[1], [0], [0], [1], [0, 0, 1, 1], [], []>} : vector<3x128xbf16>, vector<128x128xbf16>, vector<3x128xf32> -> vector<3x128xf32>
    %136 = arith.addf %128, %135 : vector<3x128xf32>
    %c2_i32_116 = arith.constant 2 : i32
    %137 = arith.addi %arg1, %c2_i32_116 : i32
    %c0_117 = arith.constant 0 : index
    %138 = arith.index_cast %137 : i32 to index
    %c5_118 = arith.constant 5 : index
    %c0_119 = arith.constant 0 : index
    %139 = vector.load %arg2[%c0_117, %138, %c5_118, %c0_119] : memref<1x4x8x128xbf16, #tpu.memory_space<vmem>>, vector<1x1x3x128xbf16>
    %140 = vector.shape_cast %139 : vector<1x1x3x128xbf16> to vector<3x128xbf16>
    %c17 = arith.constant 17 : index
    %c0_120 = arith.constant 0 : index
    %c0_121 = arith.constant 0 : index
    %141 = vector.load %arg3[%c17, %c0_120, %c0_121] : memref<18x128x128xbf16, #tpu.memory_space<vmem>>, vector<1x128x128xbf16>
    %142 = vector.shape_cast %141 : vector<1x128x128xbf16> to vector<128x128xbf16>
    %cst_122 = arith.constant dense<0.000000e+00> : vector<3x128xf32>
    %143 = tpu.matmul %140, %142, %cst_122 {dimension_numbers = #tpu.dot_dimension_numbers<[1], [0], [0], [1], [0, 0, 1, 1], [], []>} : vector<3x128xbf16>, vector<128x128xbf16>, vector<3x128xf32> -> vector<3x128xf32>
    %144 = arith.addf %136, %143 : vector<3x128xf32>
    %c0_123 = arith.constant 0 : index
    %c0_124 = arith.constant 0 : index
    %145 = vector.load %arg4[%c0_123, %c0_124] : memref<1x128xf32, #tpu.memory_space<vmem>>, vector<1x128xf32>
    %146 = vector.broadcast %145 : vector<1x128xf32> to vector<3x128xf32>
    %147 = arith.addf %144, %146 : vector<3x128xf32>
    %cst_125 = arith.constant 0.000000e+00 : f32
    %148 = vector.broadcast %cst_125 : f32 to vector<3x128xf32>
    %149 = arith.maximumf %147, %148 : vector<3x128xf32>
    %150 = arith.truncf %149 : vector<3x128xf32> to vector<3x128xbf16>
    %c0_126 = arith.constant 0 : index
    %c0_127 = arith.constant 0 : index
    %c0_128 = arith.constant 0 : index
    %c0_129 = arith.constant 0 : index
    %151 = vector.load %arg5[%c0_126, %c0_127, %c0_128, %c0_129] : memref<1x1x3x128xbf16, #tpu.memory_space<vmem>>, vector<1x1x3x128xbf16>
    %152 = vector.shape_cast %151 : vector<1x1x3x128xbf16> to vector<3x128xbf16>
    %153 = vector.shape_cast %150 : vector<3x128xbf16> to vector<1x1x3x128xbf16>
    tpu.vector_store %arg5[%c0_126, %c0_127, %c0_128, %c0_129], %153 {strides = array<i32>} : memref<1x1x3x128xbf16, #tpu.memory_space<vmem>>, vector<1x1x3x128xbf16>,
    return
  }
  func.func @transform_0(%arg0: i32, %arg1: i32) -> (i32, i32, i32, i32) {
    %c0_i32 = arith.constant 0 : i32
    %c0_i32_0 = arith.constant 0 : i32
    %c0_i32_1 = arith.constant 0 : i32
    %c0_i32_2 = arith.constant 0 : i32
    return %arg0, %c0_i32, %c0_i32_0, %c0_i32_1 : i32, i32, i32, i32
  }
  func.func @transform_1(%arg0: i32, %arg1: i32) -> (i32, i32, i32) {
    %c0_i32 = arith.constant 0 : i32
    %c0_i32_0 = arith.constant 0 : i32
    %c0_i32_1 = arith.constant 0 : i32
    %c0_i32_2 = arith.constant 0 : i32
    return %c0_i32, %c0_i32_0, %c0_i32_1 : i32, i32, i32
  }
  func.func @transform_2(%arg0: i32, %arg1: i32) -> (i32, i32) {
    %c0_i32 = arith.constant 0 : i32
    %c0_i32_0 = arith.constant 0 : i32
    %c0_i32_1 = arith.constant 0 : i32
    return %c0_i32, %c0_i32_0 : i32, i32
  }
  func.func @transform_3(%arg0: i32, %arg1: i32) -> (i32, i32, i32, i32) {
    %c0_i32 = arith.constant 0 : i32
    %c0_i32_0 = arith.constant 0 : i32
    %c0_i32_1 = arith.constant 0 : i32
    return %arg0, %arg1, %c0_i32, %c0_i32_0 : i32, i32, i32, i32
  }
}

module attributes {stable_mosaic.version = 11 : i64} {
  func.func @_dense_head_kernel(%arg0: i32, %arg1: i32, %arg2: memref<2x384xbf16, #tpu.memory_space<vmem>>, %arg3: memref<1x384x64xbf16, #tpu.memory_space<vmem>>, %arg4: memref<1x1x64xf32, #tpu.memory_space<vmem>>, %arg5: memref<1x64x128xbf16, #tpu.memory_space<vmem>>, %arg6: memref<1x2x128xf32, #tpu.memory_space<vmem>>, %arg7: memref<2x64xf32, #tpu.memory_space<vmem>>) attributes {dimension_semantics = [#tpu.dimension_semantics<parallel>, #tpu.dimension_semantics<arbitrary>], iteration_bounds = array<i64: 2, 1>, scalar_prefetch = 0 : i64, scratch_operands = 1 : i64, tpu.core_type = #tpu.core_type<tc>, window_params = [{transform_indices = @transform_0, window_bounds = array<i64: 2, 384>}, {transform_indices = @transform_1, window_bounds = array<i64: 1, 384, 64>}, {transform_indices = @transform_2, window_bounds = array<i64: 1, 1, 64>}, {transform_indices = @transform_3, window_bounds = array<i64: 1, 64, 128>}, {transform_indices = @transform_4, window_bounds = array<i64: 1, 2, 128>}]} {
    %c0_i32 = arith.constant 0 : i32
    %0 = arith.cmpi eq, %arg1, %c0_i32 : i32
    %1 = arith.extui %0 : i1 to i32
    %c0_i32_0 = arith.constant 0 : i32
    %2 = arith.cmpi ne, %1, %c0_i32_0 : i32
    scf.if %2 {
      %cst_11 = arith.constant 0.000000e+00 : f32
      %13 = vector.broadcast %cst_11 : f32 to vector<2x64xf32>
      %c0_12 = arith.constant 0 : index
      %c0_13 = arith.constant 0 : index
      %14 = vector.load %arg7[%c0_12, %c0_13] : memref<2x64xf32, #tpu.memory_space<vmem>>, vector<2x64xf32>
      tpu.vector_store %arg7[%c0_12, %c0_13], %13 {strides = array<i32>} : memref<2x64xf32, #tpu.memory_space<vmem>>, vector<2x64xf32>,
    } else {
    }
    %c0 = arith.constant 0 : index
    %c0_1 = arith.constant 0 : index
    %3 = vector.load %arg7[%c0, %c0_1] : memref<2x64xf32, #tpu.memory_space<vmem>>, vector<2x64xf32>
    %c0_2 = arith.constant 0 : index
    %c0_3 = arith.constant 0 : index
    %4 = vector.load %arg2[%c0_2, %c0_3] : memref<2x384xbf16, #tpu.memory_space<vmem>>, vector<2x384xbf16>
    %c0_4 = arith.constant 0 : index
    %c0_5 = arith.constant 0 : index
    %c0_6 = arith.constant 0 : index
    %5 = vector.load %arg3[%c0_4, %c0_5, %c0_6] : memref<1x384x64xbf16, #tpu.memory_space<vmem>>, vector<1x384x64xbf16>
    %6 = vector.shape_cast %5 : vector<1x384x64xbf16> to vector<384x64xbf16>
    %cst = arith.constant dense<0.000000e+00> : vector<2x64xf32>
    %7 = tpu.matmul %4, %6, %cst {dimension_numbers = #tpu.dot_dimension_numbers<[1], [0], [0], [1], [0, 0, 1, 1], [], []>} : vector<2x384xbf16>, vector<384x64xbf16>, vector<2x64xf32> -> vector<2x64xf32>
    %8 = arith.addf %3, %7 : vector<2x64xf32>
    %c0_7 = arith.constant 0 : index
    %c0_8 = arith.constant 0 : index
    %9 = vector.load %arg7[%c0_7, %c0_8] : memref<2x64xf32, #tpu.memory_space<vmem>>, vector<2x64xf32>
    tpu.vector_store %arg7[%c0_7, %c0_8], %8 {strides = array<i32>} : memref<2x64xf32, #tpu.memory_space<vmem>>, vector<2x64xf32>,
    %c0_i32_9 = arith.constant 0 : i32
    %10 = arith.cmpi eq, %arg1, %c0_i32_9 : i32
    %11 = arith.extui %10 : i1 to i32
    %c0_i32_10 = arith.constant 0 : i32
    %12 = arith.cmpi ne, %11, %c0_i32_10 : i32
    scf.if %12 {
      %c0_11 = arith.constant 0 : index
      %c0_12 = arith.constant 0 : index
      %13 = vector.load %arg7[%c0_11, %c0_12] : memref<2x64xf32, #tpu.memory_space<vmem>>, vector<2x64xf32>
      %c0_13 = arith.constant 0 : index
      %c0_14 = arith.constant 0 : index
      %c0_15 = arith.constant 0 : index
      %14 = vector.load %arg4[%c0_13, %c0_14, %c0_15] : memref<1x1x64xf32, #tpu.memory_space<vmem>>, vector<1x1x64xf32>
      %15 = vector.shape_cast %14 : vector<1x1x64xf32> to vector<1x64xf32>
      %16 = vector.broadcast %15 : vector<1x64xf32> to vector<2x64xf32>
      %17 = arith.addf %13, %16 : vector<2x64xf32>
      %cst_16 = arith.constant 0.000000e+00 : f32
      %18 = vector.broadcast %cst_16 : f32 to vector<2x64xf32>
      %19 = arith.maximumf %17, %18 : vector<2x64xf32>
      %20 = arith.truncf %19 : vector<2x64xf32> to vector<2x64xbf16>
      %c0_17 = arith.constant 0 : index
      %c0_18 = arith.constant 0 : index
      %c0_19 = arith.constant 0 : index
      %21 = vector.load %arg5[%c0_17, %c0_18, %c0_19] : memref<1x64x128xbf16, #tpu.memory_space<vmem>>, vector<1x64x128xbf16>
      %22 = vector.shape_cast %21 : vector<1x64x128xbf16> to vector<64x128xbf16>
      %cst_20 = arith.constant dense<0.000000e+00> : vector<2x128xf32>
      %23 = tpu.matmul %20, %22, %cst_20 {dimension_numbers = #tpu.dot_dimension_numbers<[1], [0], [0], [1], [0, 0, 1, 1], [], []>} : vector<2x64xbf16>, vector<64x128xbf16>, vector<2x128xf32> -> vector<2x128xf32>
      %c0_21 = arith.constant 0 : index
      %c0_22 = arith.constant 0 : index
      %c0_23 = arith.constant 0 : index
      %24 = vector.load %arg6[%c0_21, %c0_22, %c0_23] : memref<1x2x128xf32, #tpu.memory_space<vmem>>, vector<1x2x128xf32>
      %25 = vector.shape_cast %24 : vector<1x2x128xf32> to vector<2x128xf32>
      %26 = vector.shape_cast %23 : vector<2x128xf32> to vector<1x2x128xf32>
      tpu.vector_store %arg6[%c0_21, %c0_22, %c0_23], %26 {strides = array<i32>} : memref<1x2x128xf32, #tpu.memory_space<vmem>>, vector<1x2x128xf32>,
    } else {
    }
    return
  }
  func.func @transform_0(%arg0: i32, %arg1: i32) -> (i32, i32) {
    %c0_i32 = arith.constant 0 : i32
    %c0_i32_0 = arith.constant 0 : i32
    return %c0_i32, %arg1 : i32, i32
  }
  func.func @transform_1(%arg0: i32, %arg1: i32) -> (i32, i32, i32) {
    %c0_i32 = arith.constant 0 : i32
    %c0_i32_0 = arith.constant 0 : i32
    return %arg0, %arg1, %c0_i32 : i32, i32, i32
  }
  func.func @transform_2(%arg0: i32, %arg1: i32) -> (i32, i32, i32) {
    %c0_i32 = arith.constant 0 : i32
    %c0_i32_0 = arith.constant 0 : i32
    %c0_i32_1 = arith.constant 0 : i32
    return %arg0, %c0_i32, %c0_i32_0 : i32, i32, i32
  }
  func.func @transform_3(%arg0: i32, %arg1: i32) -> (i32, i32, i32) {
    %c0_i32 = arith.constant 0 : i32
    %c0_i32_0 = arith.constant 0 : i32
    %c0_i32_1 = arith.constant 0 : i32
    return %arg0, %c0_i32, %c0_i32_0 : i32, i32, i32
  }
  func.func @transform_4(%arg0: i32, %arg1: i32) -> (i32, i32, i32) {
    %c0_i32 = arith.constant 0 : i32
    %c0_i32_0 = arith.constant 0 : i32
    %c0_i32_1 = arith.constant 0 : i32
    return %arg0, %c0_i32, %c0_i32_0 : i32, i32, i32
  }
}

</mosaic_0001>

<llo_original>
// kernel: usg_forward.3
$region0: #{usg_forward.3}
  #allocation0 [shape = 'u32[]', space=smem, size = 0x4, offset = 0x4, fixed_abs, tag = 'smem constant byte address 0x4 - core index']
  #allocation1 [shape = 'u32[72,128]{1,0:T(1,128)}', space=vmem, size = 0x9000, scoped, tag = 'internal scratch']
  #allocation2 [shape = 'f32[24,128]{1,0:T(8,128)}', space=vmem, size = 0x3000, scoped, tag = 'scratch operand']
  %s0 = inlined_call_operand.vmem [shape: bf16[2,29,24,24], index: 0, kind: input, shape index: {}]
  %s1 = inlined_call_operand.vmem [shape: bf16[6,24,128], index: 1, kind: input, shape index: {}]
  %s2 = inlined_call_operand.vmem [shape: f32[1,128], index: 2, kind: input, shape index: {}]
  %s3 = inlined_call_operand.vmem [shape: bf16[2,4,8,128], index: 3, kind: output, shape index: {}]
  %s4 = sld [smem:[#allocation0]]
  $region45: #{usg_forward.3} parent=0
    _
  %s6 = ssub.s32 1, %s4
  %s7 = scalar_select 0, %s6, %s4
  loop: start=0, step=1, limit=10
  $region2: #{usg_forward.3} parent=0 // loop_pre_header
    _
  $region3: #{usg_forward.3} parent=0 // loop_header
    %s9 = sphi 0, %s13
    %p10 = scmp.ge.s32.totalorder %s9, 10
    %s16 = sphi 0, %s28
    %s17 = sphi 0, %s24
    %s18 = sphi 0, %s16
    %s19 = sphi 0, %s17
    %s20 = sphi 0, %s18
    %s21 = sphi 0, %s19
    %s31 = sphi 0, %s33
    %s34 = sphi 0, %s31
    %s35 = sphi 0, %s34
    %s51 = sphi 0, %s35
    %s55 = sphi 0, %s55
    %s57 = sphi 0, %s55
    %s58 = sphi 0, %s57
    %s72 = sphi 0, %s58
    %s76 = sphi 0, %s76
    %s78 = sphi 0, %s76
    %s79 = sphi 0, %s78
    %s93 = sphi 0, %s79
    %s101 = sphi 0, %s103
    %s104 = sphi 0, %s101
    %s105 = sphi 0, %s104
    %s121 = sphi 0, %s105
  $region4: #{usg_forward.3} parent=0 // loop_header_branch
    %12 = sbr.rel (%p10) target = $region8
  $region5: #{usg_forward.3} parent=0 // loop_body
    %s14 = ssub.s32 %s9, 1
    %s15 = ssub.s32 %s9, 2
    %s22 = sadd.s32 1, %s17
    %p23 = scmp.ge.s32.totalorder %s22, 4
    %s24 = scalar_select %p23, 0, %s22
    %s25 = sadd.s32 1, %s16
    %s26 = scalar_select %p23, %s25, %s16
    %p27 = scmp.ge.s32.totalorder %s26, 2
    %s28 = scalar_select %p27, 0, %s26
    %s29 = ssub.s32 %s16, %s28
    %p30 = scmp.eq.s32.totalorder %s29, 0
    %s32 = sadd.s32 %s31, 1
    %s33 = scalar_select %p30, %s31, %s32
    %p36 = pneg %p30
    %p37 = scmp.eq.s32.totalorder %s9, 7
    %p38 = por %p36, %p37
    %p39 = scmp.ne.s32.totalorder %s31, %s34
    %p40 = scmp.eq.s32.totalorder %s9, 0
    %p41 = por %p39, %p40
    %p42 = scmp.ne.s32.totalorder %s31, %s34
    %p43 = scmp.eq.s32.totalorder %s14, 7
    %p44 = por %p42, %p43
    %p45 = scmp.ne.s32.totalorder %s34, %s35
    %p46 = scmp.eq.s32.totalorder %s14, 0
    %p47 = por %p45, %p46
    %p48 = scmp.ne.s32.totalorder %s34, %s35
    %p49 = scmp.eq.s32.totalorder %s15, 7
    %p50 = por %p48, %p49
    %p52 = scmp.ne.s32.totalorder %s35, %s51
    %p53 = scmp.eq.s32.totalorder %s15, 0
    %p54 = por %p52, %p53
    %s56 = sadd.s32 %s55, 1
    %p59 = scmp.eq.s32.totalorder %s9, 7
    %p60 = scmp.ne.s32.totalorder %s55, %s57
    %p61 = scmp.eq.s32.totalorder %s9, 0
    %p62 = por %p60, %p61
    %p63 = scmp.ne.s32.totalorder %s55, %s57
    %p64 = scmp.eq.s32.totalorder %s14, 7
    %p65 = por %p63, %p64
    %p66 = scmp.ne.s32.totalorder %s57, %s58
    %p67 = scmp.eq.s32.totalorder %s14, 0
    %p68 = por %p66, %p67
    %p69 = scmp.ne.s32.totalorder %s57, %s58
    %p70 = scmp.eq.s32.totalorder %s15, 7
    %p71 = por %p69, %p70
    %p73 = scmp.ne.s32.totalorder %s58, %s72
    %p74 = scmp.eq.s32.totalorder %s15, 0
    %p75 = por %p73, %p74
    %s77 = sadd.s32 %s76, 1
    %p80 = scmp.eq.s32.totalorder %s9, 7
    %p81 = scmp.ne.s32.totalorder %s76, %s78
    %p82 = scmp.eq.s32.totalorder %s9, 0
    %p83 = por %p81, %p82
    %p84 = scmp.ne.s32.totalorder %s76, %s78
    %p85 = scmp.eq.s32.totalorder %s14, 7
    %p86 = por %p84, %p85
    %p87 = scmp.ne.s32.totalorder %s78, %s79
    %p88 = scmp.eq.s32.totalorder %s14, 0
    %p89 = por %p87, %p88
    %p90 = scmp.ne.s32.totalorder %s78, %s79
    %p91 = scmp.eq.s32.totalorder %s15, 7
    %p92 = por %p90, %p91
    %p94 = scmp.ne.s32.totalorder %s79, %s93
    %p95 = scmp.eq.s32.totalorder %s15, 0
    %p96 = por %p94, %p95
    %s97 = ssub.s32 %s16, %s28
    %s98 = ssub.s32 %s17, %s24
    %s99 = sor.u32 %s97, %s98
    %p100 = scmp.eq.s32.totalorder %s99, 0
    %s102 = sadd.s32 %s101, 1
    %s103 = scalar_select %p100, %s101, %s102
    %p106 = pneg %p100
    %p107 = scmp.eq.s32.totalorder %s9, 7
    %p108 = por %p106, %p107
    %p109 = scmp.ne.s32.totalorder %s101, %s104
    %p110 = scmp.eq.s32.totalorder %s9, 0
    %p111 = por %p109, %p110
    %p112 = scmp.ne.s32.totalorder %s101, %s104
    %p113 = scmp.eq.s32.totalorder %s14, 7
    %p114 = por %p112, %p113
    %p115 = scmp.ne.s32.totalorder %s104, %s105
    %p116 = scmp.eq.s32.totalorder %s14, 0
    %p117 = por %p115, %p116
    %p118 = scmp.ne.s32.totalorder %s104, %s105
    %p119 = scmp.eq.s32.totalorder %s15, 7
    %p120 = por %p118, %p119
    %p122 = scmp.ne.s32.totalorder %s105, %s121
    %p123 = scmp.eq.s32.totalorder %s15, 0
    %p124 = por %p122, %p123
    %p125 = scmp.le.s32.totalorder 1, %s9
    %p126 = scmp.lt.s32.totalorder %s9, 9
    %p127 = pnand %p125, %p126
    %p128 = pneg %p127
    // Predicated region
    $region9: #{usg_forward.3} parent=5 // pred_check
      _
    $region10: #{usg_forward.3} parent=5 // pred_check_branch
      %130 = sbr.rel (%p127) target = $region12
    $region11: #{usg_forward.3} parent=5 // pred_region
      %s131 = ssub.s32 %s9, 1
      // Predicated region
      $region13: #{usg_forward.3} parent=11 // pred_check
        %p132 = pneg %p68
      $region14: #{usg_forward.3} parent=11 // pred_check_branch
        %134 = sbr.rel (%p132) target = $region16
      $region15: #{usg_forward.3} parent=11 // pred_region
        _
      $region16: #{usg_forward.3} parent=11 // pred_fallthru
        _
      // Predicated region
      $region17: #{usg_forward.3} parent=11 // pred_check
        %p135 = pneg %p89
      $region18: #{usg_forward.3} parent=11 // pred_check_branch
        %137 = sbr.rel (%p135) target = $region20
      $region19: #{usg_forward.3} parent=11 // pred_region
        _
      $region20: #{usg_forward.3} parent=11 // pred_fallthru
        _
    $region12: #{usg_forward.3} parent=5 // pred_fallthru
      _
    %p138 = scmp.lt.s32.totalorder %s9, 8
    // Predicated region
    $region21: #{usg_forward.3} parent=5 // pred_check
      %p139 = pneg %p138
    $region22: #{usg_forward.3} parent=5 // pred_check_branch
      %141 = sbr.rel (%p139) target = $region24
    $region23: #{usg_forward.3} parent=5 // pred_region
      // Predicated region
      $region25: #{usg_forward.3} parent=23 // pred_check
        %p142 = pneg %p41
      $region26: #{usg_forward.3} parent=23 // pred_check_branch
        %144 = sbr.rel (%p142) target = $region28
      $region27: #{usg_forward.3} parent=23 // pred_region
        %p145 = scmp.lt.s32.totalorder %s16, 1
        %s146 = scalar_select %p145, %s16, 1
        %s147 = smul.addr %s146, 87
        %s148 = smul.addr %s147, 4
        %s149 = scalar_lea.vmem %s0, %s148
      $region28: #{usg_forward.3} parent=23 // pred_fallthru
        _
    $region24: #{usg_forward.3} parent=5 // pred_fallthru
      _
    %p150 = scmp.le.s32.totalorder 1, %s9
    %p151 = scmp.lt.s32.totalorder %s9, 9
    %p152 = pnand %p150, %p151
    %p153 = pneg %p152
    // Predicated region
    $region29: #{usg_forward.3} parent=5 // pred_check
      _
    $region30: #{usg_forward.3} parent=5 // pred_check_branch
      %155 = sbr.rel (%p152) target = $region32
    $region31: #{usg_forward.3} parent=5 // pred_region
      %s156 = ssub.s32 %s9, 1
      %p157 = scmp.lt.s32.totalorder %s18, 1
      %s158 = scalar_select %p157, %s18, 1
      %s159 = smul.addr %s158, 87
      %s160 = smul.addr %s159, 4
      %s161 = scalar_lea.vmem %s0, %s160
      %p162 = pneg %p47
      %p163 = pneg %p44
      %p164 = pneg %p68
      %p165 = pneg %p65
      %p166 = pneg %p89
      %p167 = pneg %p86
      %p168 = pneg %p117
      %p169 = pneg %p114
      %p170 = scmp.lt.s32.totalorder %s18, 1
      %s171 = scalar_select %p170, %s18, 1
      %p172 = scmp.lt.s32.totalorder %s19, 3
      %s173 = scalar_select %p172, %s19, 3
      %s174 = smul.addr %s171, 4
      %s175 = sadd.s32 %s173, %s174
      %s176 = smul.addr %s175, 4
      %s177 = scalar_lea.vmem %s3, %s176
      %p178 = scmp.lt.s32.totalorder %s18, 1
      %s179 = scalar_select %p178, %s18, 1
      %s180 = smul.addr %s179, 87
      %s181 = smul.addr %s180, 4
      %s182 = scalar_lea.vmem %s0, %s181
      %p183 = scmp.lt.s32.totalorder %s18, 1
      %s184 = scalar_select %p183, %s18, 1
      %p185 = scmp.lt.s32.totalorder %s19, 3
      %s186 = scalar_select %p185, %s19, 3
      %s187 = smul.addr %s184, 4
      %s188 = sadd.s32 %s186, %s187
      %s189 = smul.addr %s188, 4
      %s190 = scalar_lea.vmem %s3, %s189
      %s192 = smul.u32 %s19, 6
      %s193 = smul.u32 %s192, 3
      %s194 = smul.addr %s193, 4
      %s195 = scalar_lea.vmem %s182, %s194
      %v196 = vld [vmem:[%s195] sm:$0xf]
      %v197 = vld [vmem:[%s195 + $0x4] sm:$0xf]
      %v198 = vld [vmem:[%s195 + $0x8] sm:$0xf]
      %v199 = vld [vmem:[%s1] sm:$0xf]
      %v200 = vld [vmem:[%s1 + $0x4] sm:$0xf]
      %v201 = vld [vmem:[%s1 + $0x8] sm:$0xf]
      %s202 = sadd.s32 %s192, 1
      %s203 = smul.u32 %s202, 3
      %s204 = smul.addr %s203, 4
      %s205 = scalar_lea.vmem %s182, %s204
      %v206 = vld [vmem:[%s205] sm:$0xf]
      %v207 = vld [vmem:[%s205 + $0x4] sm:$0xf]
      %v208 = vld [vmem:[%s205 + $0x8] sm:$0xf]
      %s209 = scalar_lea.vmem %s1, 12
      %v210 = vld [vmem:[%s209] sm:$0xf]
      %v211 = vld [vmem:[%s209 + $0x4] sm:$0xf]
      %v212 = vld [vmem:[%s209 + $0x8] sm:$0xf]
      %v216 = vunpack.c.l.b16 %v206
      %v217 = vunpack.c.l.b16 %v207
      %v218 = vunpack.c.l.b16 %v208
      %v219 = vpack.c.b16 %v217, %v216
      %v220 = vpack.c.b16 %v218, %v218
      %v224 = vunpack.c.l.b16 %v210
      %v225 = vunpack.c.l.b16 %v211
      %v226 = vunpack.c.l.b16 %v212
      %v227 = vpack.c.b16 %v225, %v224
      %v228 = vpack.c.b16 %v226, %v226
      %vm230 = vcmask 195584
      %v232 = vsel %vm230, %v219, 0
      %v235 = vsel %vm230, %v220, 0
      %vm237 = vcmask 1043456
      %v239 = vsel %vm237, %v228, 0
      %241 = vmatpush.bf16.msra.mxu0 0
      %242 = vmatpush.bf16.msra.mxu0 0
      %243 = vmatpush.bf16.msra.mxu0 0
      %244 = vmatpush.bf16.msra.mxu0 0
      %245 = vmatpush.bf16.msra.mxu0 0
      %246 = vmatpush.bf16.msra.mxu0 0
      %247 = vmatpush.bf16.msra.mxu0 %v239
      %248 = vmatpush.bf16.msra.mxu0 %v227
      %249 = vmatmul.bf16.gmra.mxu0 %v232
      %v250 = vpop.f32.mrf.mxu0
      %v251 = vadd.f32 0.0, %v250
      %v252 = vpop.f32.mrf.mxu0
      %v253 = vadd.f32 0.0, %v252
      %254 = vmatmul.bf16.gmra.mxu0 %v235
      %v255 = vpop.f32.mrf.mxu0
      %v256 = vadd.f32 0.0, %v255
      %v257 = vpop.f32.mrf.mxu0
      %258 = vdwg.mxu0
      %v262 = vunpack.c.l.b16 %v196
      %v263 = vunpack.c.l.b16 %v197
      %v264 = vunpack.c.l.b16 %v198
      %v265 = vpack.c.b16 %v263, %v262
      %v266 = vpack.c.b16 %v264, %v264
      %v270 = vunpack.c.l.b16 %v199
      %v271 = vunpack.c.l.b16 %v200
      %v272 = vunpack.c.l.b16 %v201
      %v273 = vpack.c.b16 %v271, %v270
      %v274 = vpack.c.b16 %v272, %v272
      %v277 = vsel %vm230, %v265, 0
      %v280 = vsel %vm230, %v266, 0
      %v283 = vsel %vm237, %v274, 0
      %285 = vmatpush.bf16.msra.mxu0 0
      %286 = vmatpush.bf16.msra.mxu0 0
      %287 = vmatpush.bf16.msra.mxu0 0
      %288 = vmatpush.bf16.msra.mxu0 0
      %289 = vmatpush.bf16.msra.mxu0 0
      %290 = vmatpush.bf16.msra.mxu0 0
      %291 = vmatpush.bf16.msra.mxu0 %v283
      %292 = vmatpush.bf16.msra.mxu0 %v273
      %293 = vmatmul.bf16.gmra.mxu0 %v277
      %v294 = vpop.f32.mrf.mxu0
      %v295 = vadd.f32 %v251, %v294
      %v296 = vpop.f32.mrf.mxu0
      %v297 = vadd.f32 %v253, %v296
      %298 = vmatmul.bf16.gmra.mxu0 %v280
      %v299 = vpop.f32.mrf.mxu0
      %v300 = vadd.f32 %v256, %v299
      %v301 = vpop.f32.mrf.mxu0
      %302 = vdwg.mxu0
      %s303 = sadd.s32 %s192, 2
      %s304 = smul.u32 %s303, 3
      %s305 = smul.addr %s304, 4
      %s306 = scalar_lea.vmem %s182, %s305
      %v307 = vld [vmem:[%s306] sm:$0xf]
      %v308 = vld [vmem:[%s306 + $0x4] sm:$0xf]
      %v309 = vld [vmem:[%s306 + $0x8] sm:$0xf]
      %s310 = scalar_lea.vmem %s1, 24
      %v311 = vld [vmem:[%s310] sm:$0xf]
      %v312 = vld [vmem:[%s310 + $0x4] sm:$0xf]
      %v313 = vld [vmem:[%s310 + $0x8] sm:$0xf]
      %v317 = vunpack.c.l.b16 %v307
      %v318 = vunpack.c.l.b16 %v308
      %v319 = vunpack.c.l.b16 %v309
      %v320 = vpack.c.b16 %v318, %v317
      %v321 = vpack.c.b16 %v319, %v319
      %v325 = vunpack.c.l.b16 %v311
      %v326 = vunpack.c.l.b16 %v312
      %v327 = vunpack.c.l.b16 %v313
      %v328 = vpack.c.b16 %v326, %v325
      %v329 = vpack.c.b16 %v327, %v327
      %v332 = vsel %vm230, %v320, 0
      %v335 = vsel %vm230, %v321, 0
      %v338 = vsel %vm237, %v329, 0
      %340 = vmatpush.bf16.msra.mxu0 0
      %341 = vmatpush.bf16.msra.mxu0 0
      %342 = vmatpush.bf16.msra.mxu0 0
      %343 = vmatpush.bf16.msra.mxu0 0
      %344 = vmatpush.bf16.msra.mxu0 0
      %345 = vmatpush.bf16.msra.mxu0 0
      %346 = vmatpush.bf16.msra.mxu0 %v338
      %347 = vmatpush.bf16.msra.mxu0 %v328
      %348 = vmatmul.bf16.gmra.mxu0 %v332
      %v349 = vpop.f32.mrf.mxu0
      %v350 = vadd.f32 0.0, %v349
      %v351 = vpop.f32.mrf.mxu0
      %v352 = vadd.f32 0.0, %v351
      %353 = vmatmul.bf16.gmra.mxu0 %v335
      %v354 = vpop.f32.mrf.mxu0
      %v355 = vadd.f32 0.0, %v354
      %v356 = vpop.f32.mrf.mxu0
      %357 = vdwg.mxu0
      %v358 = vadd.f32 %v295, %v350
      %v359 = vadd.f32 %v297, %v352
      %v360 = vadd.f32 %v300, %v355
      %s361 = sadd.s32 %s192, 3
      %s362 = smul.u32 %s361, 3
      %s363 = smul.addr %s362, 4
      %s364 = scalar_lea.vmem %s182, %s363
      %v365 = vld [vmem:[%s364] sm:$0xf]
      %v366 = vld [vmem:[%s364 + $0x4] sm:$0xf]
      %v367 = vld [vmem:[%s364 + $0x8] sm:$0xf]
      %s368 = scalar_lea.vmem %s1, 36
      %v369 = vld [vmem:[%s368] sm:$0xf]
      %v370 = vld [vmem:[%s368 + $0x4] sm:$0xf]
      %v371 = vld [vmem:[%s368 + $0x8] sm:$0xf]
      %v375 = vunpack.c.l.b16 %v365
      %v376 = vunpack.c.l.b16 %v366
      %v377 = vunpack.c.l.b16 %v367
      %v378 = vpack.c.b16 %v376, %v375
      %v379 = vpack.c.b16 %v377, %v377
      %v383 = vunpack.c.l.b16 %v369
      %v384 = vunpack.c.l.b16 %v370
      %v385 = vunpack.c.l.b16 %v371
      %v386 = vpack.c.b16 %v384, %v383
      %v387 = vpack.c.b16 %v385, %v385
      %v390 = vsel %vm230, %v378, 0
      %v393 = vsel %vm230, %v379, 0
      %v396 = vsel %vm237, %v387, 0
      %398 = vmatpush.bf16.msra.mxu0 0
      %399 = vmatpush.bf16.msra.mxu0 0
      %400 = vmatpush.bf16.msra.mxu0 0
      %401 = vmatpush.bf16.msra.mxu0 0
      %402 = vmatpush.bf16.msra.mxu0 0
      %403 = vmatpush.bf16.msra.mxu0 0
      %404 = vmatpush.bf16.msra.mxu0 %v396
      %405 = vmatpush.bf16.msra.mxu0 %v386
      %406 = vmatmul.bf16.gmra.mxu0 %v390
      %v407 = vpop.f32.mrf.mxu0
      %v408 = vadd.f32 0.0, %v407
      %v409 = vpop.f32.mrf.mxu0
      %v410 = vadd.f32 0.0, %v409
      %411 = vmatmul.bf16.gmra.mxu0 %v393
      %v412 = vpop.f32.mrf.mxu0
      %v413 = vadd.f32 0.0, %v412
      %v414 = vpop.f32.mrf.mxu0
      %415 = vdwg.mxu0
      %v416 = vadd.f32 %v358, %v408
      %v417 = vadd.f32 %v359, %v410
      %v418 = vadd.f32 %v360, %v413
      %s419 = sadd.s32 %s192, 4
      %s420 = smul.u32 %s419, 3
      %s421 = smul.addr %s420, 4
      %s422 = scalar_lea.vmem %s182, %s421
      %v423 = vld [vmem:[%s422] sm:$0xf]
      %v424 = vld [vmem:[%s422 + $0x4] sm:$0xf]
      %v425 = vld [vmem:[%s422 + $0x8] sm:$0xf]
      %s426 = scalar_lea.vmem %s1, 48
      %v427 = vld [vmem:[%s426] sm:$0xf]
      %v428 = vld [vmem:[%s426 + $0x4] sm:$0xf]
      %v429 = vld [vmem:[%s426 + $0x8] sm:$0xf]
      %v433 = vunpack.c.l.b16 %v423
      %v434 = vunpack.c.l.b16 %v424
      %v435 = vunpack.c.l.b16 %v425
      %v436 = vpack.c.b16 %v434, %v433
      %v437 = vpack.c.b16 %v435, %v435
      %v441 = vunpack.c.l.b16 %v427
      %v442 = vunpack.c.l.b16 %v428
      %v443 = vunpack.c.l.b16 %v429
      %v444 = vpack.c.b16 %v442, %v441
      %v445 = vpack.c.b16 %v443, %v443
      %v448 = vsel %vm230, %v436, 0
      %v451 = vsel %vm230, %v437, 0
      %v454 = vsel %vm237, %v445, 0
      %456 = vmatpush.bf16.msra.mxu0 0
      %457 = vmatpush.bf16.msra.mxu0 0
      %458 = vmatpush.bf16.msra.mxu0 0
      %459 = vmatpush.bf16.msra.mxu0 0
      %460 = vmatpush.bf16.msra.mxu0 0
      %461 = vmatpush.bf16.msra.mxu0 0
      %462 = vmatpush.bf16.msra.mxu0 %v454
      %463 = vmatpush.bf16.msra.mxu0 %v444
      %464 = vmatmul.bf16.gmra.mxu0 %v448
      %v465 = vpop.f32.mrf.mxu0
      %v466 = vadd.f32 0.0, %v465
      %v467 = vpop.f32.mrf.mxu0
      %v468 = vadd.f32 0.0, %v467
      %469 = vmatmul.bf16.gmra.mxu0 %v451
      %v470 = vpop.f32.mrf.mxu0
      %v471 = vadd.f32 0.0, %v470
      %v472 = vpop.f32.mrf.mxu0
      %473 = vdwg.mxu0
      %v474 = vadd.f32 %v416, %v466
      %v475 = vadd.f32 %v417, %v468
      %v476 = vadd.f32 %v418, %v471
      %s477 = sadd.s32 %s192, 5
      %s478 = smul.u32 %s477, 3
      %s479 = smul.addr %s478, 4
      %s480 = scalar_lea.vmem %s182, %s479
      %v481 = vld [vmem:[%s480] sm:$0xf]
      %v482 = vld [vmem:[%s480 + $0x4] sm:$0xf]
      %v483 = vld [vmem:[%s480 + $0x8] sm:$0xf]
      %s484 = scalar_lea.vmem %s1, 60
      %v485 = vld [vmem:[%s484] sm:$0xf]
      %v486 = vld [vmem:[%s484 + $0x4] sm:$0xf]
      %v487 = vld [vmem:[%s484 + $0x8] sm:$0xf]
      %v491 = vunpack.c.l.b16 %v481
      %v492 = vunpack.c.l.b16 %v482
      %v493 = vunpack.c.l.b16 %v483
      %v494 = vpack.c.b16 %v492, %v491
      %v495 = vpack.c.b16 %v493, %v493
      %v499 = vunpack.c.l.b16 %v485
      %v500 = vunpack.c.l.b16 %v486
      %v501 = vunpack.c.l.b16 %v487
      %v502 = vpack.c.b16 %v500, %v499
      %v503 = vpack.c.b16 %v501, %v501
      %v506 = vsel %vm230, %v494, 0
      %v509 = vsel %vm230, %v495, 0
      %v512 = vsel %vm237, %v503, 0
      %514 = vmatpush.bf16.msra.mxu0 0
      %515 = vmatpush.bf16.msra.mxu0 0
      %516 = vmatpush.bf16.msra.mxu0 0
      %517 = vmatpush.bf16.msra.mxu0 0
      %518 = vmatpush.bf16.msra.mxu0 0
      %519 = vmatpush.bf16.msra.mxu0 0
      %520 = vmatpush.bf16.msra.mxu0 %v512
      %521 = vmatpush.bf16.msra.mxu0 %v502
      %522 = vmatmul.bf16.gmra.mxu0 %v506
      %v523 = vpop.f32.mrf.mxu0
      %v524 = vadd.f32 0.0, %v523
      %v525 = vpop.f32.mrf.mxu0
      %v526 = vadd.f32 0.0, %v525
      %527 = vmatmul.bf16.gmra.mxu0 %v509
      %v528 = vpop.f32.mrf.mxu0
      %v529 = vadd.f32 0.0, %v528
      %v530 = vpop.f32.mrf.mxu0
      %531 = vdwg.mxu0
      %v532 = vadd.f32 %v474, %v524
      %v533 = vadd.f32 %v475, %v526
      %v534 = vadd.f32 %v476, %v529
      %v535 = vld [vmem:[%s2] sm:$0x1]
      %v537 = vperm.slane %v535, 0
      %v539 = vadd.f32 %v532, %v537
      %v540 = vadd.f32 %v533, %v537
      %v541 = vadd.f32 %v534, %v537
      %v542 = vmax.f32 %v539, 0.0
      %v543 = vmax.f32 %v540, 0.0
      %v544 = vmax.f32 %v541, 0.0
      %v545 = vmax.f32 %v542, 0.0
      %v546 = vmax.f32 %v543, 0.0
      %v547 = vmax.f32 %v544, 0.0
      %548 = vmatpush.bf16.msra.mxu0 0
      %549 = vmatpush.bf16.msra.mxu0 0
      %550 = vmatpush.bf16.msra.mxu0 0
      %551 = vmatpush.bf16.msra.mxu0 0
      %552 = vmatpush.bf16.msra.mxu0 0
      %553 = vmatpush.bf16.msra.mxu0 0
      %554 = vmatpush.bf16.msra.mxu0 %v239
      %555 = vmatpush.bf16.msra.mxu0 %v227
      %556 = vmatmul.bf16.gmra.mxu0 %v332
      %v557 = vpop.f32.mrf.mxu0
      %v558 = vadd.f32 0.0, %v557
      %v559 = vpop.f32.mrf.mxu0
      %v560 = vadd.f32 0.0, %v559
      %561 = vmatmul.bf16.gmra.mxu0 %v335
      %v562 = vpop.f32.mrf.mxu0
      %v563 = vadd.f32 0.0, %v562
      %v564 = vpop.f32.mrf.mxu0
      %565 = vdwg.mxu0
      %566 = vmatpush.bf16.msra.mxu0 0
      %567 = vmatpush.bf16.msra.mxu0 0
      %568 = vmatpush.bf16.msra.mxu0 0
      %569 = vmatpush.bf16.msra.mxu0 0
      %570 = vmatpush.bf16.msra.mxu0 0
      %571 = vmatpush.bf16.msra.mxu0 0
      %572 = vmatpush.bf16.msra.mxu0 %v283
      %573 = vmatpush.bf16.msra.mxu0 %v273
      %574 = vmatmul.bf16.gmra.mxu0 %v232
      %v575 = vpop.f32.mrf.mxu0
      %v576 = vadd.f32 %v558, %v575
      %v577 = vpop.f32.mrf.mxu0
      %v578 = vadd.f32 %v560, %v577
      %579 = vmatmul.bf16.gmra.mxu0 %v235
      %v580 = vpop.f32.mrf.mxu0
      %v581 = vadd.f32 %v563, %v580
      %v582 = vpop.f32.mrf.mxu0
      %583 = vdwg.mxu0
      %584 = vmatpush.bf16.msra.mxu0 0
      %585 = vmatpush.bf16.msra.mxu0 0
      %586 = vmatpush.bf16.msra.mxu0 0
      %587 = vmatpush.bf16.msra.mxu0 0
      %588 = vmatpush.bf16.msra.mxu0 0
      %589 = vmatpush.bf16.msra.mxu0 0
      %590 = vmatpush.bf16.msra.mxu0 %v338
      %591 = vmatpush.bf16.msra.mxu0 %v328
      %592 = vmatmul.bf16.gmra.mxu0 %v390
      %v593 = vpop.f32.mrf.mxu0
      %v594 = vadd.f32 0.0, %v593
      %v595 = vpop.f32.mrf.mxu0
      %v596 = vadd.f32 0.0, %v595
      %597 = vmatmul.bf16.gmra.mxu0 %v393
      %v598 = vpop.f32.mrf.mxu0
      %v599 = vadd.f32 0.0, %v598
      %v600 = vpop.f32.mrf.mxu0
      %601 = vdwg.mxu0
      %v602 = vadd.f32 %v576, %v594
      %v603 = vadd.f32 %v578, %v596
      %v604 = vadd.f32 %v581, %v599
      %605 = vmatpush.bf16.msra.mxu0 0
      %606 = vmatpush.bf16.msra.mxu0 0
      %607 = vmatpush.bf16.msra.mxu0 0
      %608 = vmatpush.bf16.msra.mxu0 0
      %609 = vmatpush.bf16.msra.mxu0 0
      %610 = vmatpush.bf16.msra.mxu0 0
      %611 = vmatpush.bf16.msra.mxu0 %v396
      %612 = vmatpush.bf16.msra.mxu0 %v386
      %613 = vmatmul.bf16.gmra.mxu0 %v448
      %v614 = vpop.f32.mrf.mxu0
      %v615 = vadd.f32 0.0, %v614
      %v616 = vpop.f32.mrf.mxu0
      %v617 = vadd.f32 0.0, %v616
      %618 = vmatmul.bf16.gmra.mxu0 %v451
      %v619 = vpop.f32.mrf.mxu0
      %v620 = vadd.f32 0.0, %v619
      %v621 = vpop.f32.mrf.mxu0
      %622 = vdwg.mxu0
      %v623 = vadd.f32 %v602, %v615
      %v624 = vadd.f32 %v603, %v617
      %v625 = vadd.f32 %v604, %v620
      %626 = vmatpush.bf16.msra.mxu0 0
      %627 = vmatpush.bf16.msra.mxu0 0
      %628 = vmatpush.bf16.msra.mxu0 0
      %629 = vmatpush.bf16.msra.mxu0 0
      %630 = vmatpush.bf16.msra.mxu0 0
      %631 = vmatpush.bf16.msra.mxu0 0
      %632 = vmatpush.bf16.msra.mxu0 %v454
      %633 = vmatpush.bf16.msra.mxu0 %v444
      %634 = vmatmul.bf16.gmra.mxu0 %v506
      %v635 = vpop.f32.mrf.mxu0
      %v636 = vadd.f32 0.0, %v635
      %v637 = vpop.f32.mrf.mxu0
      %v638 = vadd.f32 0.0, %v637
      %639 = vmatmul.bf16.gmra.mxu0 %v509
      %v640 = vpop.f32.mrf.mxu0
      %v641 = vadd.f32 0.0, %v640
      %v642 = vpop.f32.mrf.mxu0
      %643 = vdwg.mxu0
      %v644 = vadd.f32 %v623, %v636
      %v645 = vadd.f32 %v624, %v638
      %v646 = vadd.f32 %v625, %v641
      %s647 = sadd.s32 %s192, 6
      %s648 = smul.u32 %s647, 3
      %s649 = smul.addr %s648, 4
      %s650 = scalar_lea.vmem %s182, %s649
      %v651 = vld [vmem:[%s650] sm:$0xf]
      %v652 = vld [vmem:[%s650 + $0x4] sm:$0xf]
      %v653 = vld [vmem:[%s650 + $0x8] sm:$0xf]
      %v657 = vunpack.c.l.b16 %v651
      %v658 = vunpack.c.l.b16 %v652
      %v659 = vunpack.c.l.b16 %v653
      %v660 = vpack.c.b16 %v658, %v657
      %v661 = vpack.c.b16 %v659, %v659
      %v663 = vsel %vm230, %v660, 0
      %v666 = vsel %vm230, %v661, 0
      %668 = vmatpush.bf16.msra.mxu0 0
      %669 = vmatpush.bf16.msra.mxu0 0
      %670 = vmatpush.bf16.msra.mxu0 0
      %671 = vmatpush.bf16.msra.mxu0 0
      %672 = vmatpush.bf16.msra.mxu0 0
      %673 = vmatpush.bf16.msra.mxu0 0
      %674 = vmatpush.bf16.msra.mxu0 %v512
      %675 = vmatpush.bf16.msra.mxu0 %v502
      %676 = vmatmul.bf16.gmra.mxu0 %v663
      %v677 = vpop.f32.mrf.mxu0
      %v678 = vadd.f32 0.0, %v677
      %v679 = vpop.f32.mrf.mxu0
      %v680 = vadd.f32 0.0, %v679
      %681 = vmatmul.bf16.gmra.mxu0 %v666
      %v682 = vpop.f32.mrf.mxu0
      %v683 = vadd.f32 0.0, %v682
      %v684 = vpop.f32.mrf.mxu0
      %685 = vdwg.mxu0
      %v686 = vadd.f32 %v644, %v678
      %v687 = vadd.f32 %v645, %v680
      %v688 = vadd.f32 %v646, %v683
      %v689 = vadd.f32 %v686, %v537
      %v690 = vadd.f32 %v687, %v537
      %v691 = vadd.f32 %v688, %v537
      %v692 = vmax.f32 %v689, 0.0
      %v693 = vmax.f32 %v690, 0.0
      %v694 = vmax.f32 %v691, 0.0
      %v695 = vmax.f32 %v545, %v692
      %v696 = vmax.f32 %v546, %v693
      %v697 = vmax.f32 %v547, %v694
      %698 = vmatpush.bf16.msra.mxu0 0
      %699 = vmatpush.bf16.msra.mxu0 0
      %700 = vmatpush.bf16.msra.mxu0 0
      %701 = vmatpush.bf16.msra.mxu0 0
      %702 = vmatpush.bf16.msra.mxu0 0
      %703 = vmatpush.bf16.msra.mxu0 0
      %704 = vmatpush.bf16.msra.mxu0 %v239
      %705 = vmatpush.bf16.msra.mxu0 %v227
      %706 = vmatmul.bf16.gmra.mxu0 %v390
      %v707 = vpop.f32.mrf.mxu0
      %v708 = vadd.f32 0.0, %v707
      %v709 = vpop.f32.mrf.mxu0
      %v710 = vadd.f32 0.0, %v709
      %711 = vmatmul.bf16.gmra.mxu0 %v393
      %v712 = vpop.f32.mrf.mxu0
      %v713 = vadd.f32 0.0, %v712
      %v714 = vpop.f32.mrf.mxu0
      %715 = vdwg.mxu0
      %716 = vmatpush.bf16.msra.mxu0 0
      %717 = vmatpush.bf16.msra.mxu0 0
      %718 = vmatpush.bf16.msra.mxu0 0
      %719 = vmatpush.bf16.msra.mxu0 0
      %720 = vmatpush.bf16.msra.mxu0 0
      %721 = vmatpush.bf16.msra.mxu0 0
      %722 = vmatpush.bf16.msra.mxu0 %v283
      %723 = vmatpush.bf16.msra.mxu0 %v273
      %724 = vmatmul.bf16.gmra.mxu0 %v332
      %v725 = vpop.f32.mrf.mxu0
      %v726 = vadd.f32 %v708, %v725
      %v727 = vpop.f32.mrf.mxu0
      %v728 = vadd.f32 %v710, %v727
      %729 = vmatmul.bf16.gmra.mxu0 %v335
      %v730 = vpop.f32.mrf.mxu0
      %v731 = vadd.f32 %v713, %v730
      %v732 = vpop.f32.mrf.mxu0
      %733 = vdwg.mxu0
      %734 = vmatpush.bf16.msra.mxu0 0
      %735 = vmatpush.bf16.msra.mxu0 0
      %736 = vmatpush.bf16.msra.mxu0 0
      %737 = vmatpush.bf16.msra.mxu0 0
      %738 = vmatpush.bf16.msra.mxu0 0
      %739 = vmatpush.bf16.msra.mxu0 0
      %740 = vmatpush.bf16.msra.mxu0 %v338
      %741 = vmatpush.bf16.msra.mxu0 %v328
      %742 = vmatmul.bf16.gmra.mxu0 %v448
      %v743 = vpop.f32.mrf.mxu0
      %v744 = vadd.f32 0.0, %v743
      %v745 = vpop.f32.mrf.mxu0
      %v746 = vadd.f32 0.0, %v745
      %747 = vmatmul.bf16.gmra.mxu0 %v451
      %v748 = vpop.f32.mrf.mxu0
      %v749 = vadd.f32 0.0, %v748
      %v750 = vpop.f32.mrf.mxu0
      %751 = vdwg.mxu0
      %v752 = vadd.f32 %v726, %v744
      %v753 = vadd.f32 %v728, %v746
      %v754 = vadd.f32 %v731, %v749
      %755 = vmatpush.bf16.msra.mxu0 0
      %756 = vmatpush.bf16.msra.mxu0 0
      %757 = vmatpush.bf16.msra.mxu0 0
      %758 = vmatpush.bf16.msra.mxu0 0
      %759 = vmatpush.bf16.msra.mxu0 0
      %760 = vmatpush.bf16.msra.mxu0 0
      %761 = vmatpush.bf16.msra.mxu0 %v396
      %762 = vmatpush.bf16.msra.mxu0 %v386
      %763 = vmatmul.bf16.gmra.mxu0 %v506
      %v764 = vpop.f32.mrf.mxu0
      %v765 = vadd.f32 0.0, %v764
      %v766 = vpop.f32.mrf.mxu0
      %v767 = vadd.f32 0.0, %v766
      %768 = vmatmul.bf16.gmra.mxu0 %v509
      %v769 = vpop.f32.mrf.mxu0
      %v770 = vadd.f32 0.0, %v769
      %v771 = vpop.f32.mrf.mxu0
      %772 = vdwg.mxu0
      %v773 = vadd.f32 %v752, %v765
      %v774 = vadd.f32 %v753, %v767
      %v775 = vadd.f32 %v754, %v770
      %776 = vmatpush.bf16.msra.mxu0 0
      %777 = vmatpush.bf16.msra.mxu0 0
      %778 = vmatpush.bf16.msra.mxu0 0
      %779 = vmatpush.bf16.msra.mxu0 0
      %780 = vmatpush.bf16.msra.mxu0 0
      %781 = vmatpush.bf16.msra.mxu0 0
      %782 = vmatpush.bf16.msra.mxu0 %v454
      %783 = vmatpush.bf16.msra.mxu0 %v444
      %784 = vmatmul.bf16.gmra.mxu0 %v663
      %v785 = vpop.f32.mrf.mxu0
      %v786 = vadd.f32 0.0, %v785
      %v787 = vpop.f32.mrf.mxu0
      %v788 = vadd.f32 0.0, %v787
      %789 = vmatmul.bf16.gmra.mxu0 %v666
      %v790 = vpop.f32.mrf.mxu0
      %v791 = vadd.f32 0.0, %v790
      %v792 = vpop.f32.mrf.mxu0
      %793 = vdwg.mxu0
      %v794 = vadd.f32 %v773, %v786
      %v795 = vadd.f32 %v774, %v788
      %v796 = vadd.f32 %v775, %v791
      %s797 = sadd.s32 %s192, 7
      %s798 = smul.u32 %s797, 3
      %s799 = smul.addr %s798, 4
      %s800 = scalar_lea.vmem %s182, %s799
      %v801 = vld [vmem:[%s800] sm:$0xf]
      %v802 = vld [vmem:[%s800 + $0x4] sm:$0xf]
      %v803 = vld [vmem:[%s800 + $0x8] sm:$0xf]
      %v807 = vunpack.c.l.b16 %v801
      %v808 = vunpack.c.l.b16 %v802
      %v809 = vunpack.c.l.b16 %v803
      %v810 = vpack.c.b16 %v808, %v807
      %v811 = vpack.c.b16 %v809, %v809
      %v813 = vsel %vm230, %v810, 0
      %v816 = vsel %vm230, %v811, 0
      %818 = vmatpush.bf16.msra.mxu0 0
      %819 = vmatpush.bf16.msra.mxu0 0
      %820 = vmatpush.bf16.msra.mxu0 0
      %821 = vmatpush.bf16.msra.mxu0 0
      %822 = vmatpush.bf16.msra.mxu0 0
      %823 = vmatpush.bf16.msra.mxu0 0
      %824 = vmatpush.bf16.msra.mxu0 %v512
      %825 = vmatpush.bf16.msra.mxu0 %v502
      %826 = vmatmul.bf16.gmra.mxu0 %v813
      %v827 = vpop.f32.mrf.mxu0
      %v828 = vadd.f32 0.0, %v827
      %v829 = vpop.f32.mrf.mxu0
      %v830 = vadd.f32 0.0, %v829
      %831 = vmatmul.bf16.gmra.mxu0 %v816
      %v832 = vpop.f32.mrf.mxu0
      %v833 = vadd.f32 0.0, %v832
      %v834 = vpop.f32.mrf.mxu0
      %835 = vdwg.mxu0
      %v836 = vadd.f32 %v794, %v828
      %v837 = vadd.f32 %v795, %v830
      %v838 = vadd.f32 %v796, %v833
      %v839 = vadd.f32 %v836, %v537
      %v840 = vadd.f32 %v837, %v537
      %v841 = vadd.f32 %v838, %v537
      %v842 = vmax.f32 %v839, 0.0
      %v843 = vmax.f32 %v840, 0.0
      %v844 = vmax.f32 %v841, 0.0
      %v845 = vmax.f32 %v695, %v842
      %v846 = vmax.f32 %v696, %v843
      %v847 = vmax.f32 %v697, %v844
      %848 = vmatpush.bf16.msra.mxu0 0
      %849 = vmatpush.bf16.msra.mxu0 0
      %850 = vmatpush.bf16.msra.mxu0 0
      %851 = vmatpush.bf16.msra.mxu0 0
      %852 = vmatpush.bf16.msra.mxu0 0
      %853 = vmatpush.bf16.msra.mxu0 0
      %854 = vmatpush.bf16.msra.mxu0 %v239
      %855 = vmatpush.bf16.msra.mxu0 %v227
      %856 = vmatmul.bf16.gmra.mxu0 %v448
      %v857 = vpop.f32.mrf.mxu0
      %v858 = vadd.f32 0.0, %v857
      %v859 = vpop.f32.mrf.mxu0
      %v860 = vadd.f32 0.0, %v859
      %861 = vmatmul.bf16.gmra.mxu0 %v451
      %v862 = vpop.f32.mrf.mxu0
      %v863 = vadd.f32 0.0, %v862
      %v864 = vpop.f32.mrf.mxu0
      %865 = vdwg.mxu0
      %866 = vmatpush.bf16.msra.mxu0 0
      %867 = vmatpush.bf16.msra.mxu0 0
      %868 = vmatpush.bf16.msra.mxu0 0
      %869 = vmatpush.bf16.msra.mxu0 0
      %870 = vmatpush.bf16.msra.mxu0 0
      %871 = vmatpush.bf16.msra.mxu0 0
      %872 = vmatpush.bf16.msra.mxu0 %v283
      %873 = vmatpush.bf16.msra.mxu0 %v273
      %874 = vmatmul.bf16.gmra.mxu0 %v390
      %v875 = vpop.f32.mrf.mxu0
      %v876 = vadd.f32 %v858, %v875
      %v877 = vpop.f32.mrf.mxu0
      %v878 = vadd.f32 %v860, %v877
      %879 = vmatmul.bf16.gmra.mxu0 %v393
      %v880 = vpop.f32.mrf.mxu0
      %v881 = vadd.f32 %v863, %v880
      %v882 = vpop.f32.mrf.mxu0
      %883 = vdwg.mxu0
      %884 = vmatpush.bf16.msra.mxu0 0
      %885 = vmatpush.bf16.msra.mxu0 0
      %886 = vmatpush.bf16.msra.mxu0 0
      %887 = vmatpush.bf16.msra.mxu0 0
      %888 = vmatpush.bf16.msra.mxu0 0
      %889 = vmatpush.bf16.msra.mxu0 0
      %890 = vmatpush.bf16.msra.mxu0 %v338
      %891 = vmatpush.bf16.msra.mxu0 %v328
      %892 = vmatmul.bf16.gmra.mxu0 %v506
      %v893 = vpop.f32.mrf.mxu0
      %v894 = vadd.f32 0.0, %v893
      %v895 = vpop.f32.mrf.mxu0
      %v896 = vadd.f32 0.0, %v895
      %897 = vmatmul.bf16.gmra.mxu0 %v509
      %v898 = vpop.f32.mrf.mxu0
      %v899 = vadd.f32 0.0, %v898
      %v900 = vpop.f32.mrf.mxu0
      %901 = vdwg.mxu0
      %v902 = vadd.f32 %v876, %v894
      %v903 = vadd.f32 %v878, %v896
      %v904 = vadd.f32 %v881, %v899
      %905 = vmatpush.bf16.msra.mxu0 0
      %906 = vmatpush.bf16.msra.mxu0 0
      %907 = vmatpush.bf16.msra.mxu0 0
      %908 = vmatpush.bf16.msra.mxu0 0
      %909 = vmatpush.bf16.msra.mxu0 0
      %910 = vmatpush.bf16.msra.mxu0 0
      %911 = vmatpush.bf16.msra.mxu0 %v396
      %912 = vmatpush.bf16.msra.mxu0 %v386
      %913 = vmatmul.bf16.gmra.mxu0 %v663
      %v914 = vpop.f32.mrf.mxu0
      %v915 = vadd.f32 0.0, %v914
      %v916 = vpop.f32.mrf.mxu0
      %v917 = vadd.f32 0.0, %v916
      %918 = vmatmul.bf16.gmra.mxu0 %v666
      %v919 = vpop.f32.mrf.mxu0
      %v920 = vadd.f32 0.0, %v919
      %v921 = vpop.f32.mrf.mxu0
      %922 = vdwg.mxu0
      %v923 = vadd.f32 %v902, %v915
      %v924 = vadd.f32 %v903, %v917
      %v925 = vadd.f32 %v904, %v920
      %926 = vmatpush.bf16.msra.mxu0 0
      %927 = vmatpush.bf16.msra.mxu0 0
      %928 = vmatpush.bf16.msra.mxu0 0
      %929 = vmatpush.bf16.msra.mxu0 0
      %930 = vmatpush.bf16.msra.mxu0 0
      %931 = vmatpush.bf16.msra.mxu0 0
      %932 = vmatpush.bf16.msra.mxu0 %v454
      %933 = vmatpush.bf16.msra.mxu0 %v444
      %934 = vmatmul.bf16.gmra.mxu0 %v813
      %v935 = vpop.f32.mrf.mxu0
      %v936 = vadd.f32 0.0, %v935
      %v937 = vpop.f32.mrf.mxu0
      %v938 = vadd.f32 0.0, %v937
      %939 = vmatmul.bf16.gmra.mxu0 %v816
      %v940 = vpop.f32.mrf.mxu0
      %v941 = vadd.f32 0.0, %v940
      %v942 = vpop.f32.mrf.mxu0
      %943 = vdwg.mxu0
      %v944 = vadd.f32 %v923, %v936
      %v945 = vadd.f32 %v924, %v938
      %v946 = vadd.f32 %v925, %v941
      %s947 = sadd.s32 %s192, 8
      %s948 = smul.u32 %s947, 3
      %s949 = smul.addr %s948, 4
      %s950 = scalar_lea.vmem %s182, %s949
      %v951 = vld [vmem:[%s950] sm:$0xf]
      %v952 = vld [vmem:[%s950 + $0x4] sm:$0xf]
      %v953 = vld [vmem:[%s950 + $0x8] sm:$0xf]
      %v957 = vunpack.c.l.b16 %v951
      %v958 = vunpack.c.l.b16 %v952
      %v959 = vunpack.c.l.b16 %v953
      %v960 = vpack.c.b16 %v958, %v957
      %v961 = vpack.c.b16 %v959, %v959
      %v963 = vsel %vm230, %v960, 0
      %v966 = vsel %vm230, %v961, 0
      %968 = vmatpush.bf16.msra.mxu0 0
      %969 = vmatpush.bf16.msra.mxu0 0
      %970 = vmatpush.bf16.msra.mxu0 0
      %971 = vmatpush.bf16.msra.mxu0 0
      %972 = vmatpush.bf16.msra.mxu0 0
      %973 = vmatpush.bf16.msra.mxu0 0
      %974 = vmatpush.bf16.msra.mxu0 %v512
      %975 = vmatpush.bf16.msra.mxu0 %v502
      %976 = vmatmul.bf16.gmra.mxu0 %v963
      %v977 = vpop.f32.mrf.mxu0
      %v978 = vadd.f32 0.0, %v977
      %v979 = vpop.f32.mrf.mxu0
      %v980 = vadd.f32 0.0, %v979
      %981 = vmatmul.bf16.gmra.mxu0 %v966
      %v982 = vpop.f32.mrf.mxu0
      %v983 = vadd.f32 0.0, %v982
      %v984 = vpop.f32.mrf.mxu0
      %985 = vdwg.mxu0
      %v986 = vadd.f32 %v944, %v978
      %v987 = vadd.f32 %v945, %v980
      %v988 = vadd.f32 %v946, %v983
      %v989 = vadd.f32 %v986, %v537
      %v990 = vadd.f32 %v987, %v537
      %v991 = vadd.f32 %v988, %v537
      %v992 = vmax.f32 %v989, 0.0
      %v993 = vmax.f32 %v990, 0.0
      %v994 = vmax.f32 %v991, 0.0
      %v995 = vmax.f32 %v845, %v992
      %v996 = vmax.f32 %v846, %v993
      %v997 = vmax.f32 %v847, %v994
      %998 = vmatpush.bf16.msra.mxu0 0
      %999 = vmatpush.bf16.msra.mxu0 0
      %1000 = vmatpush.bf16.msra.mxu0 0
      %1001 = vmatpush.bf16.msra.mxu0 0
      %1002 = vmatpush.bf16.msra.mxu0 0
      %1003 = vmatpush.bf16.msra.mxu0 0
      %1004 = vmatpush.bf16.msra.mxu0 %v239
      %1005 = vmatpush.bf16.msra.mxu0 %v227
      %1006 = vmatmul.bf16.gmra.mxu0 %v506
      %v1007 = vpop.f32.mrf.mxu0
      %v1008 = vadd.f32 0.0, %v1007
      %v1009 = vpop.f32.mrf.mxu0
      %v1010 = vadd.f32 0.0, %v1009
      %1011 = vmatmul.bf16.gmra.mxu0 %v509
      %v1012 = vpop.f32.mrf.mxu0
      %v1013 = vadd.f32 0.0, %v1012
      %v1014 = vpop.f32.mrf.mxu0
      %1015 = vdwg.mxu0
      %1016 = vmatpush.bf16.msra.mxu0 0
      %1017 = vmatpush.bf16.msra.mxu0 0
      %1018 = vmatpush.bf16.msra.mxu0 0
      %1019 = vmatpush.bf16.msra.mxu0 0
      %1020 = vmatpush.bf16.msra.mxu0 0
      %1021 = vmatpush.bf16.msra.mxu0 0
      %1022 = vmatpush.bf16.msra.mxu0 %v283
      %1023 = vmatpush.bf16.msra.mxu0 %v273
      %1024 = vmatmul.bf16.gmra.mxu0 %v448
      %v1025 = vpop.f32.mrf.mxu0
      %v1026 = vadd.f32 %v1008, %v1025
      %v1027 = vpop.f32.mrf.mxu0
      %v1028 = vadd.f32 %v1010, %v1027
      %1029 = vmatmul.bf16.gmra.mxu0 %v451
      %v1030 = vpop.f32.mrf.mxu0
      %v1031 = vadd.f32 %v1013, %v1030
      %v1032 = vpop.f32.mrf.mxu0
      %1033 = vdwg.mxu0
      %1034 = vmatpush.bf16.msra.mxu0 0
      %1035 = vmatpush.bf16.msra.mxu0 0
      %1036 = vmatpush.bf16.msra.mxu0 0
      %1037 = vmatpush.bf16.msra.mxu0 0
      %1038 = vmatpush.bf16.msra.mxu0 0
      %1039 = vmatpush.bf16.msra.mxu0 0
      %1040 = vmatpush.bf16.msra.mxu0 %v338
      %1041 = vmatpush.bf16.msra.mxu0 %v328
      %1042 = vmatmul.bf16.gmra.mxu0 %v663
      %v1043 = vpop.f32.mrf.mxu0
      %v1044 = vadd.f32 0.0, %v1043
      %v1045 = vpop.f32.mrf.mxu0
      %v1046 = vadd.f32 0.0, %v1045
      %1047 = vmatmul.bf16.gmra.mxu0 %v666
      %v1048 = vpop.f32.mrf.mxu0
      %v1049 = vadd.f32 0.0, %v1048
      %v1050 = vpop.f32.mrf.mxu0
      %1051 = vdwg.mxu0
      %v1052 = vadd.f32 %v1026, %v1044
      %v1053 = vadd.f32 %v1028, %v1046
      %v1054 = vadd.f32 %v1031, %v1049
      %1055 = vmatpush.bf16.msra.mxu0 0
      %1056 = vmatpush.bf16.msra.mxu0 0
      %1057 = vmatpush.bf16.msra.mxu0 0
      %1058 = vmatpush.bf16.msra.mxu0 0
      %1059 = vmatpush.bf16.msra.mxu0 0
      %1060 = vmatpush.bf16.msra.mxu0 0
      %1061 = vmatpush.bf16.msra.mxu0 %v396
      %1062 = vmatpush.bf16.msra.mxu0 %v386
      %1063 = vmatmul.bf16.gmra.mxu0 %v813
      %v1064 = vpop.f32.mrf.mxu0
      %v1065 = vadd.f32 0.0, %v1064
      %v1066 = vpop.f32.mrf.mxu0
      %v1067 = vadd.f32 0.0, %v1066
      %1068 = vmatmul.bf16.gmra.mxu0 %v816
      %v1069 = vpop.f32.mrf.mxu0
      %v1070 = vadd.f32 0.0, %v1069
      %v1071 = vpop.f32.mrf.mxu0
      %1072 = vdwg.mxu0
      %v1073 = vadd.f32 %v1052, %v1065
      %v1074 = vadd.f32 %v1053, %v1067
      %v1075 = vadd.f32 %v1054, %v1070
      %1076 = vmatpush.bf16.msra.mxu0 0
      %1077 = vmatpush.bf16.msra.mxu0 0
      %1078 = vmatpush.bf16.msra.mxu0 0
      %1079 = vmatpush.bf16.msra.mxu0 0
      %1080 = vmatpush.bf16.msra.mxu0 0
      %1081 = vmatpush.bf16.msra.mxu0 0
      %1082 = vmatpush.bf16.msra.mxu0 %v454
      %1083 = vmatpush.bf16.msra.mxu0 %v444
      %1084 = vmatmul.bf16.gmra.mxu0 %v963
      %v1085 = vpop.f32.mrf.mxu0
      %v1086 = vadd.f32 0.0, %v1085
      %v1087 = vpop.f32.mrf.mxu0
      %v1088 = vadd.f32 0.0, %v1087
      %1089 = vmatmul.bf16.gmra.mxu0 %v966
      %v1090 = vpop.f32.mrf.mxu0
      %v1091 = vadd.f32 0.0, %v1090
      %v1092 = vpop.f32.mrf.mxu0
      %1093 = vdwg.mxu0
      %v1094 = vadd.f32 %v1073, %v1086
      %v1095 = vadd.f32 %v1074, %v1088
      %v1096 = vadd.f32 %v1075, %v1091
      %s1097 = sadd.s32 %s192, 9
      %s1098 = smul.u32 %s1097, 3
      %s1099 = smul.addr %s1098, 4
      %s1100 = scalar_lea.vmem %s182, %s1099
      %v1101 = vld [vmem:[%s1100] sm:$0xf]
      %v1102 = vld [vmem:[%s1100 + $0x4] sm:$0xf]
      %v1103 = vld [vmem:[%s1100 + $0x8] sm:$0xf]
      %v1107 = vunpack.c.l.b16 %v1101
      %v1108 = vunpack.c.l.b16 %v1102
      %v1109 = vunpack.c.l.b16 %v1103
      %v1110 = vpack.c.b16 %v1108, %v1107
      %v1111 = vpack.c.b16 %v1109, %v1109
      %v1113 = vsel %vm230, %v1110, 0
      %v1116 = vsel %vm230, %v1111, 0
      %1118 = vmatpush.bf16.msra.mxu0 0
      %1119 = vmatpush.bf16.msra.mxu0 0
      %1120 = vmatpush.bf16.msra.mxu0 0
      %1121 = vmatpush.bf16.msra.mxu0 0
      %1122 = vmatpush.bf16.msra.mxu0 0
      %1123 = vmatpush.bf16.msra.mxu0 0
      %1124 = vmatpush.bf16.msra.mxu0 %v512
      %1125 = vmatpush.bf16.msra.mxu0 %v502
      %1126 = vmatmul.bf16.gmra.mxu0 %v1113
      %v1127 = vpop.f32.mrf.mxu0
      %v1128 = vadd.f32 0.0, %v1127
      %v1129 = vpop.f32.mrf.mxu0
      %v1130 = vadd.f32 0.0, %v1129
      %1131 = vmatmul.bf16.gmra.mxu0 %v1116
      %v1132 = vpop.f32.mrf.mxu0
      %v1133 = vadd.f32 0.0, %v1132
      %v1134 = vpop.f32.mrf.mxu0
      %1135 = vdwg.mxu0
      %v1136 = vadd.f32 %v1094, %v1128
      %v1137 = vadd.f32 %v1095, %v1130
      %v1138 = vadd.f32 %v1096, %v1133
      %v1139 = vadd.f32 %v1136, %v537
      %v1140 = vadd.f32 %v1137, %v537
      %v1141 = vadd.f32 %v1138, %v537
      %v1142 = vmax.f32 %v1139, 0.0
      %v1143 = vmax.f32 %v1140, 0.0
      %v1144 = vmax.f32 %v1141, 0.0
      %v1145 = vmax.f32 %v995, %v1142
      %v1146 = vmax.f32 %v996, %v1143
      %v1147 = vmax.f32 %v997, %v1144
      %1148 = vmatpush.bf16.msra.mxu0 0
      %1149 = vmatpush.bf16.msra.mxu0 0
      %1150 = vmatpush.bf16.msra.mxu0 0
      %1151 = vmatpush.bf16.msra.mxu0 0
      %1152 = vmatpush.bf16.msra.mxu0 0
      %1153 = vmatpush.bf16.msra.mxu0 0
      %1154 = vmatpush.bf16.msra.mxu0 %v239
      %1155 = vmatpush.bf16.msra.mxu0 %v227
      %1156 = vmatmul.bf16.gmra.mxu0 %v663
      %v1157 = vpop.f32.mrf.mxu0
      %v1158 = vadd.f32 0.0, %v1157
      %v1159 = vpop.f32.mrf.mxu0
      %v1160 = vadd.f32 0.0, %v1159
      %1161 = vmatmul.bf16.gmra.mxu0 %v666
      %v1162 = vpop.f32.mrf.mxu0
      %v1163 = vadd.f32 0.0, %v1162
      %v1164 = vpop.f32.mrf.mxu0
      %1165 = vdwg.mxu0
      %1166 = vmatpush.bf16.msra.mxu0 0
      %1167 = vmatpush.bf16.msra.mxu0 0
      %1168 = vmatpush.bf16.msra.mxu0 0
      %1169 = vmatpush.bf16.msra.mxu0 0
      %1170 = vmatpush.bf16.msra.mxu0 0
      %1171 = vmatpush.bf16.msra.mxu0 0
      %1172 = vmatpush.bf16.msra.mxu0 %v283
      %1173 = vmatpush.bf16.msra.mxu0 %v273
      %1174 = vmatmul.bf16.gmra.mxu0 %v506
      %v1175 = vpop.f32.mrf.mxu0
      %v1176 = vadd.f32 %v1158, %v1175
      %v1177 = vpop.f32.mrf.mxu0
      %v1178 = vadd.f32 %v1160, %v1177
      %1179 = vmatmul.bf16.gmra.mxu0 %v509
      %v1180 = vpop.f32.mrf.mxu0
      %v1181 = vadd.f32 %v1163, %v1180
      %v1182 = vpop.f32.mrf.mxu0
      %1183 = vdwg.mxu0
      %1184 = vmatpush.bf16.msra.mxu0 0
      %1185 = vmatpush.bf16.msra.mxu0 0
      %1186 = vmatpush.bf16.msra.mxu0 0
      %1187 = vmatpush.bf16.msra.mxu0 0
      %1188 = vmatpush.bf16.msra.mxu0 0
      %1189 = vmatpush.bf16.msra.mxu0 0
      %1190 = vmatpush.bf16.msra.mxu0 %v338
      %1191 = vmatpush.bf16.msra.mxu0 %v328
      %1192 = vmatmul.bf16.gmra.mxu0 %v813
      %v1193 = vpop.f32.mrf.mxu0
      %v1194 = vadd.f32 0.0, %v1193
      %v1195 = vpop.f32.mrf.mxu0
      %v1196 = vadd.f32 0.0, %v1195
      %1197 = vmatmul.bf16.gmra.mxu0 %v816
      %v1198 = vpop.f32.mrf.mxu0
      %v1199 = vadd.f32 0.0, %v1198
      %v1200 = vpop.f32.mrf.mxu0
      %1201 = vdwg.mxu0
      %v1202 = vadd.f32 %v1176, %v1194
      %v1203 = vadd.f32 %v1178, %v1196
      %v1204 = vadd.f32 %v1181, %v1199
      %1205 = vmatpush.bf16.msra.mxu0 0
      %1206 = vmatpush.bf16.msra.mxu0 0
      %1207 = vmatpush.bf16.msra.mxu0 0
      %1208 = vmatpush.bf16.msra.mxu0 0
      %1209 = vmatpush.bf16.msra.mxu0 0
      %1210 = vmatpush.bf16.msra.mxu0 0
      %1211 = vmatpush.bf16.msra.mxu0 %v396
      %1212 = vmatpush.bf16.msra.mxu0 %v386
      %1213 = vmatmul.bf16.gmra.mxu0 %v963
      %v1214 = vpop.f32.mrf.mxu0
      %v1215 = vadd.f32 0.0, %v1214
      %v1216 = vpop.f32.mrf.mxu0
      %v1217 = vadd.f32 0.0, %v1216
      %1218 = vmatmul.bf16.gmra.mxu0 %v966
      %v1219 = vpop.f32.mrf.mxu0
      %v1220 = vadd.f32 0.0, %v1219
      %v1221 = vpop.f32.mrf.mxu0
      %1222 = vdwg.mxu0
      %v1223 = vadd.f32 %v1202, %v1215
      %v1224 = vadd.f32 %v1203, %v1217
      %v1225 = vadd.f32 %v1204, %v1220
      %1226 = vmatpush.bf16.msra.mxu0 0
      %1227 = vmatpush.bf16.msra.mxu0 0
      %1228 = vmatpush.bf16.msra.mxu0 0
      %1229 = vmatpush.bf16.msra.mxu0 0
      %1230 = vmatpush.bf16.msra.mxu0 0
      %1231 = vmatpush.bf16.msra.mxu0 0
      %1232 = vmatpush.bf16.msra.mxu0 %v454
      %1233 = vmatpush.bf16.msra.mxu0 %v444
      %1234 = vmatmul.bf16.gmra.mxu0 %v1113
      %v1235 = vpop.f32.mrf.mxu0
      %v1236 = vadd.f32 0.0, %v1235
      %v1237 = vpop.f32.mrf.mxu0
      %v1238 = vadd.f32 0.0, %v1237
      %1239 = vmatmul.bf16.gmra.mxu0 %v1116
      %v1240 = vpop.f32.mrf.mxu0
      %v1241 = vadd.f32 0.0, %v1240
      %v1242 = vpop.f32.mrf.mxu0
      %1243 = vdwg.mxu0
      %v1244 = vadd.f32 %v1223, %v1236
      %v1245 = vadd.f32 %v1224, %v1238
      %v1246 = vadd.f32 %v1225, %v1241
      %s1247 = sadd.s32 %s192, 10
      %s1248 = smul.u32 %s1247, 3
      %s1249 = smul.addr %s1248, 4
      %s1250 = scalar_lea.vmem %s182, %s1249
      %v1251 = vld [vmem:[%s1250] sm:$0xf]
      %v1252 = vld [vmem:[%s1250 + $0x4] sm:$0xf]
      %v1253 = vld [vmem:[%s1250 + $0x8] sm:$0xf]
      %v1257 = vunpack.c.l.b16 %v1251
      %v1258 = vunpack.c.l.b16 %v1252
      %v1259 = vunpack.c.l.b16 %v1253
      %v1260 = vpack.c.b16 %v1258, %v1257
      %v1261 = vpack.c.b16 %v1259, %v1259
      %v1263 = vsel %vm230, %v1260, 0
      %v1266 = vsel %vm230, %v1261, 0
      %1268 = vmatpush.bf16.msra.mxu0 0
      %1269 = vmatpush.bf16.msra.mxu0 0
      %1270 = vmatpush.bf16.msra.mxu0 0
      %1271 = vmatpush.bf16.msra.mxu0 0
      %1272 = vmatpush.bf16.msra.mxu0 0
      %1273 = vmatpush.bf16.msra.mxu0 0
      %1274 = vmatpush.bf16.msra.mxu0 %v512
      %1275 = vmatpush.bf16.msra.mxu0 %v502
      %1276 = vmatmul.bf16.gmra.mxu0 %v1263
      %v1277 = vpop.f32.mrf.mxu0
      %v1278 = vadd.f32 0.0, %v1277
      %v1279 = vpop.f32.mrf.mxu0
      %v1280 = vadd.f32 0.0, %v1279
      %1281 = vmatmul.bf16.gmra.mxu0 %v1266
      %v1282 = vpop.f32.mrf.mxu0
      %v1283 = vadd.f32 0.0, %v1282
      %v1284 = vpop.f32.mrf.mxu0
      %1285 = vdwg.mxu0
      %v1286 = vadd.f32 %v1244, %v1278
      %v1287 = vadd.f32 %v1245, %v1280
      %v1288 = vadd.f32 %v1246, %v1283
      %v1289 = vadd.f32 %v1286, %v537
      %v1290 = vadd.f32 %v1287, %v537
      %v1291 = vadd.f32 %v1288, %v537
      %v1292 = vmax.f32 %v1289, 0.0
      %v1293 = vmax.f32 %v1290, 0.0
      %v1294 = vmax.f32 %v1291, 0.0
      %v1295 = vmax.f32 %v1145, %v1292
      %v1296 = vmax.f32 %v1146, %v1293
      %v1297 = vmax.f32 %v1147, %v1294
      %1298 = vst [vmem:[#allocation2] sm:$0xff] %v1295
      %1299 = vst [vmem:[#allocation2 + $0x8] sm:$0xff] %v1296
      %1300 = vst [vmem:[#allocation2 + $0x10] sm:$0xff] %v1297
      %v1301 = vld [vmem:[#allocation2] ss:$3 sm:$0xff]
      %s1302 = scalar_lea.vmem [#allocation2], 1
      %v1303 = vld [vmem:[%s1302] ss:$3 sm:$0xff]
      %v1304 = vmax.f32 %v1301, %v1303
      %s1305 = scalar_lea.vmem [#allocation2], 2
      %v1306 = vld [vmem:[%s1305] ss:$3 sm:$0xff]
      %v1307 = vmax.f32 %v1304, %v1306
      %v1308 = vpack.c.bf16 %v1307, %v1307
      %1309 = vst [vmem:[%s190] sm:$0xf] %v1308
      %p1310 = scmp.lt.s32.totalorder %s18, 1
      %s1311 = scalar_select %p1310, %s18, 1
      %p1312 = scmp.lt.s32.totalorder %s19, 3
      %s1313 = scalar_select %p1312, %s19, 3
      %s1314 = smul.addr %s1311, 4
      %s1315 = sadd.s32 %s1313, %s1314
      %s1316 = smul.addr %s1315, 4
      %s1317 = scalar_lea.vmem %s3, %s1316
      // Predicated region
      $region33: #{usg_forward.3} parent=31 // pred_check
        %p1318 = pneg %p114
      $region34: #{usg_forward.3} parent=31 // pred_check_branch
        %1320 = sbr.rel (%p1318) target = $region36
      $region35: #{usg_forward.3} parent=31 // pred_region
        _
      $region36: #{usg_forward.3} parent=31 // pred_fallthru
        _
    $region32: #{usg_forward.3} parent=5 // pred_fallthru
      _
    %p1321 = scmp.le.s32.totalorder 2, %s9
    // Predicated region
    $region37: #{usg_forward.3} parent=5 // pred_check
      %p1322 = pneg %p1321
    $region38: #{usg_forward.3} parent=5 // pred_check_branch
      %1324 = sbr.rel (%p1322) target = $region40
    $region39: #{usg_forward.3} parent=5 // pred_region
      %s1325 = ssub.s32 %s9, 2
      // Predicated region
      $region41: #{usg_forward.3} parent=39 // pred_check
        %p1326 = pneg %p120
      $region42: #{usg_forward.3} parent=39 // pred_check_branch
        %1328 = sbr.rel (%p1326) target = $region44
      $region43: #{usg_forward.3} parent=39 // pred_region
        %p1329 = scmp.lt.s32.totalorder %s20, 1
        %s1330 = scalar_select %p1329, %s20, 1
        %p1331 = scmp.lt.s32.totalorder %s21, 3
        %s1332 = scalar_select %p1331, %s21, 3
        %s1333 = smul.addr %s1330, 4
        %s1334 = sadd.s32 %s1332, %s1333
        %s1335 = smul.addr %s1334, 4
        %s1336 = scalar_lea.vmem %s3, %s1335
      $region44: #{usg_forward.3} parent=39 // pred_fallthru
        _
    $region40: #{usg_forward.3} parent=5 // pred_fallthru
      _
  $region6: #{usg_forward.3} parent=0 // loop_footer
    %s13 = sadd.s32 1, %s9
  $region7: #{usg_forward.3} parent=0 // loop_footer_branch
    %8 = sbr.rel target = $region3
  $region8: #{usg_forward.3} parent=0 // loop_exit
    _

// kernel: usg_forward.4
$region0: #{usg_forward.4}
  #allocation0 [shape = 'u32[]', space=smem, size = 0x4, offset = 0x4, fixed_abs, tag = 'smem constant byte address 0x4 - core index']
  #allocation1 [shape = 'u32[72,128]{1,0:T(1,128)}', space=vmem, size = 0x9000, scoped, tag = 'internal scratch']
  %s0 = inlined_call_operand.vmem [shape: bf16[2,4,8,128], index: 0, kind: input, shape index: {}]
  %s1 = inlined_call_operand.vmem [shape: bf16[18,128,128], index: 1, kind: input, shape index: {}]
  %s2 = inlined_call_operand.vmem [shape: f32[1,128], index: 2, kind: input, shape index: {}]
  %s3 = inlined_call_operand.vmem [shape: bf16[2,2,3,128], index: 3, kind: output, shape index: {}]
  %s4 = sld [smem:[#allocation0]]
  $region45: #{usg_forward.4} parent=0
    _
  %s6 = ssub.s32 1, %s4
  %s7 = scalar_select 0, %s6, %s4
  loop: start=0, step=1, limit=6
  $region2: #{usg_forward.4} parent=0 // loop_pre_header
    _
  $region3: #{usg_forward.4} parent=0 // loop_header
    %s9 = sphi 0, %s13
    %p10 = scmp.ge.s32.totalorder %s9, 6
    %s16 = sphi 0, %s28
    %s17 = sphi 0, %s24
    %s18 = sphi 0, %s16
    %s19 = sphi 0, %s17
    %s20 = sphi 0, %s18
    %s21 = sphi 0, %s19
    %s31 = sphi 0, %s33
    %s34 = sphi 0, %s31
    %s35 = sphi 0, %s34
    %s51 = sphi 0, %s35
    %s55 = sphi 0, %s55
    %s57 = sphi 0, %s55
    %s58 = sphi 0, %s57
    %s72 = sphi 0, %s58
    %s76 = sphi 0, %s76
    %s78 = sphi 0, %s76
    %s79 = sphi 0, %s78
    %s93 = sphi 0, %s79
    %s101 = sphi 0, %s103
    %s104 = sphi 0, %s101
    %s105 = sphi 0, %s104
    %s121 = sphi 0, %s105
  $region4: #{usg_forward.4} parent=0 // loop_header_branch
    %12 = sbr.rel (%p10) target = $region8
  $region5: #{usg_forward.4} parent=0 // loop_body
    %s14 = ssub.s32 %s9, 1
    %s15 = ssub.s32 %s9, 2
    %s22 = sadd.s32 1, %s17
    %p23 = scmp.ge.s32.totalorder %s22, 2
    %s24 = scalar_select %p23, 0, %s22
    %s25 = sadd.s32 1, %s16
    %s26 = scalar_select %p23, %s25, %s16
    %p27 = scmp.ge.s32.totalorder %s26, 2
    %s28 = scalar_select %p27, 0, %s26
    %s29 = ssub.s32 %s16, %s28
    %p30 = scmp.eq.s32.totalorder %s29, 0
    %s32 = sadd.s32 %s31, 1
    %s33 = scalar_select %p30, %s31, %s32
    %p36 = pneg %p30
    %p37 = scmp.eq.s32.totalorder %s9, 3
    %p38 = por %p36, %p37
    %p39 = scmp.ne.s32.totalorder %s31, %s34
    %p40 = scmp.eq.s32.totalorder %s9, 0
    %p41 = por %p39, %p40
    %p42 = scmp.ne.s32.totalorder %s31, %s34
    %p43 = scmp.eq.s32.totalorder %s14, 3
    %p44 = por %p42, %p43
    %p45 = scmp.ne.s32.totalorder %s34, %s35
    %p46 = scmp.eq.s32.totalorder %s14, 0
    %p47 = por %p45, %p46
    %p48 = scmp.ne.s32.totalorder %s34, %s35
    %p49 = scmp.eq.s32.totalorder %s15, 3
    %p50 = por %p48, %p49
    %p52 = scmp.ne.s32.totalorder %s35, %s51
    %p53 = scmp.eq.s32.totalorder %s15, 0
    %p54 = por %p52, %p53
    %s56 = sadd.s32 %s55, 1
    %p59 = scmp.eq.s32.totalorder %s9, 3
    %p60 = scmp.ne.s32.totalorder %s55, %s57
    %p61 = scmp.eq.s32.totalorder %s9, 0
    %p62 = por %p60, %p61
    %p63 = scmp.ne.s32.totalorder %s55, %s57
    %p64 = scmp.eq.s32.totalorder %s14, 3
    %p65 = por %p63, %p64
    %p66 = scmp.ne.s32.totalorder %s57, %s58
    %p67 = scmp.eq.s32.totalorder %s14, 0
    %p68 = por %p66, %p67
    %p69 = scmp.ne.s32.totalorder %s57, %s58
    %p70 = scmp.eq.s32.totalorder %s15, 3
    %p71 = por %p69, %p70
    %p73 = scmp.ne.s32.totalorder %s58, %s72
    %p74 = scmp.eq.s32.totalorder %s15, 0
    %p75 = por %p73, %p74
    %s77 = sadd.s32 %s76, 1
    %p80 = scmp.eq.s32.totalorder %s9, 3
    %p81 = scmp.ne.s32.totalorder %s76, %s78
    %p82 = scmp.eq.s32.totalorder %s9, 0
    %p83 = por %p81, %p82
    %p84 = scmp.ne.s32.totalorder %s76, %s78
    %p85 = scmp.eq.s32.totalorder %s14, 3
    %p86 = por %p84, %p85
    %p87 = scmp.ne.s32.totalorder %s78, %s79
    %p88 = scmp.eq.s32.totalorder %s14, 0
    %p89 = por %p87, %p88
    %p90 = scmp.ne.s32.totalorder %s78, %s79
    %p91 = scmp.eq.s32.totalorder %s15, 3
    %p92 = por %p90, %p91
    %p94 = scmp.ne.s32.totalorder %s79, %s93
    %p95 = scmp.eq.s32.totalorder %s15, 0
    %p96 = por %p94, %p95
    %s97 = ssub.s32 %s16, %s28
    %s98 = ssub.s32 %s17, %s24
    %s99 = sor.u32 %s97, %s98
    %p100 = scmp.eq.s32.totalorder %s99, 0
    %s102 = sadd.s32 %s101, 1
    %s103 = scalar_select %p100, %s101, %s102
    %p106 = pneg %p100
    %p107 = scmp.eq.s32.totalorder %s9, 3
    %p108 = por %p106, %p107
    %p109 = scmp.ne.s32.totalorder %s101, %s104
    %p110 = scmp.eq.s32.totalorder %s9, 0
    %p111 = por %p109, %p110
    %p112 = scmp.ne.s32.totalorder %s101, %s104
    %p113 = scmp.eq.s32.totalorder %s14, 3
    %p114 = por %p112, %p113
    %p115 = scmp.ne.s32.totalorder %s104, %s105
    %p116 = scmp.eq.s32.totalorder %s14, 0
    %p117 = por %p115, %p116
    %p118 = scmp.ne.s32.totalorder %s104, %s105
    %p119 = scmp.eq.s32.totalorder %s15, 3
    %p120 = por %p118, %p119
    %p122 = scmp.ne.s32.totalorder %s105, %s121
    %p123 = scmp.eq.s32.totalorder %s15, 0
    %p124 = por %p122, %p123
    %p125 = scmp.le.s32.totalorder 1, %s9
    %p126 = scmp.lt.s32.totalorder %s9, 5
    %p127 = pnand %p125, %p126
    %p128 = pneg %p127
    // Predicated region
    $region9: #{usg_forward.4} parent=5 // pred_check
      _
    $region10: #{usg_forward.4} parent=5 // pred_check_branch
      %130 = sbr.rel (%p127) target = $region12
    $region11: #{usg_forward.4} parent=5 // pred_region
      %s131 = ssub.s32 %s9, 1
      // Predicated region
      $region13: #{usg_forward.4} parent=11 // pred_check
        %p132 = pneg %p68
      $region14: #{usg_forward.4} parent=11 // pred_check_branch
        %134 = sbr.rel (%p132) target = $region16
      $region15: #{usg_forward.4} parent=11 // pred_region
        _
      $region16: #{usg_forward.4} parent=11 // pred_fallthru
        _
      // Predicated region
      $region17: #{usg_forward.4} parent=11 // pred_check
        %p135 = pneg %p89
      $region18: #{usg_forward.4} parent=11 // pred_check_branch
        %137 = sbr.rel (%p135) target = $region20
      $region19: #{usg_forward.4} parent=11 // pred_region
        _
      $region20: #{usg_forward.4} parent=11 // pred_fallthru
        _
    $region12: #{usg_forward.4} parent=5 // pred_fallthru
      _
    %p138 = scmp.lt.s32.totalorder %s9, 4
    // Predicated region
    $region21: #{usg_forward.4} parent=5 // pred_check
      %p139 = pneg %p138
    $region22: #{usg_forward.4} parent=5 // pred_check_branch
      %141 = sbr.rel (%p139) target = $region24
    $region23: #{usg_forward.4} parent=5 // pred_region
      // Predicated region
      $region25: #{usg_forward.4} parent=23 // pred_check
        %p142 = pneg %p41
      $region26: #{usg_forward.4} parent=23 // pred_check_branch
        %144 = sbr.rel (%p142) target = $region28
      $region27: #{usg_forward.4} parent=23 // pred_region
        %p145 = scmp.lt.s32.totalorder %s16, 1
        %s146 = scalar_select %p145, %s16, 1
        %s147 = smul.addr %s146, 4
        %s148 = smul.addr %s147, 4
        %s149 = scalar_lea.vmem %s0, %s148
      $region28: #{usg_forward.4} parent=23 // pred_fallthru
        _
    $region24: #{usg_forward.4} parent=5 // pred_fallthru
      _
    %p150 = scmp.le.s32.totalorder 1, %s9
    %p151 = scmp.lt.s32.totalorder %s9, 5
    %p152 = pnand %p150, %p151
    %p153 = pneg %p152
    // Predicated region
    $region29: #{usg_forward.4} parent=5 // pred_check
      _
    $region30: #{usg_forward.4} parent=5 // pred_check_branch
      %155 = sbr.rel (%p152) target = $region32
    $region31: #{usg_forward.4} parent=5 // pred_region
      %s156 = ssub.s32 %s9, 1
      %p157 = scmp.lt.s32.totalorder %s18, 1
      %s158 = scalar_select %p157, %s18, 1
      %s159 = smul.addr %s158, 4
      %s160 = smul.addr %s159, 4
      %s161 = scalar_lea.vmem %s0, %s160
      %p162 = pneg %p47
      %p163 = pneg %p44
      %p164 = pneg %p68
      %p165 = pneg %p65
      %p166 = pneg %p89
      %p167 = pneg %p86
      %p168 = pneg %p117
      %p169 = pneg %p114
      %p170 = scmp.lt.s32.totalorder %s18, 1
      %s171 = scalar_select %p170, %s18, 1
      %p172 = scmp.lt.s32.totalorder %s19, 1
      %s173 = scalar_select %p172, %s19, 1
      %s174 = smul.addr %s171, 2
      %s175 = sadd.s32 %s173, %s174
      %s176 = smul.addr %s175, 2
      %s177 = scalar_lea.vmem %s3, %s176
      %p178 = scmp.lt.s32.totalorder %s18, 1
      %s179 = scalar_select %p178, %s18, 1
      %s180 = smul.addr %s179, 4
      %s181 = smul.addr %s180, 4
      %s182 = scalar_lea.vmem %s0, %s181
      %p183 = scmp.lt.s32.totalorder %s18, 1
      %s184 = scalar_select %p183, %s18, 1
      %p185 = scmp.lt.s32.totalorder %s19, 1
      %s186 = scalar_select %p185, %s19, 1
      %s187 = smul.addr %s184, 2
      %s188 = sadd.s32 %s186, %s187
      %s189 = smul.addr %s188, 2
      %s190 = scalar_lea.vmem %s3, %s189
      %s191 = smul.addr %s19, 4
      %s192 = scalar_lea.vmem %s182, %s191
      %v193 = vld [vmem:[%s192] sm:$0x3]
      %v194 = vld [vmem:[%s1] sm:$0xf]
      %v195 = vld [vmem:[%s1 + $0x4] sm:$0xf]
      %v196 = vld [vmem:[%s1 + $0x8] sm:$0xf]
      %v197 = vld [vmem:[%s1 + $0xc] sm:$0xf]
      %v198 = vld [vmem:[%s1 + $0x10] sm:$0xf]
      %v199 = vld [vmem:[%s1 + $0x14] sm:$0xf]
      %v200 = vld [vmem:[%s1 + $0x18] sm:$0xf]
      %v201 = vld [vmem:[%s1 + $0x1c] sm:$0xf]
      %v202 = vld [vmem:[%s1 + $0x20] sm:$0xf]
      %v203 = vld [vmem:[%s1 + $0x24] sm:$0xf]
      %v204 = vld [vmem:[%s1 + $0x28] sm:$0xf]
      %v205 = vld [vmem:[%s1 + $0x2c] sm:$0xf]
      %v206 = vld [vmem:[%s1 + $0x30] sm:$0xf]
      %v207 = vld [vmem:[%s1 + $0x34] sm:$0xf]
      %v208 = vld [vmem:[%s1 + $0x38] sm:$0xf]
      %v209 = vld [vmem:[%s1 + $0x3c] sm:$0xf]
      %s210 = scalar_lea.vmem %s1, 64
      %v211 = vld [vmem:[%s210] sm:$0xf]
      %v212 = vld [vmem:[%s210 + $0x4] sm:$0xf]
      %v213 = vld [vmem:[%s210 + $0x8] sm:$0xf]
      %v214 = vld [vmem:[%s210 + $0xc] sm:$0xf]
      %v215 = vld [vmem:[%s210 + $0x10] sm:$0xf]
      %v216 = vld [vmem:[%s210 + $0x14] sm:$0xf]
      %v217 = vld [vmem:[%s210 + $0x18] sm:$0xf]
      %v218 = vld [vmem:[%s210 + $0x1c] sm:$0xf]
      %v219 = vld [vmem:[%s210 + $0x20] sm:$0xf]
      %v220 = vld [vmem:[%s210 + $0x24] sm:$0xf]
      %v221 = vld [vmem:[%s210 + $0x28] sm:$0xf]
      %v222 = vld [vmem:[%s210 + $0x2c] sm:$0xf]
      %v223 = vld [vmem:[%s210 + $0x30] sm:$0xf]
      %v224 = vld [vmem:[%s210 + $0x34] sm:$0xf]
      %v225 = vld [vmem:[%s210 + $0x38] sm:$0xf]
      %v226 = vld [vmem:[%s210 + $0x3c] sm:$0xf]
      %v228 = vunpack.c.l.b16 %v193
      %v229 = vpack.c.b16 %v228, %v228
      %v231 = vshrl.u32 %v229, 16
      %v233 = vshll.u32 %v229, 16
      %v235 = vrot.slane %v233, 1
      %v236 = vor.u32 %v231, %v235
      %v254 = vunpack.c.l.b16 %v211
      %v255 = vunpack.c.l.b16 %v212
      %v256 = vunpack.c.l.b16 %v213
      %v257 = vunpack.c.l.b16 %v214
      %v258 = vunpack.c.l.b16 %v215
      %v259 = vunpack.c.l.b16 %v216
      %v260 = vunpack.c.l.b16 %v217
      %v261 = vunpack.c.l.b16 %v218
      %v262 = vunpack.c.l.b16 %v219
      %v263 = vunpack.c.l.b16 %v220
      %v264 = vunpack.c.l.b16 %v221
      %v265 = vunpack.c.l.b16 %v222
      %v266 = vunpack.c.l.b16 %v223
      %v267 = vunpack.c.l.b16 %v224
      %v268 = vunpack.c.l.b16 %v225
      %v269 = vunpack.c.l.b16 %v226
      %v270 = vpack.c.b16 %v255, %v254
      %v271 = vpack.c.b16 %v257, %v256
      %v272 = vpack.c.b16 %v259, %v258
      %v273 = vpack.c.b16 %v261, %v260
      %v274 = vpack.c.b16 %v263, %v262
      %v275 = vpack.c.b16 %v265, %v264
      %v276 = vpack.c.b16 %v267, %v266
      %v277 = vpack.c.b16 %v269, %v268
      %286 = vmatpush.bf16.msra.mxu0 %v277
      %287 = vmatpush.bf16.msra.mxu0 %v276
      %288 = vmatpush.bf16.msra.mxu0 %v275
      %289 = vmatpush.bf16.msra.mxu0 %v274
      %290 = vmatpush.bf16.msra.mxu0 %v273
      %291 = vmatpush.bf16.msra.mxu0 %v272
      %292 = vmatpush.bf16.msra.mxu0 %v271
      %293 = vmatpush.bf16.msra.mxu0 %v270
      %294 = vmatmul.bf16.gmra.mxu0 %v236
      %v295 = vpop.f32.mrf.mxu0
      %v296 = vadd.f32 0.0, %v295
      %v297 = vpop.f32.mrf.mxu0
      %298 = vdwg.mxu0
      %v315 = vunpack.c.l.b16 %v194
      %v316 = vunpack.c.l.b16 %v195
      %v317 = vunpack.c.l.b16 %v196
      %v318 = vunpack.c.l.b16 %v197
      %v319 = vunpack.c.l.b16 %v198
      %v320 = vunpack.c.l.b16 %v199
      %v321 = vunpack.c.l.b16 %v200
      %v322 = vunpack.c.l.b16 %v201
      %v323 = vunpack.c.l.b16 %v202
      %v324 = vunpack.c.l.b16 %v203
      %v325 = vunpack.c.l.b16 %v204
      %v326 = vunpack.c.l.b16 %v205
      %v327 = vunpack.c.l.b16 %v206
      %v328 = vunpack.c.l.b16 %v207
      %v329 = vunpack.c.l.b16 %v208
      %v330 = vunpack.c.l.b16 %v209
      %v331 = vpack.c.b16 %v316, %v315
      %v332 = vpack.c.b16 %v318, %v317
      %v333 = vpack.c.b16 %v320, %v319
      %v334 = vpack.c.b16 %v322, %v321
      %v335 = vpack.c.b16 %v324, %v323
      %v336 = vpack.c.b16 %v326, %v325
      %v337 = vpack.c.b16 %v328, %v327
      %v338 = vpack.c.b16 %v330, %v329
      %347 = vmatpush.bf16.msra.mxu0 %v338
      %348 = vmatpush.bf16.msra.mxu0 %v337
      %349 = vmatpush.bf16.msra.mxu0 %v336
      %350 = vmatpush.bf16.msra.mxu0 %v335
      %351 = vmatpush.bf16.msra.mxu0 %v334
      %352 = vmatpush.bf16.msra.mxu0 %v333
      %353 = vmatpush.bf16.msra.mxu0 %v332
      %354 = vmatpush.bf16.msra.mxu0 %v331
      %355 = vmatmul.bf16.gmra.mxu0 %v193
      %v356 = vpop.f32.mrf.mxu0
      %v357 = vadd.f32 %v296, %v356
      %v358 = vpop.f32.mrf.mxu0
      %359 = vdwg.mxu0
      %v360 = vld [vmem:[%s192] sm:$0x6]
      %s361 = scalar_lea.vmem %s1, 128
      %v362 = vld [vmem:[%s361] sm:$0xf]
      %v363 = vld [vmem:[%s361 + $0x4] sm:$0xf]
      %v364 = vld [vmem:[%s361 + $0x8] sm:$0xf]
      %v365 = vld [vmem:[%s361 + $0xc] sm:$0xf]
      %v366 = vld [vmem:[%s361 + $0x10] sm:$0xf]
      %v367 = vld [vmem:[%s361 + $0x14] sm:$0xf]
      %v368 = vld [vmem:[%s361 + $0x18] sm:$0xf]
      %v369 = vld [vmem:[%s361 + $0x1c] sm:$0xf]
      %v370 = vld [vmem:[%s361 + $0x20] sm:$0xf]
      %v371 = vld [vmem:[%s361 + $0x24] sm:$0xf]
      %v372 = vld [vmem:[%s361 + $0x28] sm:$0xf]
      %v373 = vld [vmem:[%s361 + $0x2c] sm:$0xf]
      %v374 = vld [vmem:[%s361 + $0x30] sm:$0xf]
      %v375 = vld [vmem:[%s361 + $0x34] sm:$0xf]
      %v376 = vld [vmem:[%s361 + $0x38] sm:$0xf]
      %v377 = vld [vmem:[%s361 + $0x3c] sm:$0xf]
      %v379 = vunpack.c.l.b16 %v360
      %v380 = vpack.c.b16 %v379, %v379
      %v381 = vrot.slane %v380, 1
      %v399 = vunpack.c.l.b16 %v362
      %v400 = vunpack.c.l.b16 %v363
      %v401 = vunpack.c.l.b16 %v364
      %v402 = vunpack.c.l.b16 %v365
      %v403 = vunpack.c.l.b16 %v366
      %v404 = vunpack.c.l.b16 %v367
      %v405 = vunpack.c.l.b16 %v368
      %v406 = vunpack.c.l.b16 %v369
      %v407 = vunpack.c.l.b16 %v370
      %v408 = vunpack.c.l.b16 %v371
      %v409 = vunpack.c.l.b16 %v372
      %v410 = vunpack.c.l.b16 %v373
      %v411 = vunpack.c.l.b16 %v374
      %v412 = vunpack.c.l.b16 %v375
      %v413 = vunpack.c.l.b16 %v376
      %v414 = vunpack.c.l.b16 %v377
      %v415 = vpack.c.b16 %v400, %v399
      %v416 = vpack.c.b16 %v402, %v401
      %v417 = vpack.c.b16 %v404, %v403
      %v418 = vpack.c.b16 %v406, %v405
      %v419 = vpack.c.b16 %v408, %v407
      %v420 = vpack.c.b16 %v410, %v409
      %v421 = vpack.c.b16 %v412, %v411
      %v422 = vpack.c.b16 %v414, %v413
      %431 = vmatpush.bf16.msra.mxu0 %v422
      %432 = vmatpush.bf16.msra.mxu0 %v421
      %433 = vmatpush.bf16.msra.mxu0 %v420
      %434 = vmatpush.bf16.msra.mxu0 %v419
      %435 = vmatpush.bf16.msra.mxu0 %v418
      %436 = vmatpush.bf16.msra.mxu0 %v417
      %437 = vmatpush.bf16.msra.mxu0 %v416
      %438 = vmatpush.bf16.msra.mxu0 %v415
      %439 = vmatmul.bf16.gmra.mxu0 %v381
      %v440 = vpop.f32.mrf.mxu0
      %v441 = vadd.f32 0.0, %v440
      %v442 = vpop.f32.mrf.mxu0
      %443 = vdwg.mxu0
      %v444 = vadd.f32 %v357, %v441
      %s445 = scalar_lea.vmem %s1, 192
      %v446 = vld [vmem:[%s445] sm:$0xf]
      %v447 = vld [vmem:[%s445 + $0x4] sm:$0xf]
      %v448 = vld [vmem:[%s445 + $0x8] sm:$0xf]
      %v449 = vld [vmem:[%s445 + $0xc] sm:$0xf]
      %v450 = vld [vmem:[%s445 + $0x10] sm:$0xf]
      %v451 = vld [vmem:[%s445 + $0x14] sm:$0xf]
      %v452 = vld [vmem:[%s445 + $0x18] sm:$0xf]
      %v453 = vld [vmem:[%s445 + $0x1c] sm:$0xf]
      %v454 = vld [vmem:[%s445 + $0x20] sm:$0xf]
      %v455 = vld [vmem:[%s445 + $0x24] sm:$0xf]
      %v456 = vld [vmem:[%s445 + $0x28] sm:$0xf]
      %v457 = vld [vmem:[%s445 + $0x2c] sm:$0xf]
      %v458 = vld [vmem:[%s445 + $0x30] sm:$0xf]
      %v459 = vld [vmem:[%s445 + $0x34] sm:$0xf]
      %v460 = vld [vmem:[%s445 + $0x38] sm:$0xf]
      %v461 = vld [vmem:[%s445 + $0x3c] sm:$0xf]
      %v463 = vshrl.u32 %v380, 16
      %v465 = vrot.slane %v463, 1
      %v466 = vshll.u32 %v380, 16
      %v468 = vrot.slane %v466, 2
      %v469 = vor.u32 %v465, %v468
      %v487 = vunpack.c.l.b16 %v446
      %v488 = vunpack.c.l.b16 %v447
      %v489 = vunpack.c.l.b16 %v448
      %v490 = vunpack.c.l.b16 %v449
      %v491 = vunpack.c.l.b16 %v450
      %v492 = vunpack.c.l.b16 %v451
      %v493 = vunpack.c.l.b16 %v452
      %v494 = vunpack.c.l.b16 %v453
      %v495 = vunpack.c.l.b16 %v454
      %v496 = vunpack.c.l.b16 %v455
      %v497 = vunpack.c.l.b16 %v456
      %v498 = vunpack.c.l.b16 %v457
      %v499 = vunpack.c.l.b16 %v458
      %v500 = vunpack.c.l.b16 %v459
      %v501 = vunpack.c.l.b16 %v460
      %v502 = vunpack.c.l.b16 %v461
      %v503 = vpack.c.b16 %v488, %v487
      %v504 = vpack.c.b16 %v490, %v489
      %v505 = vpack.c.b16 %v492, %v491
      %v506 = vpack.c.b16 %v494, %v493
      %v507 = vpack.c.b16 %v496, %v495
      %v508 = vpack.c.b16 %v498, %v497
      %v509 = vpack.c.b16 %v500, %v499
      %v510 = vpack.c.b16 %v502, %v501
      %519 = vmatpush.bf16.msra.mxu0 %v510
      %520 = vmatpush.bf16.msra.mxu0 %v509
      %521 = vmatpush.bf16.msra.mxu0 %v508
      %522 = vmatpush.bf16.msra.mxu0 %v507
      %523 = vmatpush.bf16.msra.mxu0 %v506
      %524 = vmatpush.bf16.msra.mxu0 %v505
      %525 = vmatpush.bf16.msra.mxu0 %v504
      %526 = vmatpush.bf16.msra.mxu0 %v503
      %527 = vmatmul.bf16.gmra.mxu0 %v469
      %v528 = vpop.f32.mrf.mxu0
      %v529 = vadd.f32 0.0, %v528
      %v530 = vpop.f32.mrf.mxu0
      %531 = vdwg.mxu0
      %v532 = vadd.f32 %v444, %v529
      %v533 = vld [vmem:[%s192] sm:$0xc]
      %s534 = scalar_lea.vmem %s1, 256
      %v535 = vld [vmem:[%s534] sm:$0xf]
      %v536 = vld [vmem:[%s534 + $0x4] sm:$0xf]
      %v537 = vld [vmem:[%s534 + $0x8] sm:$0xf]
      %v538 = vld [vmem:[%s534 + $0xc] sm:$0xf]
      %v539 = vld [vmem:[%s534 + $0x10] sm:$0xf]
      %v540 = vld [vmem:[%s534 + $0x14] sm:$0xf]
      %v541 = vld [vmem:[%s534 + $0x18] sm:$0xf]
      %v542 = vld [vmem:[%s534 + $0x1c] sm:$0xf]
      %v543 = vld [vmem:[%s534 + $0x20] sm:$0xf]
      %v544 = vld [vmem:[%s534 + $0x24] sm:$0xf]
      %v545 = vld [vmem:[%s534 + $0x28] sm:$0xf]
      %v546 = vld [vmem:[%s534 + $0x2c] sm:$0xf]
      %v547 = vld [vmem:[%s534 + $0x30] sm:$0xf]
      %v548 = vld [vmem:[%s534 + $0x34] sm:$0xf]
      %v549 = vld [vmem:[%s534 + $0x38] sm:$0xf]
      %v550 = vld [vmem:[%s534 + $0x3c] sm:$0xf]
      %v552 = vunpack.c.l.b16 %v533
      %v553 = vpack.c.b16 %v552, %v552
      %v554 = vrot.slane %v553, 2
      %v572 = vunpack.c.l.b16 %v535
      %v573 = vunpack.c.l.b16 %v536
      %v574 = vunpack.c.l.b16 %v537
      %v575 = vunpack.c.l.b16 %v538
      %v576 = vunpack.c.l.b16 %v539
      %v577 = vunpack.c.l.b16 %v540
      %v578 = vunpack.c.l.b16 %v541
      %v579 = vunpack.c.l.b16 %v542
      %v580 = vunpack.c.l.b16 %v543
      %v581 = vunpack.c.l.b16 %v544
      %v582 = vunpack.c.l.b16 %v545
      %v583 = vunpack.c.l.b16 %v546
      %v584 = vunpack.c.l.b16 %v547
      %v585 = vunpack.c.l.b16 %v548
      %v586 = vunpack.c.l.b16 %v549
      %v587 = vunpack.c.l.b16 %v550
      %v588 = vpack.c.b16 %v573, %v572
      %v589 = vpack.c.b16 %v575, %v574
      %v590 = vpack.c.b16 %v577, %v576
      %v591 = vpack.c.b16 %v579, %v578
      %v592 = vpack.c.b16 %v581, %v580
      %v593 = vpack.c.b16 %v583, %v582
      %v594 = vpack.c.b16 %v585, %v584
      %v595 = vpack.c.b16 %v587, %v586
      %604 = vmatpush.bf16.msra.mxu0 %v595
      %605 = vmatpush.bf16.msra.mxu0 %v594
      %606 = vmatpush.bf16.msra.mxu0 %v593
      %607 = vmatpush.bf16.msra.mxu0 %v592
      %608 = vmatpush.bf16.msra.mxu0 %v591
      %609 = vmatpush.bf16.msra.mxu0 %v590
      %610 = vmatpush.bf16.msra.mxu0 %v589
      %611 = vmatpush.bf16.msra.mxu0 %v588
      %612 = vmatmul.bf16.gmra.mxu0 %v554
      %v613 = vpop.f32.mrf.mxu0
      %v614 = vadd.f32 0.0, %v613
      %v615 = vpop.f32.mrf.mxu0
      %616 = vdwg.mxu0
      %v617 = vadd.f32 %v532, %v614
      %s618 = scalar_lea.vmem %s1, 320
      %v619 = vld [vmem:[%s618] sm:$0xf]
      %v620 = vld [vmem:[%s618 + $0x4] sm:$0xf]
      %v621 = vld [vmem:[%s618 + $0x8] sm:$0xf]
      %v622 = vld [vmem:[%s618 + $0xc] sm:$0xf]
      %v623 = vld [vmem:[%s618 + $0x10] sm:$0xf]
      %v624 = vld [vmem:[%s618 + $0x14] sm:$0xf]
      %v625 = vld [vmem:[%s618 + $0x18] sm:$0xf]
      %v626 = vld [vmem:[%s618 + $0x1c] sm:$0xf]
      %v627 = vld [vmem:[%s618 + $0x20] sm:$0xf]
      %v628 = vld [vmem:[%s618 + $0x24] sm:$0xf]
      %v629 = vld [vmem:[%s618 + $0x28] sm:$0xf]
      %v630 = vld [vmem:[%s618 + $0x2c] sm:$0xf]
      %v631 = vld [vmem:[%s618 + $0x30] sm:$0xf]
      %v632 = vld [vmem:[%s618 + $0x34] sm:$0xf]
      %v633 = vld [vmem:[%s618 + $0x38] sm:$0xf]
      %v634 = vld [vmem:[%s618 + $0x3c] sm:$0xf]
      %v636 = vshrl.u32 %v553, 16
      %v638 = vrot.slane %v636, 2
      %v639 = vshll.u32 %v553, 16
      %v641 = vrot.slane %v639, 3
      %v642 = vor.u32 %v638, %v641
      %v660 = vunpack.c.l.b16 %v619
      %v661 = vunpack.c.l.b16 %v620
      %v662 = vunpack.c.l.b16 %v621
      %v663 = vunpack.c.l.b16 %v622
      %v664 = vunpack.c.l.b16 %v623
      %v665 = vunpack.c.l.b16 %v624
      %v666 = vunpack.c.l.b16 %v625
      %v667 = vunpack.c.l.b16 %v626
      %v668 = vunpack.c.l.b16 %v627
      %v669 = vunpack.c.l.b16 %v628
      %v670 = vunpack.c.l.b16 %v629
      %v671 = vunpack.c.l.b16 %v630
      %v672 = vunpack.c.l.b16 %v631
      %v673 = vunpack.c.l.b16 %v632
      %v674 = vunpack.c.l.b16 %v633
      %v675 = vunpack.c.l.b16 %v634
      %v676 = vpack.c.b16 %v661, %v660
      %v677 = vpack.c.b16 %v663, %v662
      %v678 = vpack.c.b16 %v665, %v664
      %v679 = vpack.c.b16 %v667, %v666
      %v680 = vpack.c.b16 %v669, %v668
      %v681 = vpack.c.b16 %v671, %v670
      %v682 = vpack.c.b16 %v673, %v672
      %v683 = vpack.c.b16 %v675, %v674
      %692 = vmatpush.bf16.msra.mxu0 %v683
      %693 = vmatpush.bf16.msra.mxu0 %v682
      %694 = vmatpush.bf16.msra.mxu0 %v681
      %695 = vmatpush.bf16.msra.mxu0 %v680
      %696 = vmatpush.bf16.msra.mxu0 %v679
      %697 = vmatpush.bf16.msra.mxu0 %v678
      %698 = vmatpush.bf16.msra.mxu0 %v677
      %699 = vmatpush.bf16.msra.mxu0 %v676
      %700 = vmatmul.bf16.gmra.mxu0 %v642
      %v701 = vpop.f32.mrf.mxu0
      %v702 = vadd.f32 0.0, %v701
      %v703 = vpop.f32.mrf.mxu0
      %704 = vdwg.mxu0
      %v705 = vadd.f32 %v617, %v702
      %s706 = sadd.s32 %s19, 1
      %s707 = smul.addr %s706, 4
      %s708 = scalar_lea.vmem %s182, %s707
      %v709 = vld [vmem:[%s708] sm:$0x3]
      %s710 = scalar_lea.vmem %s1, 384
      %v711 = vld [vmem:[%s710] sm:$0xf]
      %v712 = vld [vmem:[%s710 + $0x4] sm:$0xf]
      %v713 = vld [vmem:[%s710 + $0x8] sm:$0xf]
      %v714 = vld [vmem:[%s710 + $0xc] sm:$0xf]
      %v715 = vld [vmem:[%s710 + $0x10] sm:$0xf]
      %v716 = vld [vmem:[%s710 + $0x14] sm:$0xf]
      %v717 = vld [vmem:[%s710 + $0x18] sm:$0xf]
      %v718 = vld [vmem:[%s710 + $0x1c] sm:$0xf]
      %v719 = vld [vmem:[%s710 + $0x20] sm:$0xf]
      %v720 = vld [vmem:[%s710 + $0x24] sm:$0xf]
      %v721 = vld [vmem:[%s710 + $0x28] sm:$0xf]
      %v722 = vld [vmem:[%s710 + $0x2c] sm:$0xf]
      %v723 = vld [vmem:[%s710 + $0x30] sm:$0xf]
      %v724 = vld [vmem:[%s710 + $0x34] sm:$0xf]
      %v725 = vld [vmem:[%s710 + $0x38] sm:$0xf]
      %v726 = vld [vmem:[%s710 + $0x3c] sm:$0xf]
      %v743 = vunpack.c.l.b16 %v711
      %v744 = vunpack.c.l.b16 %v712
      %v745 = vunpack.c.l.b16 %v713
      %v746 = vunpack.c.l.b16 %v714
      %v747 = vunpack.c.l.b16 %v715
      %v748 = vunpack.c.l.b16 %v716
      %v749 = vunpack.c.l.b16 %v717
      %v750 = vunpack.c.l.b16 %v718
      %v751 = vunpack.c.l.b16 %v719
      %v752 = vunpack.c.l.b16 %v720
      %v753 = vunpack.c.l.b16 %v721
      %v754 = vunpack.c.l.b16 %v722
      %v755 = vunpack.c.l.b16 %v723
      %v756 = vunpack.c.l.b16 %v724
      %v757 = vunpack.c.l.b16 %v725
      %v758 = vunpack.c.l.b16 %v726
      %v759 = vpack.c.b16 %v744, %v743
      %v760 = vpack.c.b16 %v746, %v745
      %v761 = vpack.c.b16 %v748, %v747
      %v762 = vpack.c.b16 %v750, %v749
      %v763 = vpack.c.b16 %v752, %v751
      %v764 = vpack.c.b16 %v754, %v753
      %v765 = vpack.c.b16 %v756, %v755
      %v766 = vpack.c.b16 %v758, %v757
      %775 = vmatpush.bf16.msra.mxu0 %v766
      %776 = vmatpush.bf16.msra.mxu0 %v765
      %777 = vmatpush.bf16.msra.mxu0 %v764
      %778 = vmatpush.bf16.msra.mxu0 %v763
      %779 = vmatpush.bf16.msra.mxu0 %v762
      %780 = vmatpush.bf16.msra.mxu0 %v761
      %781 = vmatpush.bf16.msra.mxu0 %v760
      %782 = vmatpush.bf16.msra.mxu0 %v759
      %783 = vmatmul.bf16.gmra.mxu0 %v709
      %v784 = vpop.f32.mrf.mxu0
      %v785 = vadd.f32 0.0, %v784
      %v786 = vpop.f32.mrf.mxu0
      %787 = vdwg.mxu0
      %v788 = vadd.f32 %v705, %v785
      %s789 = scalar_lea.vmem %s1, 448
      %v790 = vld [vmem:[%s789] sm:$0xf]
      %v791 = vld [vmem:[%s789 + $0x4] sm:$0xf]
      %v792 = vld [vmem:[%s789 + $0x8] sm:$0xf]
      %v793 = vld [vmem:[%s789 + $0xc] sm:$0xf]
      %v794 = vld [vmem:[%s789 + $0x10] sm:$0xf]
      %v795 = vld [vmem:[%s789 + $0x14] sm:$0xf]
      %v796 = vld [vmem:[%s789 + $0x18] sm:$0xf]
      %v797 = vld [vmem:[%s789 + $0x1c] sm:$0xf]
      %v798 = vld [vmem:[%s789 + $0x20] sm:$0xf]
      %v799 = vld [vmem:[%s789 + $0x24] sm:$0xf]
      %v800 = vld [vmem:[%s789 + $0x28] sm:$0xf]
      %v801 = vld [vmem:[%s789 + $0x2c] sm:$0xf]
      %v802 = vld [vmem:[%s789 + $0x30] sm:$0xf]
      %v803 = vld [vmem:[%s789 + $0x34] sm:$0xf]
      %v804 = vld [vmem:[%s789 + $0x38] sm:$0xf]
      %v805 = vld [vmem:[%s789 + $0x3c] sm:$0xf]
      %v807 = vunpack.c.l.b16 %v709
      %v808 = vpack.c.b16 %v807, %v807
      %v810 = vshrl.u32 %v808, 16
      %v812 = vshll.u32 %v808, 16
      %v814 = vrot.slane %v812, 1
      %v815 = vor.u32 %v810, %v814
      %v833 = vunpack.c.l.b16 %v790
      %v834 = vunpack.c.l.b16 %v791
      %v835 = vunpack.c.l.b16 %v792
      %v836 = vunpack.c.l.b16 %v793
      %v837 = vunpack.c.l.b16 %v794
      %v838 = vunpack.c.l.b16 %v795
      %v839 = vunpack.c.l.b16 %v796
      %v840 = vunpack.c.l.b16 %v797
      %v841 = vunpack.c.l.b16 %v798
      %v842 = vunpack.c.l.b16 %v799
      %v843 = vunpack.c.l.b16 %v800
      %v844 = vunpack.c.l.b16 %v801
      %v845 = vunpack.c.l.b16 %v802
      %v846 = vunpack.c.l.b16 %v803
      %v847 = vunpack.c.l.b16 %v804
      %v848 = vunpack.c.l.b16 %v805
      %v849 = vpack.c.b16 %v834, %v833
      %v850 = vpack.c.b16 %v836, %v835
      %v851 = vpack.c.b16 %v838, %v837
      %v852 = vpack.c.b16 %v840, %v839
      %v853 = vpack.c.b16 %v842, %v841
      %v854 = vpack.c.b16 %v844, %v843
      %v855 = vpack.c.b16 %v846, %v845
      %v856 = vpack.c.b16 %v848, %v847
      %865 = vmatpush.bf16.msra.mxu0 %v856
      %866 = vmatpush.bf16.msra.mxu0 %v855
      %867 = vmatpush.bf16.msra.mxu0 %v854
      %868 = vmatpush.bf16.msra.mxu0 %v853
      %869 = vmatpush.bf16.msra.mxu0 %v852
      %870 = vmatpush.bf16.msra.mxu0 %v851
      %871 = vmatpush.bf16.msra.mxu0 %v850
      %872 = vmatpush.bf16.msra.mxu0 %v849
      %873 = vmatmul.bf16.gmra.mxu0 %v815
      %v874 = vpop.f32.mrf.mxu0
      %v875 = vadd.f32 0.0, %v874
      %v876 = vpop.f32.mrf.mxu0
      %877 = vdwg.mxu0
      %v878 = vadd.f32 %v788, %v875
      %v879 = vld [vmem:[%s708] sm:$0x6]
      %s880 = scalar_lea.vmem %s1, 512
      %v881 = vld [vmem:[%s880] sm:$0xf]
      %v882 = vld [vmem:[%s880 + $0x4] sm:$0xf]
      %v883 = vld [vmem:[%s880 + $0x8] sm:$0xf]
      %v884 = vld [vmem:[%s880 + $0xc] sm:$0xf]
      %v885 = vld [vmem:[%s880 + $0x10] sm:$0xf]
      %v886 = vld [vmem:[%s880 + $0x14] sm:$0xf]
      %v887 = vld [vmem:[%s880 + $0x18] sm:$0xf]
      %v888 = vld [vmem:[%s880 + $0x1c] sm:$0xf]
      %v889 = vld [vmem:[%s880 + $0x20] sm:$0xf]
      %v890 = vld [vmem:[%s880 + $0x24] sm:$0xf]
      %v891 = vld [vmem:[%s880 + $0x28] sm:$0xf]
      %v892 = vld [vmem:[%s880 + $0x2c] sm:$0xf]
      %v893 = vld [vmem:[%s880 + $0x30] sm:$0xf]
      %v894 = vld [vmem:[%s880 + $0x34] sm:$0xf]
      %v895 = vld [vmem:[%s880 + $0x38] sm:$0xf]
      %v896 = vld [vmem:[%s880 + $0x3c] sm:$0xf]
      %v898 = vunpack.c.l.b16 %v879
      %v899 = vpack.c.b16 %v898, %v898
      %v900 = vrot.slane %v899, 1
      %v918 = vunpack.c.l.b16 %v881
      %v919 = vunpack.c.l.b16 %v882
      %v920 = vunpack.c.l.b16 %v883
      %v921 = vunpack.c.l.b16 %v884
      %v922 = vunpack.c.l.b16 %v885
      %v923 = vunpack.c.l.b16 %v886
      %v924 = vunpack.c.l.b16 %v887
      %v925 = vunpack.c.l.b16 %v888
      %v926 = vunpack.c.l.b16 %v889
      %v927 = vunpack.c.l.b16 %v890
      %v928 = vunpack.c.l.b16 %v891
      %v929 = vunpack.c.l.b16 %v892
      %v930 = vunpack.c.l.b16 %v893
      %v931 = vunpack.c.l.b16 %v894
      %v932 = vunpack.c.l.b16 %v895
      %v933 = vunpack.c.l.b16 %v896
      %v934 = vpack.c.b16 %v919, %v918
      %v935 = vpack.c.b16 %v921, %v920
      %v936 = vpack.c.b16 %v923, %v922
      %v937 = vpack.c.b16 %v925, %v924
      %v938 = vpack.c.b16 %v927, %v926
      %v939 = vpack.c.b16 %v929, %v928
      %v940 = vpack.c.b16 %v931, %v930
      %v941 = vpack.c.b16 %v933, %v932
      %950 = vmatpush.bf16.msra.mxu0 %v941
      %951 = vmatpush.bf16.msra.mxu0 %v940
      %952 = vmatpush.bf16.msra.mxu0 %v939
      %953 = vmatpush.bf16.msra.mxu0 %v938
      %954 = vmatpush.bf16.msra.mxu0 %v937
      %955 = vmatpush.bf16.msra.mxu0 %v936
      %956 = vmatpush.bf16.msra.mxu0 %v935
      %957 = vmatpush.bf16.msra.mxu0 %v934
      %958 = vmatmul.bf16.gmra.mxu0 %v900
      %v959 = vpop.f32.mrf.mxu0
      %v960 = vadd.f32 0.0, %v959
      %v961 = vpop.f32.mrf.mxu0
      %962 = vdwg.mxu0
      %v963 = vadd.f32 %v878, %v960
      %s964 = scalar_lea.vmem %s1, 576
      %v965 = vld [vmem:[%s964] sm:$0xf]
      %v966 = vld [vmem:[%s964 + $0x4] sm:$0xf]
      %v967 = vld [vmem:[%s964 + $0x8] sm:$0xf]
      %v968 = vld [vmem:[%s964 + $0xc] sm:$0xf]
      %v969 = vld [vmem:[%s964 + $0x10] sm:$0xf]
      %v970 = vld [vmem:[%s964 + $0x14] sm:$0xf]
      %v971 = vld [vmem:[%s964 + $0x18] sm:$0xf]
      %v972 = vld [vmem:[%s964 + $0x1c] sm:$0xf]
      %v973 = vld [vmem:[%s964 + $0x20] sm:$0xf]
      %v974 = vld [vmem:[%s964 + $0x24] sm:$0xf]
      %v975 = vld [vmem:[%s964 + $0x28] sm:$0xf]
      %v976 = vld [vmem:[%s964 + $0x2c] sm:$0xf]
      %v977 = vld [vmem:[%s964 + $0x30] sm:$0xf]
      %v978 = vld [vmem:[%s964 + $0x34] sm:$0xf]
      %v979 = vld [vmem:[%s964 + $0x38] sm:$0xf]
      %v980 = vld [vmem:[%s964 + $0x3c] sm:$0xf]
      %v982 = vshrl.u32 %v899, 16
      %v984 = vrot.slane %v982, 1
      %v985 = vshll.u32 %v899, 16
      %v987 = vrot.slane %v985, 2
      %v988 = vor.u32 %v984, %v987
      %v1006 = vunpack.c.l.b16 %v965
      %v1007 = vunpack.c.l.b16 %v966
      %v1008 = vunpack.c.l.b16 %v967
      %v1009 = vunpack.c.l.b16 %v968
      %v1010 = vunpack.c.l.b16 %v969
      %v1011 = vunpack.c.l.b16 %v970
      %v1012 = vunpack.c.l.b16 %v971
      %v1013 = vunpack.c.l.b16 %v972
      %v1014 = vunpack.c.l.b16 %v973
      %v1015 = vunpack.c.l.b16 %v974
      %v1016 = vunpack.c.l.b16 %v975
      %v1017 = vunpack.c.l.b16 %v976
      %v1018 = vunpack.c.l.b16 %v977
      %v1019 = vunpack.c.l.b16 %v978
      %v1020 = vunpack.c.l.b16 %v979
      %v1021 = vunpack.c.l.b16 %v980
      %v1022 = vpack.c.b16 %v1007, %v1006
      %v1023 = vpack.c.b16 %v1009, %v1008
      %v1024 = vpack.c.b16 %v1011, %v1010
      %v1025 = vpack.c.b16 %v1013, %v1012
      %v1026 = vpack.c.b16 %v1015, %v1014
      %v1027 = vpack.c.b16 %v1017, %v1016
      %v1028 = vpack.c.b16 %v1019, %v1018
      %v1029 = vpack.c.b16 %v1021, %v1020
      %1038 = vmatpush.bf16.msra.mxu0 %v1029
      %1039 = vmatpush.bf16.msra.mxu0 %v1028
      %1040 = vmatpush.bf16.msra.mxu0 %v1027
      %1041 = vmatpush.bf16.msra.mxu0 %v1026
      %1042 = vmatpush.bf16.msra.mxu0 %v1025
      %1043 = vmatpush.bf16.msra.mxu0 %v1024
      %1044 = vmatpush.bf16.msra.mxu0 %v1023
      %1045 = vmatpush.bf16.msra.mxu0 %v1022
      %1046 = vmatmul.bf16.gmra.mxu0 %v988
      %v1047 = vpop.f32.mrf.mxu0
      %v1048 = vadd.f32 0.0, %v1047
      %v1049 = vpop.f32.mrf.mxu0
      %1050 = vdwg.mxu0
      %v1051 = vadd.f32 %v963, %v1048
      %v1052 = vld [vmem:[%s708] sm:$0xc]
      %s1053 = scalar_lea.vmem %s1, 640
      %v1054 = vld [vmem:[%s1053] sm:$0xf]
      %v1055 = vld [vmem:[%s1053 + $0x4] sm:$0xf]
      %v1056 = vld [vmem:[%s1053 + $0x8] sm:$0xf]
      %v1057 = vld [vmem:[%s1053 + $0xc] sm:$0xf]
      %v1058 = vld [vmem:[%s1053 + $0x10] sm:$0xf]
      %v1059 = vld [vmem:[%s1053 + $0x14] sm:$0xf]
      %v1060 = vld [vmem:[%s1053 + $0x18] sm:$0xf]
      %v1061 = vld [vmem:[%s1053 + $0x1c] sm:$0xf]
      %v1062 = vld [vmem:[%s1053 + $0x20] sm:$0xf]
      %v1063 = vld [vmem:[%s1053 + $0x24] sm:$0xf]
      %v1064 = vld [vmem:[%s1053 + $0x28] sm:$0xf]
      %v1065 = vld [vmem:[%s1053 + $0x2c] sm:$0xf]
      %v1066 = vld [vmem:[%s1053 + $0x30] sm:$0xf]
      %v1067 = vld [vmem:[%s1053 + $0x34] sm:$0xf]
      %v1068 = vld [vmem:[%s1053 + $0x38] sm:$0xf]
      %v1069 = vld [vmem:[%s1053 + $0x3c] sm:$0xf]
      %v1071 = vunpack.c.l.b16 %v1052
      %v1072 = vpack.c.b16 %v1071, %v1071
      %v1073 = vrot.slane %v1072, 2
      %v1091 = vunpack.c.l.b16 %v1054
      %v1092 = vunpack.c.l.b16 %v1055
      %v1093 = vunpack.c.l.b16 %v1056
      %v1094 = vunpack.c.l.b16 %v1057
      %v1095 = vunpack.c.l.b16 %v1058
      %v1096 = vunpack.c.l.b16 %v1059
      %v1097 = vunpack.c.l.b16 %v1060
      %v1098 = vunpack.c.l.b16 %v1061
      %v1099 = vunpack.c.l.b16 %v1062
      %v1100 = vunpack.c.l.b16 %v1063
      %v1101 = vunpack.c.l.b16 %v1064
      %v1102 = vunpack.c.l.b16 %v1065
      %v1103 = vunpack.c.l.b16 %v1066
      %v1104 = vunpack.c.l.b16 %v1067
      %v1105 = vunpack.c.l.b16 %v1068
      %v1106 = vunpack.c.l.b16 %v1069
      %v1107 = vpack.c.b16 %v1092, %v1091
      %v1108 = vpack.c.b16 %v1094, %v1093
      %v1109 = vpack.c.b16 %v1096, %v1095
      %v1110 = vpack.c.b16 %v1098, %v1097
      %v1111 = vpack.c.b16 %v1100, %v1099
      %v1112 = vpack.c.b16 %v1102, %v1101
      %v1113 = vpack.c.b16 %v1104, %v1103
      %v1114 = vpack.c.b16 %v1106, %v1105
      %1123 = vmatpush.bf16.msra.mxu0 %v1114
      %1124 = vmatpush.bf16.msra.mxu0 %v1113
      %1125 = vmatpush.bf16.msra.mxu0 %v1112
      %1126 = vmatpush.bf16.msra.mxu0 %v1111
      %1127 = vmatpush.bf16.msra.mxu0 %v1110
      %1128 = vmatpush.bf16.msra.mxu0 %v1109
      %1129 = vmatpush.bf16.msra.mxu0 %v1108
      %1130 = vmatpush.bf16.msra.mxu0 %v1107
      %1131 = vmatmul.bf16.gmra.mxu0 %v1073
      %v1132 = vpop.f32.mrf.mxu0
      %v1133 = vadd.f32 0.0, %v1132
      %v1134 = vpop.f32.mrf.mxu0
      %1135 = vdwg.mxu0
      %v1136 = vadd.f32 %v1051, %v1133
      %s1137 = scalar_lea.vmem %s1, 704
      %v1138 = vld [vmem:[%s1137] sm:$0xf]
      %v1139 = vld [vmem:[%s1137 + $0x4] sm:$0xf]
      %v1140 = vld [vmem:[%s1137 + $0x8] sm:$0xf]
      %v1141 = vld [vmem:[%s1137 + $0xc] sm:$0xf]
      %v1142 = vld [vmem:[%s1137 + $0x10] sm:$0xf]
      %v1143 = vld [vmem:[%s1137 + $0x14] sm:$0xf]
      %v1144 = vld [vmem:[%s1137 + $0x18] sm:$0xf]
      %v1145 = vld [vmem:[%s1137 + $0x1c] sm:$0xf]
      %v1146 = vld [vmem:[%s1137 + $0x20] sm:$0xf]
      %v1147 = vld [vmem:[%s1137 + $0x24] sm:$0xf]
      %v1148 = vld [vmem:[%s1137 + $0x28] sm:$0xf]
      %v1149 = vld [vmem:[%s1137 + $0x2c] sm:$0xf]
      %v1150 = vld [vmem:[%s1137 + $0x30] sm:$0xf]
      %v1151 = vld [vmem:[%s1137 + $0x34] sm:$0xf]
      %v1152 = vld [vmem:[%s1137 + $0x38] sm:$0xf]
      %v1153 = vld [vmem:[%s1137 + $0x3c] sm:$0xf]
      %v1155 = vshrl.u32 %v1072, 16
      %v1157 = vrot.slane %v1155, 2
      %v1158 = vshll.u32 %v1072, 16
      %v1160 = vrot.slane %v1158, 3
      %v1161 = vor.u32 %v1157, %v1160
      %v1179 = vunpack.c.l.b16 %v1138
      %v1180 = vunpack.c.l.b16 %v1139
      %v1181 = vunpack.c.l.b16 %v1140
      %v1182 = vunpack.c.l.b16 %v1141
      %v1183 = vunpack.c.l.b16 %v1142
      %v1184 = vunpack.c.l.b16 %v1143
      %v1185 = vunpack.c.l.b16 %v1144
      %v1186 = vunpack.c.l.b16 %v1145
      %v1187 = vunpack.c.l.b16 %v1146
      %v1188 = vunpack.c.l.b16 %v1147
      %v1189 = vunpack.c.l.b16 %v1148
      %v1190 = vunpack.c.l.b16 %v1149
      %v1191 = vunpack.c.l.b16 %v1150
      %v1192 = vunpack.c.l.b16 %v1151
      %v1193 = vunpack.c.l.b16 %v1152
      %v1194 = vunpack.c.l.b16 %v1153
      %v1195 = vpack.c.b16 %v1180, %v1179
      %v1196 = vpack.c.b16 %v1182, %v1181
      %v1197 = vpack.c.b16 %v1184, %v1183
      %v1198 = vpack.c.b16 %v1186, %v1185
      %v1199 = vpack.c.b16 %v1188, %v1187
      %v1200 = vpack.c.b16 %v1190, %v1189
      %v1201 = vpack.c.b16 %v1192, %v1191
      %v1202 = vpack.c.b16 %v1194, %v1193
      %1211 = vmatpush.bf16.msra.mxu0 %v1202
      %1212 = vmatpush.bf16.msra.mxu0 %v1201
      %1213 = vmatpush.bf16.msra.mxu0 %v1200
      %1214 = vmatpush.bf16.msra.mxu0 %v1199
      %1215 = vmatpush.bf16.msra.mxu0 %v1198
      %1216 = vmatpush.bf16.msra.mxu0 %v1197
      %1217 = vmatpush.bf16.msra.mxu0 %v1196
      %1218 = vmatpush.bf16.msra.mxu0 %v1195
      %1219 = vmatmul.bf16.gmra.mxu0 %v1161
      %v1220 = vpop.f32.mrf.mxu0
      %v1221 = vadd.f32 0.0, %v1220
      %v1222 = vpop.f32.mrf.mxu0
      %1223 = vdwg.mxu0
      %v1224 = vadd.f32 %v1136, %v1221
      %s1225 = sadd.s32 %s19, 2
      %s1226 = smul.addr %s1225, 4
      %s1227 = scalar_lea.vmem %s182, %s1226
      %v1228 = vld [vmem:[%s1227] sm:$0x3]
      %s1229 = scalar_lea.vmem %s1, 768
      %v1230 = vld [vmem:[%s1229] sm:$0xf]
      %v1231 = vld [vmem:[%s1229 + $0x4] sm:$0xf]
      %v1232 = vld [vmem:[%s1229 + $0x8] sm:$0xf]
      %v1233 = vld [vmem:[%s1229 + $0xc] sm:$0xf]
      %v1234 = vld [vmem:[%s1229 + $0x10] sm:$0xf]
      %v1235 = vld [vmem:[%s1229 + $0x14] sm:$0xf]
      %v1236 = vld [vmem:[%s1229 + $0x18] sm:$0xf]
      %v1237 = vld [vmem:[%s1229 + $0x1c] sm:$0xf]
      %v1238 = vld [vmem:[%s1229 + $0x20] sm:$0xf]
      %v1239 = vld [vmem:[%s1229 + $0x24] sm:$0xf]
      %v1240 = vld [vmem:[%s1229 + $0x28] sm:$0xf]
      %v1241 = vld [vmem:[%s1229 + $0x2c] sm:$0xf]
      %v1242 = vld [vmem:[%s1229 + $0x30] sm:$0xf]
      %v1243 = vld [vmem:[%s1229 + $0x34] sm:$0xf]
      %v1244 = vld [vmem:[%s1229 + $0x38] sm:$0xf]
      %v1245 = vld [vmem:[%s1229 + $0x3c] sm:$0xf]
      %v1262 = vunpack.c.l.b16 %v1230
      %v1263 = vunpack.c.l.b16 %v1231
      %v1264 = vunpack.c.l.b16 %v1232
      %v1265 = vunpack.c.l.b16 %v1233
      %v1266 = vunpack.c.l.b16 %v1234
      %v1267 = vunpack.c.l.b16 %v1235
      %v1268 = vunpack.c.l.b16 %v1236
      %v1269 = vunpack.c.l.b16 %v1237
      %v1270 = vunpack.c.l.b16 %v1238
      %v1271 = vunpack.c.l.b16 %v1239
      %v1272 = vunpack.c.l.b16 %v1240
      %v1273 = vunpack.c.l.b16 %v1241
      %v1274 = vunpack.c.l.b16 %v1242
      %v1275 = vunpack.c.l.b16 %v1243
      %v1276 = vunpack.c.l.b16 %v1244
      %v1277 = vunpack.c.l.b16 %v1245
      %v1278 = vpack.c.b16 %v1263, %v1262
      %v1279 = vpack.c.b16 %v1265, %v1264
      %v1280 = vpack.c.b16 %v1267, %v1266
      %v1281 = vpack.c.b16 %v1269, %v1268
      %v1282 = vpack.c.b16 %v1271, %v1270
      %v1283 = vpack.c.b16 %v1273, %v1272
      %v1284 = vpack.c.b16 %v1275, %v1274
      %v1285 = vpack.c.b16 %v1277, %v1276
      %1294 = vmatpush.bf16.msra.mxu0 %v1285
      %1295 = vmatpush.bf16.msra.mxu0 %v1284
      %1296 = vmatpush.bf16.msra.mxu0 %v1283
      %1297 = vmatpush.bf16.msra.mxu0 %v1282
      %1298 = vmatpush.bf16.msra.mxu0 %v1281
      %1299 = vmatpush.bf16.msra.mxu0 %v1280
      %1300 = vmatpush.bf16.msra.mxu0 %v1279
      %1301 = vmatpush.bf16.msra.mxu0 %v1278
      %1302 = vmatmul.bf16.gmra.mxu0 %v1228
      %v1303 = vpop.f32.mrf.mxu0
      %v1304 = vadd.f32 0.0, %v1303
      %v1305 = vpop.f32.mrf.mxu0
      %1306 = vdwg.mxu0
      %v1307 = vadd.f32 %v1224, %v1304
      %s1308 = scalar_lea.vmem %s1, 832
      %v1309 = vld [vmem:[%s1308] sm:$0xf]
      %v1310 = vld [vmem:[%s1308 + $0x4] sm:$0xf]
      %v1311 = vld [vmem:[%s1308 + $0x8] sm:$0xf]
      %v1312 = vld [vmem:[%s1308 + $0xc] sm:$0xf]
      %v1313 = vld [vmem:[%s1308 + $0x10] sm:$0xf]
      %v1314 = vld [vmem:[%s1308 + $0x14] sm:$0xf]
      %v1315 = vld [vmem:[%s1308 + $0x18] sm:$0xf]
      %v1316 = vld [vmem:[%s1308 + $0x1c] sm:$0xf]
      %v1317 = vld [vmem:[%s1308 + $0x20] sm:$0xf]
      %v1318 = vld [vmem:[%s1308 + $0x24] sm:$0xf]
      %v1319 = vld [vmem:[%s1308 + $0x28] sm:$0xf]
      %v1320 = vld [vmem:[%s1308 + $0x2c] sm:$0xf]
      %v1321 = vld [vmem:[%s1308 + $0x30] sm:$0xf]
      %v1322 = vld [vmem:[%s1308 + $0x34] sm:$0xf]
      %v1323 = vld [vmem:[%s1308 + $0x38] sm:$0xf]
      %v1324 = vld [vmem:[%s1308 + $0x3c] sm:$0xf]
      %v1326 = vunpack.c.l.b16 %v1228
      %v1327 = vpack.c.b16 %v1326, %v1326
      %v1329 = vshrl.u32 %v1327, 16
      %v1331 = vshll.u32 %v1327, 16
      %v1333 = vrot.slane %v1331, 1
      %v1334 = vor.u32 %v1329, %v1333
      %v1352 = vunpack.c.l.b16 %v1309
      %v1353 = vunpack.c.l.b16 %v1310
      %v1354 = vunpack.c.l.b16 %v1311
      %v1355 = vunpack.c.l.b16 %v1312
      %v1356 = vunpack.c.l.b16 %v1313
      %v1357 = vunpack.c.l.b16 %v1314
      %v1358 = vunpack.c.l.b16 %v1315
      %v1359 = vunpack.c.l.b16 %v1316
      %v1360 = vunpack.c.l.b16 %v1317
      %v1361 = vunpack.c.l.b16 %v1318
      %v1362 = vunpack.c.l.b16 %v1319
      %v1363 = vunpack.c.l.b16 %v1320
      %v1364 = vunpack.c.l.b16 %v1321
      %v1365 = vunpack.c.l.b16 %v1322
      %v1366 = vunpack.c.l.b16 %v1323
      %v1367 = vunpack.c.l.b16 %v1324
      %v1368 = vpack.c.b16 %v1353, %v1352
      %v1369 = vpack.c.b16 %v1355, %v1354
      %v1370 = vpack.c.b16 %v1357, %v1356
      %v1371 = vpack.c.b16 %v1359, %v1358
      %v1372 = vpack.c.b16 %v1361, %v1360
      %v1373 = vpack.c.b16 %v1363, %v1362
      %v1374 = vpack.c.b16 %v1365, %v1364
      %v1375 = vpack.c.b16 %v1367, %v1366
      %1384 = vmatpush.bf16.msra.mxu0 %v1375
      %1385 = vmatpush.bf16.msra.mxu0 %v1374
      %1386 = vmatpush.bf16.msra.mxu0 %v1373
      %1387 = vmatpush.bf16.msra.mxu0 %v1372
      %1388 = vmatpush.bf16.msra.mxu0 %v1371
      %1389 = vmatpush.bf16.msra.mxu0 %v1370
      %1390 = vmatpush.bf16.msra.mxu0 %v1369
      %1391 = vmatpush.bf16.msra.mxu0 %v1368
      %1392 = vmatmul.bf16.gmra.mxu0 %v1334
      %v1393 = vpop.f32.mrf.mxu0
      %v1394 = vadd.f32 0.0, %v1393
      %v1395 = vpop.f32.mrf.mxu0
      %1396 = vdwg.mxu0
      %v1397 = vadd.f32 %v1307, %v1394
      %v1398 = vld [vmem:[%s1227] sm:$0x6]
      %s1399 = scalar_lea.vmem %s1, 896
      %v1400 = vld [vmem:[%s1399] sm:$0xf]
      %v1401 = vld [vmem:[%s1399 + $0x4] sm:$0xf]
      %v1402 = vld [vmem:[%s1399 + $0x8] sm:$0xf]
      %v1403 = vld [vmem:[%s1399 + $0xc] sm:$0xf]
      %v1404 = vld [vmem:[%s1399 + $0x10] sm:$0xf]
      %v1405 = vld [vmem:[%s1399 + $0x14] sm:$0xf]
      %v1406 = vld [vmem:[%s1399 + $0x18] sm:$0xf]
      %v1407 = vld [vmem:[%s1399 + $0x1c] sm:$0xf]
      %v1408 = vld [vmem:[%s1399 + $0x20] sm:$0xf]
      %v1409 = vld [vmem:[%s1399 + $0x24] sm:$0xf]
      %v1410 = vld [vmem:[%s1399 + $0x28] sm:$0xf]
      %v1411 = vld [vmem:[%s1399 + $0x2c] sm:$0xf]
      %v1412 = vld [vmem:[%s1399 + $0x30] sm:$0xf]
      %v1413 = vld [vmem:[%s1399 + $0x34] sm:$0xf]
      %v1414 = vld [vmem:[%s1399 + $0x38] sm:$0xf]
      %v1415 = vld [vmem:[%s1399 + $0x3c] sm:$0xf]
      %v1417 = vunpack.c.l.b16 %v1398
      %v1418 = vpack.c.b16 %v1417, %v1417
      %v1419 = vrot.slane %v1418, 1
      %v1437 = vunpack.c.l.b16 %v1400
      %v1438 = vunpack.c.l.b16 %v1401
      %v1439 = vunpack.c.l.b16 %v1402
      %v1440 = vunpack.c.l.b16 %v1403
      %v1441 = vunpack.c.l.b16 %v1404
      %v1442 = vunpack.c.l.b16 %v1405
      %v1443 = vunpack.c.l.b16 %v1406
      %v1444 = vunpack.c.l.b16 %v1407
      %v1445 = vunpack.c.l.b16 %v1408
      %v1446 = vunpack.c.l.b16 %v1409
      %v1447 = vunpack.c.l.b16 %v1410
      %v1448 = vunpack.c.l.b16 %v1411
      %v1449 = vunpack.c.l.b16 %v1412
      %v1450 = vunpack.c.l.b16 %v1413
      %v1451 = vunpack.c.l.b16 %v1414
      %v1452 = vunpack.c.l.b16 %v1415
      %v1453 = vpack.c.b16 %v1438, %v1437
      %v1454 = vpack.c.b16 %v1440, %v1439
      %v1455 = vpack.c.b16 %v1442, %v1441
      %v1456 = vpack.c.b16 %v1444, %v1443
      %v1457 = vpack.c.b16 %v1446, %v1445
      %v1458 = vpack.c.b16 %v1448, %v1447
      %v1459 = vpack.c.b16 %v1450, %v1449
      %v1460 = vpack.c.b16 %v1452, %v1451
      %1469 = vmatpush.bf16.msra.mxu0 %v1460
      %1470 = vmatpush.bf16.msra.mxu0 %v1459
      %1471 = vmatpush.bf16.msra.mxu0 %v1458
      %1472 = vmatpush.bf16.msra.mxu0 %v1457
      %1473 = vmatpush.bf16.msra.mxu0 %v1456
      %1474 = vmatpush.bf16.msra.mxu0 %v1455
      %1475 = vmatpush.bf16.msra.mxu0 %v1454
      %1476 = vmatpush.bf16.msra.mxu0 %v1453
      %1477 = vmatmul.bf16.gmra.mxu0 %v1419
      %v1478 = vpop.f32.mrf.mxu0
      %v1479 = vadd.f32 0.0, %v1478
      %v1480 = vpop.f32.mrf.mxu0
      %1481 = vdwg.mxu0
      %v1482 = vadd.f32 %v1397, %v1479
      %s1483 = scalar_lea.vmem %s1, 960
      %v1484 = vld [vmem:[%s1483] sm:$0xf]
      %v1485 = vld [vmem:[%s1483 + $0x4] sm:$0xf]
      %v1486 = vld [vmem:[%s1483 + $0x8] sm:$0xf]
      %v1487 = vld [vmem:[%s1483 + $0xc] sm:$0xf]
      %v1488 = vld [vmem:[%s1483 + $0x10] sm:$0xf]
      %v1489 = vld [vmem:[%s1483 + $0x14] sm:$0xf]
      %v1490 = vld [vmem:[%s1483 + $0x18] sm:$0xf]
      %v1491 = vld [vmem:[%s1483 + $0x1c] sm:$0xf]
      %v1492 = vld [vmem:[%s1483 + $0x20] sm:$0xf]
      %v1493 = vld [vmem:[%s1483 + $0x24] sm:$0xf]
      %v1494 = vld [vmem:[%s1483 + $0x28] sm:$0xf]
      %v1495 = vld [vmem:[%s1483 + $0x2c] sm:$0xf]
      %v1496 = vld [vmem:[%s1483 + $0x30] sm:$0xf]
      %v1497 = vld [vmem:[%s1483 + $0x34] sm:$0xf]
      %v1498 = vld [vmem:[%s1483 + $0x38] sm:$0xf]
      %v1499 = vld [vmem:[%s1483 + $0x3c] sm:$0xf]
      %v1501 = vshrl.u32 %v1418, 16
      %v1503 = vrot.slane %v1501, 1
      %v1504 = vshll.u32 %v1418, 16
      %v1506 = vrot.slane %v1504, 2
      %v1507 = vor.u32 %v1503, %v1506
      %v1525 = vunpack.c.l.b16 %v1484
      %v1526 = vunpack.c.l.b16 %v1485
      %v1527 = vunpack.c.l.b16 %v1486
      %v1528 = vunpack.c.l.b16 %v1487
      %v1529 = vunpack.c.l.b16 %v1488
      %v1530 = vunpack.c.l.b16 %v1489
      %v1531 = vunpack.c.l.b16 %v1490
      %v1532 = vunpack.c.l.b16 %v1491
      %v1533 = vunpack.c.l.b16 %v1492
      %v1534 = vunpack.c.l.b16 %v1493
      %v1535 = vunpack.c.l.b16 %v1494
      %v1536 = vunpack.c.l.b16 %v1495
      %v1537 = vunpack.c.l.b16 %v1496
      %v1538 = vunpack.c.l.b16 %v1497
      %v1539 = vunpack.c.l.b16 %v1498
      %v1540 = vunpack.c.l.b16 %v1499
      %v1541 = vpack.c.b16 %v1526, %v1525
      %v1542 = vpack.c.b16 %v1528, %v1527
      %v1543 = vpack.c.b16 %v1530, %v1529
      %v1544 = vpack.c.b16 %v1532, %v1531
      %v1545 = vpack.c.b16 %v1534, %v1533
      %v1546 = vpack.c.b16 %v1536, %v1535
      %v1547 = vpack.c.b16 %v1538, %v1537
      %v1548 = vpack.c.b16 %v1540, %v1539
      %1557 = vmatpush.bf16.msra.mxu0 %v1548
      %1558 = vmatpush.bf16.msra.mxu0 %v1547
      %1559 = vmatpush.bf16.msra.mxu0 %v1546
      %1560 = vmatpush.bf16.msra.mxu0 %v1545
      %1561 = vmatpush.bf16.msra.mxu0 %v1544
      %1562 = vmatpush.bf16.msra.mxu0 %v1543
      %1563 = vmatpush.bf16.msra.mxu0 %v1542
      %1564 = vmatpush.bf16.msra.mxu0 %v1541
      %1565 = vmatmul.bf16.gmra.mxu0 %v1507
      %v1566 = vpop.f32.mrf.mxu0
      %v1567 = vadd.f32 0.0, %v1566
      %v1568 = vpop.f32.mrf.mxu0
      %1569 = vdwg.mxu0
      %v1570 = vadd.f32 %v1482, %v1567
      %v1571 = vld [vmem:[%s1227] sm:$0xc]
      %s1572 = scalar_lea.vmem %s1, 1024
      %v1573 = vld [vmem:[%s1572] sm:$0xf]
      %v1574 = vld [vmem:[%s1572 + $0x4] sm:$0xf]
      %v1575 = vld [vmem:[%s1572 + $0x8] sm:$0xf]
      %v1576 = vld [vmem:[%s1572 + $0xc] sm:$0xf]
      %v1577 = vld [vmem:[%s1572 + $0x10] sm:$0xf]
      %v1578 = vld [vmem:[%s1572 + $0x14] sm:$0xf]
      %v1579 = vld [vmem:[%s1572 + $0x18] sm:$0xf]
      %v1580 = vld [vmem:[%s1572 + $0x1c] sm:$0xf]
      %v1581 = vld [vmem:[%s1572 + $0x20] sm:$0xf]
      %v1582 = vld [vmem:[%s1572 + $0x24] sm:$0xf]
      %v1583 = vld [vmem:[%s1572 + $0x28] sm:$0xf]
      %v1584 = vld [vmem:[%s1572 + $0x2c] sm:$0xf]
      %v1585 = vld [vmem:[%s1572 + $0x30] sm:$0xf]
      %v1586 = vld [vmem:[%s1572 + $0x34] sm:$0xf]
      %v1587 = vld [vmem:[%s1572 + $0x38] sm:$0xf]
      %v1588 = vld [vmem:[%s1572 + $0x3c] sm:$0xf]
      %v1590 = vunpack.c.l.b16 %v1571
      %v1591 = vpack.c.b16 %v1590, %v1590
      %v1592 = vrot.slane %v1591, 2
      %v1610 = vunpack.c.l.b16 %v1573
      %v1611 = vunpack.c.l.b16 %v1574
      %v1612 = vunpack.c.l.b16 %v1575
      %v1613 = vunpack.c.l.b16 %v1576
      %v1614 = vunpack.c.l.b16 %v1577
      %v1615 = vunpack.c.l.b16 %v1578
      %v1616 = vunpack.c.l.b16 %v1579
      %v1617 = vunpack.c.l.b16 %v1580
      %v1618 = vunpack.c.l.b16 %v1581
      %v1619 = vunpack.c.l.b16 %v1582
      %v1620 = vunpack.c.l.b16 %v1583
      %v1621 = vunpack.c.l.b16 %v1584
      %v1622 = vunpack.c.l.b16 %v1585
      %v1623 = vunpack.c.l.b16 %v1586
      %v1624 = vunpack.c.l.b16 %v1587
      %v1625 = vunpack.c.l.b16 %v1588
      %v1626 = vpack.c.b16 %v1611, %v1610
      %v1627 = vpack.c.b16 %v1613, %v1612
      %v1628 = vpack.c.b16 %v1615, %v1614
      %v1629 = vpack.c.b16 %v1617, %v1616
      %v1630 = vpack.c.b16 %v1619, %v1618
      %v1631 = vpack.c.b16 %v1621, %v1620
      %v1632 = vpack.c.b16 %v1623, %v1622
      %v1633 = vpack.c.b16 %v1625, %v1624
      %1642 = vmatpush.bf16.msra.mxu0 %v1633
      %1643 = vmatpush.bf16.msra.mxu0 %v1632
      %1644 = vmatpush.bf16.msra.mxu0 %v1631
      %1645 = vmatpush.bf16.msra.mxu0 %v1630
      %1646 = vmatpush.bf16.msra.mxu0 %v1629
      %1647 = vmatpush.bf16.msra.mxu0 %v1628
      %1648 = vmatpush.bf16.msra.mxu0 %v1627
      %1649 = vmatpush.bf16.msra.mxu0 %v1626
      %1650 = vmatmul.bf16.gmra.mxu0 %v1592
      %v1651 = vpop.f32.mrf.mxu0
      %v1652 = vadd.f32 0.0, %v1651
      %v1653 = vpop.f32.mrf.mxu0
      %1654 = vdwg.mxu0
      %v1655 = vadd.f32 %v1570, %v1652
      %s1656 = scalar_lea.vmem %s1, 1088
      %v1657 = vld [vmem:[%s1656] sm:$0xf]
      %v1658 = vld [vmem:[%s1656 + $0x4] sm:$0xf]
      %v1659 = vld [vmem:[%s1656 + $0x8] sm:$0xf]
      %v1660 = vld [vmem:[%s1656 + $0xc] sm:$0xf]
      %v1661 = vld [vmem:[%s1656 + $0x10] sm:$0xf]
      %v1662 = vld [vmem:[%s1656 + $0x14] sm:$0xf]
      %v1663 = vld [vmem:[%s1656 + $0x18] sm:$0xf]
      %v1664 = vld [vmem:[%s1656 + $0x1c] sm:$0xf]
      %v1665 = vld [vmem:[%s1656 + $0x20] sm:$0xf]
      %v1666 = vld [vmem:[%s1656 + $0x24] sm:$0xf]
      %v1667 = vld [vmem:[%s1656 + $0x28] sm:$0xf]
      %v1668 = vld [vmem:[%s1656 + $0x2c] sm:$0xf]
      %v1669 = vld [vmem:[%s1656 + $0x30] sm:$0xf]
      %v1670 = vld [vmem:[%s1656 + $0x34] sm:$0xf]
      %v1671 = vld [vmem:[%s1656 + $0x38] sm:$0xf]
      %v1672 = vld [vmem:[%s1656 + $0x3c] sm:$0xf]
      %v1674 = vshrl.u32 %v1591, 16
      %v1676 = vrot.slane %v1674, 2
      %v1677 = vshll.u32 %v1591, 16
      %v1679 = vrot.slane %v1677, 3
      %v1680 = vor.u32 %v1676, %v1679
      %v1698 = vunpack.c.l.b16 %v1657
      %v1699 = vunpack.c.l.b16 %v1658
      %v1700 = vunpack.c.l.b16 %v1659
      %v1701 = vunpack.c.l.b16 %v1660
      %v1702 = vunpack.c.l.b16 %v1661
      %v1703 = vunpack.c.l.b16 %v1662
      %v1704 = vunpack.c.l.b16 %v1663
      %v1705 = vunpack.c.l.b16 %v1664
      %v1706 = vunpack.c.l.b16 %v1665
      %v1707 = vunpack.c.l.b16 %v1666
      %v1708 = vunpack.c.l.b16 %v1667
      %v1709 = vunpack.c.l.b16 %v1668
      %v1710 = vunpack.c.l.b16 %v1669
      %v1711 = vunpack.c.l.b16 %v1670
      %v1712 = vunpack.c.l.b16 %v1671
      %v1713 = vunpack.c.l.b16 %v1672
      %v1714 = vpack.c.b16 %v1699, %v1698
      %v1715 = vpack.c.b16 %v1701, %v1700
      %v1716 = vpack.c.b16 %v1703, %v1702
      %v1717 = vpack.c.b16 %v1705, %v1704
      %v1718 = vpack.c.b16 %v1707, %v1706
      %v1719 = vpack.c.b16 %v1709, %v1708
      %v1720 = vpack.c.b16 %v1711, %v1710
      %v1721 = vpack.c.b16 %v1713, %v1712
      %1730 = vmatpush.bf16.msra.mxu0 %v1721
      %1731 = vmatpush.bf16.msra.mxu0 %v1720
      %1732 = vmatpush.bf16.msra.mxu0 %v1719
      %1733 = vmatpush.bf16.msra.mxu0 %v1718
      %1734 = vmatpush.bf16.msra.mxu0 %v1717
      %1735 = vmatpush.bf16.msra.mxu0 %v1716
      %1736 = vmatpush.bf16.msra.mxu0 %v1715
      %1737 = vmatpush.bf16.msra.mxu0 %v1714
      %1738 = vmatmul.bf16.gmra.mxu0 %v1680
      %v1739 = vpop.f32.mrf.mxu0
      %v1740 = vadd.f32 0.0, %v1739
      %v1741 = vpop.f32.mrf.mxu0
      %1742 = vdwg.mxu0
      %v1743 = vadd.f32 %v1655, %v1740
      %v1744 = vld [vmem:[%s2] sm:$0x1]
      %v1746 = vperm.slane %v1744, 0
      %v1748 = vadd.f32 %v1743, %v1746
      %v1749 = vmax.f32 %v1748, 0.0
      %v1750 = vpack.c.bf16 %v1749, %v1749
      %vm1751 = vcmask 1041408
      %vm1752 = vsmask.f32 1280
      %vm1753 = vmand %vm1751, %vm1752
      %v1754 = vld [vmem:[%s190] sm:$0x3]
      %v1755 = vsel %vm1753, %v1750, %v1754
      %1756 = vst [vmem:[%s190] sm:$0x3] %v1755
      %p1757 = scmp.lt.s32.totalorder %s18, 1
      %s1758 = scalar_select %p1757, %s18, 1
      %p1759 = scmp.lt.s32.totalorder %s19, 1
      %s1760 = scalar_select %p1759, %s19, 1
      %s1761 = smul.addr %s1758, 2
      %s1762 = sadd.s32 %s1760, %s1761
      %s1763 = smul.addr %s1762, 2
      %s1764 = scalar_lea.vmem %s3, %s1763
      // Predicated region
      $region33: #{usg_forward.4} parent=31 // pred_check
        %p1765 = pneg %p114
      $region34: #{usg_forward.4} parent=31 // pred_check_branch
        %1767 = sbr.rel (%p1765) target = $region36
      $region35: #{usg_forward.4} parent=31 // pred_region
        _
      $region36: #{usg_forward.4} parent=31 // pred_fallthru
        _
    $region32: #{usg_forward.4} parent=5 // pred_fallthru
      _
    %p1768 = scmp.le.s32.totalorder 2, %s9
    // Predicated region
    $region37: #{usg_forward.4} parent=5 // pred_check
      %p1769 = pneg %p1768
    $region38: #{usg_forward.4} parent=5 // pred_check_branch
      %1771 = sbr.rel (%p1769) target = $region40
    $region39: #{usg_forward.4} parent=5 // pred_region
      %s1772 = ssub.s32 %s9, 2
      // Predicated region
      $region41: #{usg_forward.4} parent=39 // pred_check
        %p1773 = pneg %p120
      $region42: #{usg_forward.4} parent=39 // pred_check_branch
        %1775 = sbr.rel (%p1773) target = $region44
      $region43: #{usg_forward.4} parent=39 // pred_region
        %p1776 = scmp.lt.s32.totalorder %s20, 1
        %s1777 = scalar_select %p1776, %s20, 1
        %p1778 = scmp.lt.s32.totalorder %s21, 1
        %s1779 = scalar_select %p1778, %s21, 1
        %s1780 = smul.addr %s1777, 2
        %s1781 = sadd.s32 %s1779, %s1780
        %s1782 = smul.addr %s1781, 2
        %s1783 = scalar_lea.vmem %s3, %s1782
      $region44: #{usg_forward.4} parent=39 // pred_fallthru
        _
    $region40: #{usg_forward.4} parent=5 // pred_fallthru
      _
  $region6: #{usg_forward.4} parent=0 // loop_footer
    %s13 = sadd.s32 1, %s9
  $region7: #{usg_forward.4} parent=0 // loop_footer_branch
    %8 = sbr.rel target = $region3
  $region8: #{usg_forward.4} parent=0 // loop_exit
    _

// kernel: usg_forward.5
$region0: #{usg_forward.5}
  #allocation0 [shape = 'u32[]', space=smem, size = 0x4, offset = 0x4, fixed_abs, tag = 'smem constant byte address 0x4 - core index']
  #allocation1 [shape = 'u32[72,128]{1,0:T(1,128)}', space=vmem, size = 0x9000, scoped, tag = 'internal scratch']
  #allocation2 [shape = 'f32[2,64]{1,0:T(2,128)}', space=vmem, size = 0x400, scoped, tag = 'scratch operand']
  %s0 = inlined_call_operand.vmem [shape: bf16[2,384], index: 0, kind: input, shape index: {}]
  %s1 = inlined_call_operand.vmem [shape: bf16[2,384,64], index: 1, kind: input, shape index: {}]
  %s2 = inlined_call_operand.vmem [shape: f32[2,1,64], index: 2, kind: input, shape index: {}]
  %s3 = inlined_call_operand.vmem [shape: bf16[2,64,128], index: 3, kind: input, shape index: {}]
  %s4 = inlined_call_operand.vmem [shape: f32[2,2,128], index: 4, kind: output, shape index: {}]
  %s5 = sld [smem:[#allocation0]]
  $region57: #{usg_forward.5} parent=0
    _
  %s7 = ssub.s32 1, %s5
  %s8 = scalar_select 0, %s7, %s5
  loop: start=0, step=1, limit=4
  $region2: #{usg_forward.5} parent=0 // loop_pre_header
    _
  $region3: #{usg_forward.5} parent=0 // loop_header
    %s10 = sphi 0, %s14
    %p11 = scmp.ge.s32.totalorder %s10, 4
    %s17 = sphi 0, %s29
    %s18 = sphi 0, %s25
    %s19 = sphi 0, %s17
    %s20 = sphi 0, %s18
    %s21 = sphi 0, %s19
    %s22 = sphi 0, %s20
    %s32 = sphi 0, %s34
    %s35 = sphi 0, %s32
    %s36 = sphi 0, %s35
    %s52 = sphi 0, %s36
    %s60 = sphi 0, %s62
    %s63 = sphi 0, %s60
    %s64 = sphi 0, %s63
    %s80 = sphi 0, %s64
    %s86 = sphi 0, %s88
    %s89 = sphi 0, %s86
    %s90 = sphi 0, %s89
    %s106 = sphi 0, %s90
    %s112 = sphi 0, %s114
    %s115 = sphi 0, %s112
    %s116 = sphi 0, %s115
    %s132 = sphi 0, %s116
    %s138 = sphi 0, %s140
    %s141 = sphi 0, %s138
    %s142 = sphi 0, %s141
    %s158 = sphi 0, %s142
  $region4: #{usg_forward.5} parent=0 // loop_header_branch
    %13 = sbr.rel (%p11) target = $region8
  $region5: #{usg_forward.5} parent=0 // loop_body
    %s15 = ssub.s32 %s10, 1
    %s16 = ssub.s32 %s10, 2
    %s23 = sadd.s32 1, %s18
    %p24 = scmp.ge.s32.totalorder %s23, 1
    %s25 = scalar_select %p24, 0, %s23
    %s26 = sadd.s32 1, %s17
    %s27 = scalar_select %p24, %s26, %s17
    %p28 = scmp.ge.s32.totalorder %s27, 2
    %s29 = scalar_select %p28, 0, %s27
    %s30 = ssub.s32 %s18, %s25
    %p31 = scmp.eq.s32.totalorder %s30, 0
    %s33 = sadd.s32 %s32, 1
    %s34 = scalar_select %p31, %s32, %s33
    %p37 = pneg %p31
    %p38 = scmp.eq.s32.totalorder %s10, 1
    %p39 = por %p37, %p38
    %p40 = scmp.ne.s32.totalorder %s32, %s35
    %p41 = scmp.eq.s32.totalorder %s10, 0
    %p42 = por %p40, %p41
    %p43 = scmp.ne.s32.totalorder %s32, %s35
    %p44 = scmp.eq.s32.totalorder %s15, 1
    %p45 = por %p43, %p44
    %p46 = scmp.ne.s32.totalorder %s35, %s36
    %p47 = scmp.eq.s32.totalorder %s15, 0
    %p48 = por %p46, %p47
    %p49 = scmp.ne.s32.totalorder %s35, %s36
    %p50 = scmp.eq.s32.totalorder %s16, 1
    %p51 = por %p49, %p50
    %p53 = scmp.ne.s32.totalorder %s36, %s52
    %p54 = scmp.eq.s32.totalorder %s16, 0
    %p55 = por %p53, %p54
    %s56 = ssub.s32 %s17, %s29
    %s57 = ssub.s32 %s18, %s25
    %s58 = sor.u32 %s56, %s57
    %p59 = scmp.eq.s32.totalorder %s58, 0
    %s61 = sadd.s32 %s60, 1
    %s62 = scalar_select %p59, %s60, %s61
    %p65 = pneg %p59
    %p66 = scmp.eq.s32.totalorder %s10, 1
    %p67 = por %p65, %p66
    %p68 = scmp.ne.s32.totalorder %s60, %s63
    %p69 = scmp.eq.s32.totalorder %s10, 0
    %p70 = por %p68, %p69
    %p71 = scmp.ne.s32.totalorder %s60, %s63
    %p72 = scmp.eq.s32.totalorder %s15, 1
    %p73 = por %p71, %p72
    %p74 = scmp.ne.s32.totalorder %s63, %s64
    %p75 = scmp.eq.s32.totalorder %s15, 0
    %p76 = por %p74, %p75
    %p77 = scmp.ne.s32.totalorder %s63, %s64
    %p78 = scmp.eq.s32.totalorder %s16, 1
    %p79 = por %p77, %p78
    %p81 = scmp.ne.s32.totalorder %s64, %s80
    %p82 = scmp.eq.s32.totalorder %s16, 0
    %p83 = por %p81, %p82
    %s84 = ssub.s32 %s17, %s29
    %p85 = scmp.eq.s32.totalorder %s84, 0
    %s87 = sadd.s32 %s86, 1
    %s88 = scalar_select %p85, %s86, %s87
    %p91 = pneg %p85
    %p92 = scmp.eq.s32.totalorder %s10, 1
    %p93 = por %p91, %p92
    %p94 = scmp.ne.s32.totalorder %s86, %s89
    %p95 = scmp.eq.s32.totalorder %s10, 0
    %p96 = por %p94, %p95
    %p97 = scmp.ne.s32.totalorder %s86, %s89
    %p98 = scmp.eq.s32.totalorder %s15, 1
    %p99 = por %p97, %p98
    %p100 = scmp.ne.s32.totalorder %s89, %s90
    %p101 = scmp.eq.s32.totalorder %s15, 0
    %p102 = por %p100, %p101
    %p103 = scmp.ne.s32.totalorder %s89, %s90
    %p104 = scmp.eq.s32.totalorder %s16, 1
    %p105 = por %p103, %p104
    %p107 = scmp.ne.s32.totalorder %s90, %s106
    %p108 = scmp.eq.s32.totalorder %s16, 0
    %p109 = por %p107, %p108
    %s110 = ssub.s32 %s17, %s29
    %p111 = scmp.eq.s32.totalorder %s110, 0
    %s113 = sadd.s32 %s112, 1
    %s114 = scalar_select %p111, %s112, %s113
    %p117 = pneg %p111
    %p118 = scmp.eq.s32.totalorder %s10, 1
    %p119 = por %p117, %p118
    %p120 = scmp.ne.s32.totalorder %s112, %s115
    %p121 = scmp.eq.s32.totalorder %s10, 0
    %p122 = por %p120, %p121
    %p123 = scmp.ne.s32.totalorder %s112, %s115
    %p124 = scmp.eq.s32.totalorder %s15, 1
    %p125 = por %p123, %p124
    %p126 = scmp.ne.s32.totalorder %s115, %s116
    %p127 = scmp.eq.s32.totalorder %s15, 0
    %p128 = por %p126, %p127
    %p129 = scmp.ne.s32.totalorder %s115, %s116
    %p130 = scmp.eq.s32.totalorder %s16, 1
    %p131 = por %p129, %p130
    %p133 = scmp.ne.s32.totalorder %s116, %s132
    %p134 = scmp.eq.s32.totalorder %s16, 0
    %p135 = por %p133, %p134
    %s136 = ssub.s32 %s17, %s29
    %p137 = scmp.eq.s32.totalorder %s136, 0
    %s139 = sadd.s32 %s138, 1
    %s140 = scalar_select %p137, %s138, %s139
    %p143 = pneg %p137
    %p144 = scmp.eq.s32.totalorder %s10, 1
    %p145 = por %p143, %p144
    %p146 = scmp.ne.s32.totalorder %s138, %s141
    %p147 = scmp.eq.s32.totalorder %s10, 0
    %p148 = por %p146, %p147
    %p149 = scmp.ne.s32.totalorder %s138, %s141
    %p150 = scmp.eq.s32.totalorder %s15, 1
    %p151 = por %p149, %p150
    %p152 = scmp.ne.s32.totalorder %s141, %s142
    %p153 = scmp.eq.s32.totalorder %s15, 0
    %p154 = por %p152, %p153
    %p155 = scmp.ne.s32.totalorder %s141, %s142
    %p156 = scmp.eq.s32.totalorder %s16, 1
    %p157 = por %p155, %p156
    %p159 = scmp.ne.s32.totalorder %s142, %s158
    %p160 = scmp.eq.s32.totalorder %s16, 0
    %p161 = por %p159, %p160
    %p162 = scmp.le.s32.totalorder 1, %s10
    %p163 = scmp.lt.s32.totalorder %s10, 3
    %p164 = pnand %p162, %p163
    %p165 = pneg %p164
    // Predicated region
    $region9: #{usg_forward.5} parent=5 // pred_check
      _
    $region10: #{usg_forward.5} parent=5 // pred_check_branch
      %167 = sbr.rel (%p164) target = $region12
    $region11: #{usg_forward.5} parent=5 // pred_region
      %s168 = ssub.s32 %s10, 1
      // Predicated region
      $region13: #{usg_forward.5} parent=11 // pred_check
        %p169 = pneg %p48
      $region14: #{usg_forward.5} parent=11 // pred_check_branch
        %171 = sbr.rel (%p169) target = $region16
      $region15: #{usg_forward.5} parent=11 // pred_region
        %s172 = smul.u32 3, %s20
        %p173 = scmp.lt.s32.totalorder %s172, 2
        %s174 = scalar_select %p173, %s172, 2
        %s175 = scalar_lea.vmem %s0, %s174
        %s176 = smul.u32 3, %s20
      $region16: #{usg_forward.5} parent=11 // pred_fallthru
        _
    $region12: #{usg_forward.5} parent=5 // pred_fallthru
      _
    %p177 = scmp.lt.s32.totalorder %s10, 2
    // Predicated region
    $region17: #{usg_forward.5} parent=5 // pred_check
      %p178 = pneg %p177
    $region18: #{usg_forward.5} parent=5 // pred_check_branch
      %180 = sbr.rel (%p178) target = $region20
    $region19: #{usg_forward.5} parent=5 // pred_region
      // Predicated region
      $region21: #{usg_forward.5} parent=19 // pred_check
        %p181 = pneg %p70
      $region22: #{usg_forward.5} parent=19 // pred_check_branch
        %183 = sbr.rel (%p181) target = $region24
      $region23: #{usg_forward.5} parent=19 // pred_region
        %s184 = smul.u32 48, %s18
        %p185 = scmp.lt.s32.totalorder %s17, 1
        %s186 = scalar_select %p185, %s17, 1
        %p187 = scmp.lt.s32.totalorder %s184, 47
        %s188 = scalar_select %p187, %s184, 47
        %s189 = smul.addr %s186, 48
        %s190 = sadd.s32 %s188, %s189
        %s191 = smul.addr %s190, 4
        %s192 = scalar_lea.vmem %s1, %s191
        %s193 = smul.u32 48, %s18
      $region24: #{usg_forward.5} parent=19 // pred_fallthru
        _
      // Predicated region
      $region25: #{usg_forward.5} parent=19 // pred_check
        %p194 = pneg %p96
      $region26: #{usg_forward.5} parent=19 // pred_check_branch
        %196 = sbr.rel (%p194) target = $region28
      $region27: #{usg_forward.5} parent=19 // pred_region
        %p197 = scmp.lt.s32.totalorder %s17, 1
        %s198 = scalar_select %p197, %s17, 1
        %s199 = scalar_lea.vmem %s2, %s198
      $region28: #{usg_forward.5} parent=19 // pred_fallthru
        _
      // Predicated region
      $region29: #{usg_forward.5} parent=19 // pred_check
        %p200 = pneg %p122
      $region30: #{usg_forward.5} parent=19 // pred_check_branch
        %202 = sbr.rel (%p200) target = $region32
      $region31: #{usg_forward.5} parent=19 // pred_region
        %p203 = scmp.lt.s32.totalorder %s17, 1
        %s204 = scalar_select %p203, %s17, 1
        %s205 = smul.addr %s204, 8
        %s206 = smul.addr %s205, 4
        %s207 = scalar_lea.vmem %s3, %s206
      $region32: #{usg_forward.5} parent=19 // pred_fallthru
        _
    $region20: #{usg_forward.5} parent=5 // pred_fallthru
      _
    %p208 = scmp.le.s32.totalorder 1, %s10
    %p209 = scmp.lt.s32.totalorder %s10, 3
    %p210 = pnand %p208, %p209
    %p211 = pneg %p210
    // Predicated region
    $region33: #{usg_forward.5} parent=5 // pred_check
      _
    $region34: #{usg_forward.5} parent=5 // pred_check_branch
      %213 = sbr.rel (%p210) target = $region36
    $region35: #{usg_forward.5} parent=5 // pred_region
      %s214 = ssub.s32 %s10, 1
      %s215 = smul.u32 3, %s20
      %p216 = scmp.lt.s32.totalorder %s215, 2
      %s217 = scalar_select %p216, %s215, 2
      %s218 = scalar_lea.vmem %s0, %s217
      %p219 = pneg %p48
      %p220 = pneg %p45
      %s221 = smul.u32 48, %s20
      %p222 = scmp.lt.s32.totalorder %s19, 1
      %s223 = scalar_select %p222, %s19, 1
      %p224 = scmp.lt.s32.totalorder %s221, 47
      %s225 = scalar_select %p224, %s221, 47
      %s226 = smul.addr %s223, 48
      %s227 = sadd.s32 %s225, %s226
      %s228 = smul.addr %s227, 4
      %s229 = scalar_lea.vmem %s1, %s228
      %p230 = pneg %p76
      %p231 = pneg %p73
      %p232 = scmp.lt.s32.totalorder %s19, 1
      %s233 = scalar_select %p232, %s19, 1
      %s234 = scalar_lea.vmem %s2, %s233
      %p235 = pneg %p102
      %p236 = pneg %p99
      %p237 = scmp.lt.s32.totalorder %s19, 1
      %s238 = scalar_select %p237, %s19, 1
      %s239 = smul.addr %s238, 8
      %s240 = smul.addr %s239, 4
      %s241 = scalar_lea.vmem %s3, %s240
      %p242 = pneg %p128
      %p243 = pneg %p125
      %p244 = pneg %p154
      %p245 = pneg %p151
      %p246 = scmp.lt.s32.totalorder %s19, 1
      %s247 = scalar_select %p246, %s19, 1
      %s248 = smul.addr %s247, 2
      %s249 = scalar_lea.vmem %s4, %s248
      %s250 = smul.u32 3, %s20
      %p251 = scmp.lt.s32.totalorder %s250, 2
      %s252 = scalar_select %p251, %s250, 2
      %s253 = scalar_lea.vmem %s0, %s252
      %s254 = smul.u32 3, %s20
      %s255 = smul.u32 48, %s20
      %p256 = scmp.lt.s32.totalorder %s19, 1
      %s257 = scalar_select %p256, %s19, 1
      %p258 = scmp.lt.s32.totalorder %s255, 47
      %s259 = scalar_select %p258, %s255, 47
      %s260 = smul.addr %s257, 48
      %s261 = sadd.s32 %s259, %s260
      %s262 = smul.addr %s261, 4
      %s263 = scalar_lea.vmem %s1, %s262
      %s264 = smul.u32 48, %s20
      %p265 = scmp.lt.s32.totalorder %s19, 1
      %s266 = scalar_select %p265, %s19, 1
      %s267 = scalar_lea.vmem %s2, %s266
      %p268 = scmp.lt.s32.totalorder %s19, 1
      %s269 = scalar_select %p268, %s19, 1
      %s270 = smul.addr %s269, 8
      %s271 = smul.addr %s270, 4
      %s272 = scalar_lea.vmem %s3, %s271
      %p273 = scmp.lt.s32.totalorder %s19, 1
      %s274 = scalar_select %p273, %s19, 1
      %s275 = smul.addr %s274, 2
      %s276 = scalar_lea.vmem %s4, %s275
      %p278 = scmp.eq.s32.totalorder %s20, 0
      // Predicated region
      $region37: #{usg_forward.5} parent=35 // pred_check
        %p279 = pneg %p278
      $region38: #{usg_forward.5} parent=35 // pred_check_branch
        %281 = sbr.rel (%p279) target = $region40
      $region39: #{usg_forward.5} parent=35 // pred_region
        %vm282 = vcmask 517120
        %283 = vst.msk [vmem:[#allocation2] sm:$0x3] %vm282, 0.0
      $region40: #{usg_forward.5} parent=35 // pred_fallthru
        _
      %v284 = vld [vmem:[#allocation2] sm:$0x3]
      %v285 = vld [vmem:[%s253] sm:$0x7]
      %v286 = vld [vmem:[%s263] sm:$0xf]
      %v287 = vld [vmem:[%s263 + $0x4] sm:$0xf]
      %v288 = vld [vmem:[%s263 + $0x8] sm:$0xf]
      %v289 = vld [vmem:[%s263 + $0xc] sm:$0xf]
      %v290 = vld [vmem:[%s263 + $0x10] sm:$0xf]
      %v291 = vld [vmem:[%s263 + $0x14] sm:$0xf]
      %v292 = vld [vmem:[%s263 + $0x18] sm:$0xf]
      %v293 = vld [vmem:[%s263 + $0x1c] sm:$0xf]
      %v294 = vld [vmem:[%s263 + $0x20] sm:$0xf]
      %v295 = vld [vmem:[%s263 + $0x24] sm:$0xf]
      %v296 = vld [vmem:[%s263 + $0x28] sm:$0xf]
      %v297 = vld [vmem:[%s263 + $0x2c] sm:$0xf]
      %v298 = vld [vmem:[%s263 + $0x30] sm:$0xf]
      %v299 = vld [vmem:[%s263 + $0x34] sm:$0xf]
      %v300 = vld [vmem:[%s263 + $0x38] sm:$0xf]
      %v301 = vld [vmem:[%s263 + $0x3c] sm:$0xf]
      %v302 = vld [vmem:[%s263 + $0x40] sm:$0xf]
      %v303 = vld [vmem:[%s263 + $0x44] sm:$0xf]
      %v304 = vld [vmem:[%s263 + $0x48] sm:$0xf]
      %v305 = vld [vmem:[%s263 + $0x4c] sm:$0xf]
      %v306 = vld [vmem:[%s263 + $0x50] sm:$0xf]
      %v307 = vld [vmem:[%s263 + $0x54] sm:$0xf]
      %v308 = vld [vmem:[%s263 + $0x58] sm:$0xf]
      %v309 = vld [vmem:[%s263 + $0x5c] sm:$0xf]
      %v310 = vld [vmem:[%s263 + $0x60] sm:$0xf]
      %v311 = vld [vmem:[%s263 + $0x64] sm:$0xf]
      %v312 = vld [vmem:[%s263 + $0x68] sm:$0xf]
      %v313 = vld [vmem:[%s263 + $0x6c] sm:$0xf]
      %v314 = vld [vmem:[%s263 + $0x70] sm:$0xf]
      %v315 = vld [vmem:[%s263 + $0x74] sm:$0xf]
      %v316 = vld [vmem:[%s263 + $0x78] sm:$0xf]
      %v317 = vld [vmem:[%s263 + $0x7c] sm:$0xf]
      %v318 = vld [vmem:[%s263 + $0x80] sm:$0xf]
      %v319 = vld [vmem:[%s263 + $0x84] sm:$0xf]
      %v320 = vld [vmem:[%s263 + $0x88] sm:$0xf]
      %v321 = vld [vmem:[%s263 + $0x8c] sm:$0xf]
      %v322 = vld [vmem:[%s263 + $0x90] sm:$0xf]
      %v323 = vld [vmem:[%s263 + $0x94] sm:$0xf]
      %v324 = vld [vmem:[%s263 + $0x98] sm:$0xf]
      %v325 = vld [vmem:[%s263 + $0x9c] sm:$0xf]
      %v326 = vld [vmem:[%s263 + $0xa0] sm:$0xf]
      %v327 = vld [vmem:[%s263 + $0xa4] sm:$0xf]
      %v328 = vld [vmem:[%s263 + $0xa8] sm:$0xf]
      %v329 = vld [vmem:[%s263 + $0xac] sm:$0xf]
      %v330 = vld [vmem:[%s263 + $0xb0] sm:$0xf]
      %v331 = vld [vmem:[%s263 + $0xb4] sm:$0xf]
      %v332 = vld [vmem:[%s263 + $0xb8] sm:$0xf]
      %v333 = vld [vmem:[%s263 + $0xbc] sm:$0xf]
      %335 = vst [vmem:[#allocation1] ss:$9 sm:$0xff] %v285
      %v336 = vld [vmem:[#allocation1] sm:$0xff]
      %v337 = vld [vmem:[#allocation1 + $0x9] sm:$0xff]
      %v338 = vld [vmem:[#allocation1 + $0x12] sm:$0xff]
      %v390 = vunpack.c.l.b16 %v286
      %v391 = vunpack.c.l.b16 %v287
      %v392 = vunpack.c.l.b16 %v288
      %v393 = vunpack.c.l.b16 %v289
      %v394 = vunpack.c.l.b16 %v290
      %v395 = vunpack.c.l.b16 %v291
      %v396 = vunpack.c.l.b16 %v292
      %v397 = vunpack.c.l.b16 %v293
      %v398 = vunpack.c.l.b16 %v294
      %v399 = vunpack.c.l.b16 %v295
      %v400 = vunpack.c.l.b16 %v296
      %v401 = vunpack.c.l.b16 %v297
      %v402 = vunpack.c.l.b16 %v298
      %v403 = vunpack.c.l.b16 %v299
      %v404 = vunpack.c.l.b16 %v300
      %v405 = vunpack.c.l.b16 %v301
      %v406 = vunpack.c.l.b16 %v302
      %v407 = vunpack.c.l.b16 %v303
      %v408 = vunpack.c.l.b16 %v304
      %v409 = vunpack.c.l.b16 %v305
      %v410 = vunpack.c.l.b16 %v306
      %v411 = vunpack.c.l.b16 %v307
      %v412 = vunpack.c.l.b16 %v308
      %v413 = vunpack.c.l.b16 %v309
      %v414 = vunpack.c.l.b16 %v310
      %v415 = vunpack.c.l.b16 %v311
      %v416 = vunpack.c.l.b16 %v312
      %v417 = vunpack.c.l.b16 %v313
      %v418 = vunpack.c.l.b16 %v314
      %v419 = vunpack.c.l.b16 %v315
      %v420 = vunpack.c.l.b16 %v316
      %v421 = vunpack.c.l.b16 %v317
      %v422 = vunpack.c.l.b16 %v318
      %v423 = vunpack.c.l.b16 %v319
      %v424 = vunpack.c.l.b16 %v320
      %v425 = vunpack.c.l.b16 %v321
      %v426 = vunpack.c.l.b16 %v322
      %v427 = vunpack.c.l.b16 %v323
      %v428 = vunpack.c.l.b16 %v324
      %v429 = vunpack.c.l.b16 %v325
      %v430 = vunpack.c.l.b16 %v326
      %v431 = vunpack.c.l.b16 %v327
      %v432 = vunpack.c.l.b16 %v328
      %v433 = vunpack.c.l.b16 %v329
      %v434 = vunpack.c.l.b16 %v330
      %v435 = vunpack.c.l.b16 %v331
      %v436 = vunpack.c.l.b16 %v332
      %v437 = vunpack.c.l.b16 %v333
      %v438 = vpack.c.b16 %v391, %v390
      %v439 = vpack.c.b16 %v393, %v392
      %v440 = vpack.c.b16 %v395, %v394
      %v441 = vpack.c.b16 %v397, %v396
      %v442 = vpack.c.b16 %v399, %v398
      %v443 = vpack.c.b16 %v401, %v400
      %v444 = vpack.c.b16 %v403, %v402
      %v445 = vpack.c.b16 %v405, %v404
      %v446 = vpack.c.b16 %v407, %v406
      %v447 = vpack.c.b16 %v409, %v408
      %v448 = vpack.c.b16 %v411, %v410
      %v449 = vpack.c.b16 %v413, %v412
      %v450 = vpack.c.b16 %v415, %v414
      %v451 = vpack.c.b16 %v417, %v416
      %v452 = vpack.c.b16 %v419, %v418
      %v453 = vpack.c.b16 %v421, %v420
      %v454 = vpack.c.b16 %v423, %v422
      %v455 = vpack.c.b16 %v425, %v424
      %v456 = vpack.c.b16 %v427, %v426
      %v457 = vpack.c.b16 %v429, %v428
      %v458 = vpack.c.b16 %v431, %v430
      %v459 = vpack.c.b16 %v433, %v432
      %v460 = vpack.c.b16 %v435, %v434
      %v461 = vpack.c.b16 %v437, %v436
      %486 = vmatpush.bf16.msra.mxu0 %v445
      %487 = vmatpush.bf16.msra.mxu0 %v444
      %488 = vmatpush.bf16.msra.mxu0 %v443
      %489 = vmatpush.bf16.msra.mxu0 %v442
      %490 = vmatpush.bf16.msra.mxu0 %v441
      %491 = vmatpush.bf16.msra.mxu0 %v440
      %492 = vmatpush.bf16.msra.mxu0 %v439
      %493 = vmatpush.bf16.msra.mxu0 %v438
      %494 = vmatmul.bf16.gmra.mxu0 %v336
      %v495 = vpop.f32.mrf.mxu0
      %v496 = vadd.f32 0.0, %v495
      %v497 = vpop.f32.mrf.mxu0
      %498 = vdwg.mxu0
      %499 = vmatpush.bf16.msra.mxu0 %v453
      %500 = vmatpush.bf16.msra.mxu0 %v452
      %501 = vmatpush.bf16.msra.mxu0 %v451
      %502 = vmatpush.bf16.msra.mxu0 %v450
      %503 = vmatpush.bf16.msra.mxu0 %v449
      %504 = vmatpush.bf16.msra.mxu0 %v448
      %505 = vmatpush.bf16.msra.mxu0 %v447
      %506 = vmatpush.bf16.msra.mxu0 %v446
      %507 = vmatmul.bf16.gmra.mxu0 %v337
      %v508 = vpop.f32.mrf.mxu0
      %v509 = vadd.f32 %v496, %v508
      %v510 = vpop.f32.mrf.mxu0
      %511 = vdwg.mxu0
      %512 = vmatpush.bf16.msra.mxu0 %v461
      %513 = vmatpush.bf16.msra.mxu0 %v460
      %514 = vmatpush.bf16.msra.mxu0 %v459
      %515 = vmatpush.bf16.msra.mxu0 %v458
      %516 = vmatpush.bf16.msra.mxu0 %v457
      %517 = vmatpush.bf16.msra.mxu0 %v456
      %518 = vmatpush.bf16.msra.mxu0 %v455
      %519 = vmatpush.bf16.msra.mxu0 %v454
      %520 = vmatmul.bf16.gmra.mxu0 %v338
      %v521 = vpop.f32.mrf.mxu0
      %v522 = vadd.f32 %v509, %v521
      %v523 = vpop.f32.mrf.mxu0
      %524 = vdwg.mxu0
      %v525 = vadd.f32 %v284, %v522
      %vm526 = vcmask 517120
      %527 = vst.msk [vmem:[#allocation2] sm:$0x3] %vm526, %v525
      // Predicated region
      $region41: #{usg_forward.5} parent=35 // pred_check
        %p528 = pneg %p278
      $region42: #{usg_forward.5} parent=35 // pred_check_branch
        %530 = sbr.rel (%p528) target = $region44
      $region43: #{usg_forward.5} parent=35 // pred_region
        %v531 = vld [vmem:[#allocation2] sm:$0x3]
        %v532 = vld [vmem:[%s267] sm:$0x1]
        %v534 = vperm.slane %v532, 0
        %v536 = vadd.f32 %v531, %v534
        %v537 = vmax.f32 %v536, 0.0
        %v538 = vpack.c.bf16 %v537, %v537
        %v539 = vld [vmem:[%s272] sm:$0xf]
        %v540 = vld [vmem:[%s272 + $0x4] sm:$0xf]
        %v541 = vld [vmem:[%s272 + $0x8] sm:$0xf]
        %v542 = vld [vmem:[%s272 + $0xc] sm:$0xf]
        %v543 = vld [vmem:[%s272 + $0x10] sm:$0xf]
        %v544 = vld [vmem:[%s272 + $0x14] sm:$0xf]
        %v545 = vld [vmem:[%s272 + $0x18] sm:$0xf]
        %v546 = vld [vmem:[%s272 + $0x1c] sm:$0xf]
        %v555 = vunpack.c.l.b16 %v539
        %v556 = vunpack.c.l.b16 %v540
        %v557 = vunpack.c.l.b16 %v541
        %v558 = vunpack.c.l.b16 %v542
        %v559 = vunpack.c.l.b16 %v543
        %v560 = vunpack.c.l.b16 %v544
        %v561 = vunpack.c.l.b16 %v545
        %v562 = vunpack.c.l.b16 %v546
        %v563 = vpack.c.b16 %v556, %v555
        %v564 = vpack.c.b16 %v558, %v557
        %v565 = vpack.c.b16 %v560, %v559
        %v566 = vpack.c.b16 %v562, %v561
        %vm571 = vcmask 523264
        %v573 = vsel %vm571, %v538, 0
        %575 = vmatpush.bf16.msra.mxu0 0
        %576 = vmatpush.bf16.msra.mxu0 0
        %577 = vmatpush.bf16.msra.mxu0 0
        %578 = vmatpush.bf16.msra.mxu0 0
        %579 = vmatpush.bf16.msra.mxu0 %v566
        %580 = vmatpush.bf16.msra.mxu0 %v565
        %581 = vmatpush.bf16.msra.mxu0 %v564
        %582 = vmatpush.bf16.msra.mxu0 %v563
        %583 = vmatmul.bf16.gmra.mxu0 %v573
        %v584 = vpop.f32.mrf.mxu0
        %v585 = vadd.f32 0.0, %v584
        %v586 = vpop.f32.mrf.mxu0
        %587 = vdwg.mxu0
        %588 = vst [vmem:[%s276] sm:$0x3] %v585
      $region44: #{usg_forward.5} parent=35 // pred_fallthru
        _
      %p589 = scmp.lt.s32.totalorder %s19, 1
      %s590 = scalar_select %p589, %s19, 1
      %s591 = smul.addr %s590, 2
      %s592 = scalar_lea.vmem %s4, %s591
      // Predicated region
      $region45: #{usg_forward.5} parent=35 // pred_check
        %p593 = pneg %p151
      $region46: #{usg_forward.5} parent=35 // pred_check_branch
        %595 = sbr.rel (%p593) target = $region48
      $region47: #{usg_forward.5} parent=35 // pred_region
        _
      $region48: #{usg_forward.5} parent=35 // pred_fallthru
        _
    $region36: #{usg_forward.5} parent=5 // pred_fallthru
      _
    %p596 = scmp.le.s32.totalorder 2, %s10
    // Predicated region
    $region49: #{usg_forward.5} parent=5 // pred_check
      %p597 = pneg %p596
    $region50: #{usg_forward.5} parent=5 // pred_check_branch
      %599 = sbr.rel (%p597) target = $region52
    $region51: #{usg_forward.5} parent=5 // pred_region
      %s600 = ssub.s32 %s10, 2
      // Predicated region
      $region53: #{usg_forward.5} parent=51 // pred_check
        %p601 = pneg %p157
      $region54: #{usg_forward.5} parent=51 // pred_check_branch
        %603 = sbr.rel (%p601) target = $region56
      $region55: #{usg_forward.5} parent=51 // pred_region
        %p604 = scmp.lt.s32.totalorder %s21, 1
        %s605 = scalar_select %p604, %s21, 1
        %s606 = smul.addr %s605, 2
        %s607 = scalar_lea.vmem %s4, %s606
      $region56: #{usg_forward.5} parent=51 // pred_fallthru
        _
    $region52: #{usg_forward.5} parent=5 // pred_fallthru
      _
  $region6: #{usg_forward.5} parent=0 // loop_footer
    %s14 = sadd.s32 1, %s10
  $region7: #{usg_forward.5} parent=0 // loop_footer_branch
    %9 = sbr.rel target = $region3
  $region8: #{usg_forward.5} parent=0 // loop_exit
    _

</llo_original>
